<compile_context>
chip_gen: v5e
topology: v5e:2x2
jax: 0.10.0
libtpu: 0.0.40
codegen_flags: <defaults>
</compile_context>

<pallas_src>
import jax
import jax.numpy as jnp
from jax.experimental import pallas as pl
from jax.experimental.pallas import tpu as pltpu

INPUT_SIZE = 784
HIDDEN_SIZE = 400
LATENT_SIZE = 2
BATCH = 8


def vae_kernel(x_ref, eps_ref,
               w1_ref, b1_ref,
               w2122_ref, b2122_ref,
               w3_ref, b3_ref,
               w4_hbm_ref, b4_ref,
               recon_ref, mulogvar_ref,
               w4_vmem, w4_sem):
    # Kick off the decoder-weight DMA immediately; hide it behind encoder compute.
    w4_copy = pltpu.make_async_copy(w4_hbm_ref, w4_vmem, w4_sem)
    w4_copy.start()

    x = x_ref[...]

    # encode: h = relu(x @ W1 + b1)   (bf16 operands, f32 accumulation)
    h = jnp.dot(x.astype(jnp.bfloat16), w1_ref[...],
                preferred_element_type=jnp.float32) + b1_ref[...]
    h = jnp.maximum(h, 0.0)

    # fused fc21/fc22: one (400, 4) dot; cols [0:2] = mu, [2:4] = logvar
    ml = jnp.dot(h, w2122_ref[...],
                 preferred_element_type=jnp.float32) + b2122_ref[...]
    mu = ml[:, 0:LATENT_SIZE]
    logvar = ml[:, LATENT_SIZE:2 * LATENT_SIZE]

    # reparameterize: z = mu + exp(0.5 * logvar) * eps   (all f32 on the VPU/EUP)
    std = jnp.exp(0.5 * logvar)
    z = mu + std * eps_ref[...]

    # decode layer 1: K=2 contraction done as a VPU rank-2 update (no padded MXU dot)
    h2 = (z[:, 0:1] * w3_ref[0:1, :] +
          z[:, 1:2] * w3_ref[1:2, :]) + b3_ref[...]
    h2 = jnp.maximum(h2, 0.0)

    # decode layer 2: wait for w4 DMA, then fc4 + sigmoid
    w4_copy.wait()
    logits = jnp.dot(h2.astype(jnp.bfloat16), w4_vmem[...],
                     preferred_element_type=jnp.float32) + b4_ref[...]
    recon_ref[...] = jax.nn.sigmoid(logits)
    mulogvar_ref[...] = ml


def vae_forward_pallas(x, eps, params):
    """params = (w1_bf16, b1, w2122, b2122, w3, b3, w4_bf16, b4)."""
    B = x.shape[0]
    vmem = pl.BlockSpec(memory_space=pltpu.MemorySpace.VMEM)
    hbm = pl.BlockSpec(memory_space=pl.ANY)   # w4 stays in HBM; kernel DMAs it

    in_specs = [
        vmem,  # x
        vmem,  # eps
        vmem,  # w1 (bf16)
        vmem,  # b1
        vmem,  # w2122
        vmem,  # b2122
        vmem,  # w3
        vmem,  # b3
        hbm,   # w4 (bf16, manual DMA)
        vmem,  # b4
    ]
    out_shapes = (
        jax.ShapeDtypeStruct((B, INPUT_SIZE), jnp.float32),        # reconstruction
        jax.ShapeDtypeStruct((B, 2 * LATENT_SIZE), jnp.float32),   # [mu | logvar]
    )
    recon, mulogvar = pl.pallas_call(
        vae_kernel,
        out_shape=out_shapes,
        in_specs=in_specs,
        out_specs=(vmem, vmem),
        scratch_shapes=[
            pltpu.VMEM((HIDDEN_SIZE, INPUT_SIZE), jnp.bfloat16),  # w4 landing buffer
            pltpu.SemaphoreType.DMA,                              # w4 DMA semaphore
        ],
    )(x, eps, *params)
    mu = mulogvar[:, :LATENT_SIZE]
    logvar = mulogvar[:, LATENT_SIZE:]
    return recon, mu, logvar


def init_params(key):
    """Deterministic Linear params, pre-transposed to (in, out).

    w1 / w4 are stored in bfloat16 (MXU-native, halves weight DMA); everything else
    and all biases stay float32. fc21/fc22 are fused into one (400, 4) matrix.
    """
    def linear(k, fan_in, fan_out):
        kw, kb = jax.random.split(k)
        bound = 1.0 / jnp.sqrt(fan_in)
        w = jax.random.uniform(kw, (fan_in, fan_out), jnp.float32, -bound, bound)
        b = jax.random.uniform(kb, (1, fan_out), jnp.float32, -bound, bound)
        return w, b

    k1, k21, k22, k3, k4 = jax.random.split(key, 5)
    w1, b1 = linear(k1, INPUT_SIZE, HIDDEN_SIZE)
    w21, b21 = linear(k21, HIDDEN_SIZE, LATENT_SIZE)
    w22, b22 = linear(k22, HIDDEN_SIZE, LATENT_SIZE)
    w3, b3 = linear(k3, LATENT_SIZE, HIDDEN_SIZE)
    w4, b4 = linear(k4, HIDDEN_SIZE, INPUT_SIZE)

    w2122 = jnp.concatenate([w21, w22], axis=1)   # (400, 4)
    b2122 = jnp.concatenate([b21, b22], axis=1)   # (1, 4)

    return (w1.astype(jnp.bfloat16), b1,
            w2122, b2122,
            w3, b3,
            w4.astype(jnp.bfloat16), b4)


def vae_forward_ref(x, eps, params):
    """Pure-JAX reference mirroring the kernel's bf16 rounding on the big GEMMs."""
    w1, b1, w2122, b2122, w3, b3, w4, b4 = params
    xb = x.astype(jnp.bfloat16).astype(jnp.float32)
    h = jnp.maximum(xb @ w1.astype(jnp.float32) + b1, 0.0)
    ml = h @ w2122 + b2122
    mu, logvar = ml[:, :LATENT_SIZE], ml[:, LATENT_SIZE:]
    z = mu + jnp.exp(0.5 * logvar) * eps
    h2 = jnp.maximum(z @ w3 + b3, 0.0)
    h2b = h2.astype(jnp.bfloat16).astype(jnp.float32)
    recon = jax.nn.sigmoid(h2b @ w4.astype(jnp.float32) + b4)
    return recon, mu, logvar


if __name__ == "__main__":
    key = jax.random.PRNGKey(0)
    k_x, k_eps, k_p = jax.random.split(key, 3)

    x = jax.random.uniform(k_x, (BATCH, INPUT_SIZE), jnp.float32)      # MNIST-like [0,1)
    # eps for the reparameterization trick (torch.randn_like analogue),
    # generated in the wrapper so the kernel is deterministic.
    eps = jax.random.normal(k_eps, (BATCH, LATENT_SIZE), jnp.float32)
    params = init_params(k_p)

    recon, mu, logvar = jax.block_until_ready(vae_forward_pallas(x, eps, params))

    recon_r, mu_r, logvar_r = vae_forward_ref(x, eps, params)
    assert recon.shape == (BATCH, INPUT_SIZE)
    assert mu.shape == (BATCH, LATENT_SIZE)
    assert logvar.shape == (BATCH, LATENT_SIZE)
    assert jnp.allclose(recon, recon_r, atol=1e-3, rtol=1e-3)
    assert jnp.allclose(mu, mu_r, atol=1e-3, rtol=1e-3)
    assert jnp.allclose(logvar, logvar_r, atol=1e-3, rtol=1e-3)

    print("KERNEL_OK")
</pallas_src>

<mosaic_0001>
module attributes {stable_mosaic.version = 11 : i64} {
  func.func @vae_kernel(%arg0: memref<8x784xf32, #tpu.memory_space<vmem>>, %arg1: memref<8x2xf32, #tpu.memory_space<vmem>>, %arg2: memref<784x400xbf16, #tpu.memory_space<vmem>>, %arg3: memref<1x400xf32, #tpu.memory_space<vmem>>, %arg4: memref<400x4xf32, #tpu.memory_space<vmem>>, %arg5: memref<1x4xf32, #tpu.memory_space<vmem>>, %arg6: memref<2x400xf32, #tpu.memory_space<vmem>>, %arg7: memref<1x400xf32, #tpu.memory_space<vmem>>, %arg8: memref<400x784xbf16, #tpu.memory_space<any>>, %arg9: memref<1x784xf32, #tpu.memory_space<vmem>>, %arg10: memref<8x784xf32, #tpu.memory_space<vmem>>, %arg11: memref<8x4xf32, #tpu.memory_space<vmem>>, %arg12: memref<400x784xbf16, #tpu.memory_space<vmem>>, %arg13: memref<!tpu.dma_semaphore, #tpu.memory_space<semaphore_mem>>) attributes {dimension_semantics = [], scalar_prefetch = 0 : i64, scratch_operands = 2 : i64, tpu.core_type = #tpu.core_type<tc>} {
    tpu.enqueue_dma source(%arg8 : memref<400x784xbf16, #tpu.memory_space<any>>) target(%arg12 : memref<400x784xbf16, #tpu.memory_space<vmem>>) target_semaphore(%arg13 : memref<!tpu.dma_semaphore, #tpu.memory_space<semaphore_mem>>)
    %c0 = arith.constant 0 : index
    %c0_0 = arith.constant 0 : index
    %0 = vector.load %arg0[%c0, %c0_0] : memref<8x784xf32, #tpu.memory_space<vmem>>, vector<8x784xf32>
    %1 = arith.truncf %0 : vector<8x784xf32> to vector<8x784xbf16>
    %c0_1 = arith.constant 0 : index
    %c0_2 = arith.constant 0 : index
    %2 = vector.load %arg2[%c0_1, %c0_2] : memref<784x400xbf16, #tpu.memory_space<vmem>>, vector<784x400xbf16>
    %cst = arith.constant dense<0.000000e+00> : vector<8x400xf32>
    %3 = tpu.matmul %1, %2, %cst {dimension_numbers = #tpu.dot_dimension_numbers<[1], [0], [0], [1], [0, 0, 1, 1], [], []>} : vector<8x784xbf16>, vector<784x400xbf16>, vector<8x400xf32> -> vector<8x400xf32>
    %c0_3 = arith.constant 0 : index
    %c0_4 = arith.constant 0 : index
    %4 = vector.load %arg3[%c0_3, %c0_4] : memref<1x400xf32, #tpu.memory_space<vmem>>, vector<1x400xf32>
    %5 = vector.broadcast %4 : vector<1x400xf32> to vector<8x400xf32>
    %6 = arith.addf %3, %5 : vector<8x400xf32>
    %cst_5 = arith.constant 0.000000e+00 : f32
    %7 = vector.broadcast %cst_5 : f32 to vector<8x400xf32>
    %8 = arith.maximumf %6, %7 : vector<8x400xf32>
    %c0_6 = arith.constant 0 : index
    %c0_7 = arith.constant 0 : index
    %9 = vector.load %arg4[%c0_6, %c0_7] : memref<400x4xf32, #tpu.memory_space<vmem>>, vector<400x4xf32>
    %cst_8 = arith.constant dense<0.000000e+00> : vector<8x4xf32>
    %10 = tpu.matmul %8, %9, %cst_8 {dimension_numbers = #tpu.dot_dimension_numbers<[1], [0], [0], [1], [0, 0, 1, 1], [], []>} : vector<8x400xf32>, vector<400x4xf32>, vector<8x4xf32> -> vector<8x4xf32>
    %c0_9 = arith.constant 0 : index
    %c0_10 = arith.constant 0 : index
    %11 = vector.load %arg5[%c0_9, %c0_10] : memref<1x4xf32, #tpu.memory_space<vmem>>, vector<1x4xf32>
    %12 = vector.broadcast %11 : vector<1x4xf32> to vector<8x4xf32>
    %13 = arith.addf %10, %12 : vector<8x4xf32>
    %14 = vector.extract_strided_slice %13 {offsets = [0, 0], sizes = [8, 2], strides = [1, 1]} : vector<8x4xf32> to vector<8x2xf32>
    %15 = vector.extract_strided_slice %13 {offsets = [0, 2], sizes = [8, 2], strides = [1, 1]} : vector<8x4xf32> to vector<8x2xf32>
    %cst_11 = arith.constant 5.000000e-01 : f32
    %16 = vector.broadcast %cst_11 : f32 to vector<8x2xf32>
    %17 = arith.mulf %16, %15 : vector<8x2xf32>
    %18 = math.exp %17 : vector<8x2xf32>
    %c0_12 = arith.constant 0 : index
    %c0_13 = arith.constant 0 : index
    %19 = vector.load %arg1[%c0_12, %c0_13] : memref<8x2xf32, #tpu.memory_space<vmem>>, vector<8x2xf32>
    %20 = arith.mulf %18, %19 : vector<8x2xf32>
    %21 = arith.addf %14, %20 : vector<8x2xf32>
    %22 = vector.extract_strided_slice %21 {offsets = [0, 0], sizes = [8, 1], strides = [1, 1]} : vector<8x2xf32> to vector<8x1xf32>
    %c0_14 = arith.constant 0 : index
    %c0_15 = arith.constant 0 : index
    %23 = vector.load %arg6[%c0_14, %c0_15] : memref<2x400xf32, #tpu.memory_space<vmem>>, vector<1x400xf32>
    %24 = vector.broadcast %22 : vector<8x1xf32> to vector<8x400xf32>
    %25 = vector.broadcast %23 : vector<1x400xf32> to vector<8x400xf32>
    %26 = arith.mulf %24, %25 : vector<8x400xf32>
    %27 = vector.extract_strided_slice %21 {offsets = [0, 1], sizes = [8, 1], strides = [1, 1]} : vector<8x2xf32> to vector<8x1xf32>
    %c1 = arith.constant 1 : index
    %c0_16 = arith.constant 0 : index
    %28 = vector.load %arg6[%c1, %c0_16] : memref<2x400xf32, #tpu.memory_space<vmem>>, vector<1x400xf32>
    %29 = vector.broadcast %27 : vector<8x1xf32> to vector<8x400xf32>
    %30 = vector.broadcast %28 : vector<1x400xf32> to vector<8x400xf32>
    %31 = arith.mulf %29, %30 : vector<8x400xf32>
    %32 = arith.addf %26, %31 : vector<8x400xf32>
    %c0_17 = arith.constant 0 : index
    %c0_18 = arith.constant 0 : index
    %33 = vector.load %arg7[%c0_17, %c0_18] : memref<1x400xf32, #tpu.memory_space<vmem>>, vector<1x400xf32>
    %34 = vector.broadcast %33 : vector<1x400xf32> to vector<8x400xf32>
    %35 = arith.addf %32, %34 : vector<8x400xf32>
    %cst_19 = arith.constant 0.000000e+00 : f32
    %36 = vector.broadcast %cst_19 : f32 to vector<8x400xf32>
    %37 = arith.maximumf %35, %36 : vector<8x400xf32>
    tpu.wait_dma2 semaphore(%arg13 : memref<!tpu.dma_semaphore, #tpu.memory_space<semaphore_mem>>) src(%arg8 : memref<400x784xbf16, #tpu.memory_space<any>>) dst(%arg12 : memref<400x784xbf16, #tpu.memory_space<vmem>>)
    %38 = arith.truncf %37 : vector<8x400xf32> to vector<8x400xbf16>
    %c0_20 = arith.constant 0 : index
    %c0_21 = arith.constant 0 : index
    %39 = vector.load %arg12[%c0_20, %c0_21] : memref<400x784xbf16, #tpu.memory_space<vmem>>, vector<400x784xbf16>
    %cst_22 = arith.constant dense<0.000000e+00> : vector<8x784xf32>
    %40 = tpu.matmul %38, %39, %cst_22 {dimension_numbers = #tpu.dot_dimension_numbers<[1], [0], [0], [1], [0, 0, 1, 1], [], []>} : vector<8x400xbf16>, vector<400x784xbf16>, vector<8x784xf32> -> vector<8x784xf32>
    %c0_23 = arith.constant 0 : index
    %c0_24 = arith.constant 0 : index
    %41 = vector.load %arg9[%c0_23, %c0_24] : memref<1x784xf32, #tpu.memory_space<vmem>>, vector<1x784xf32>
    %42 = vector.broadcast %41 : vector<1x784xf32> to vector<8x784xf32>
    %43 = arith.addf %40, %42 : vector<8x784xf32>
    %44 = arith.negf %43 : vector<8x784xf32>
    %45 = math.exp %44 : vector<8x784xf32>
    %cst_25 = arith.constant 1.000000e+00 : f32
    %46 = vector.broadcast %cst_25 : f32 to vector<8x784xf32>
    %47 = arith.addf %46, %45 : vector<8x784xf32>
    %48 = arith.divf %46, %47 : vector<8x784xf32>
    %c0_26 = arith.constant 0 : index
    %c0_27 = arith.constant 0 : index
    %49 = vector.load %arg10[%c0_26, %c0_27] : memref<8x784xf32, #tpu.memory_space<vmem>>, vector<8x784xf32>
    tpu.vector_store %arg10[%c0_26, %c0_27], %48 {strides = array<i32>} : memref<8x784xf32, #tpu.memory_space<vmem>>, vector<8x784xf32>,
    %c0_28 = arith.constant 0 : index
    %c0_29 = arith.constant 0 : index
    %50 = vector.load %arg11[%c0_28, %c0_29] : memref<8x4xf32, #tpu.memory_space<vmem>>, vector<8x4xf32>
    tpu.vector_store %arg11[%c0_28, %c0_29], %13 {strides = array<i32>} : memref<8x4xf32, #tpu.memory_space<vmem>>, vector<8x4xf32>,
    return
  }
}

</mosaic_0001>

<llo_original>
// kernel: tpu_custom_call.1
$region0: #{tpu_custom_call.1}
  #allocation0 [shape = 'u32[]', space=smem, size = 0x4, offset = 0x4, fixed_abs, tag = 'smem constant byte address 0x4 - core index']
  #allocation1 [shape = 'u32[72,128]{1,0:T(1,128)}', space=vmem, size = 0x9000, scoped, tag = 'internal scratch']
  #allocation2 [shape = 'bf16[400,784]{1,0:T(8,128)(2,1)}', space=vmem, size = 0xaf000, scoped, tag = 'scratch operand']
  #allocation3 [shape = 's32[1]{0}', space=sflag, size = 0x4, scoped, tag = 'scratch operand']
  #allocation6 [shape = 's32[]', space=sflag, size = 0x4, offset = 0, fixed_abs, tag = 'sflag constant byte address 0x0 - dummy sync flag']
  %s0 = inlined_call_operand.vmem [shape: f32[8,784], index: 0, kind: input, shape index: {}]
  %s1 = inlined_call_operand.vmem [shape: f32[8,2], index: 1, kind: input, shape index: {}]
  %s2 = inlined_call_operand.vmem [shape: bf16[784,400], index: 2, kind: input, shape index: {}]
  %s3 = inlined_call_operand.vmem [shape: f32[1,400], index: 3, kind: input, shape index: {}]
  %s4 = inlined_call_operand.vmem [shape: f32[400,4], index: 4, kind: input, shape index: {}]
  %s5 = inlined_call_operand.vmem [shape: f32[1,4], index: 5, kind: input, shape index: {}]
  %s6 = inlined_call_operand.vmem [shape: f32[2,400], index: 6, kind: input, shape index: {}]
  %s7 = inlined_call_operand.vmem [shape: f32[1,400], index: 7, kind: input, shape index: {}]
  %s8 = inlined_call_operand.vmem [shape: bf16[400,784], index: 8, kind: input, shape index: {}]
  %s9 = inlined_call_operand.vmem [shape: f32[1,784], index: 9, kind: input, shape index: {}]
  %s10 = inlined_call_operand.hbm [shape: f32[8,784], index: 10, kind: output, shape index: {0}]
  %s11 = inlined_call_operand.vmem [shape: f32[8,4], index: 11, kind: output, shape index: {1}]
  %12 = xla_tuple %s10, %s11
  %s13 = sld [smem:[#allocation0]]
  $region73: #{tpu_custom_call.1} parent=0
    _
  %s15 = ssub.s32 1, %s13
  %s16 = scalar_select 0, %s15, %s13
  $region1: #{tpu_custom_call.1} parent=0
    #allocation4 [shape = 'u8[28672]{0}', space=vmem, size = 0x7000, scoped, tag = 'output window, operand 0, single buffered']
    #allocation5 [shape = 's32[1]{0}', space=sflag, size = 0x4, scoped, tag = 'scoped memory for tpu_custom_call.1']
    %17 = vsyncpa [#allocation5], 0
    // Predicated region
    $region2: #{tpu_custom_call.1} parent=1 // pred_check
      _
    $region3: #{tpu_custom_call.1} parent=1 // pred_check_branch
      %19 = sbr.rel (0) target = $region5
    $region4: #{tpu_custom_call.1} parent=1 // pred_region
      _
    $region5: #{tpu_custom_call.1} parent=1 // pred_fallthru
      _
    // Predicated region
    $region6: #{tpu_custom_call.1} parent=1 // pred_check
      _
    $region7: #{tpu_custom_call.1} parent=1 // pred_check_branch
      %21 = sbr.rel (0) target = $region9
    $region8: #{tpu_custom_call.1} parent=1 // pred_region
      _
    $region9: #{tpu_custom_call.1} parent=1 // pred_fallthru
      _
    // Predicated region
    $region10: #{tpu_custom_call.1} parent=1 // pred_check
      _
    $region11: #{tpu_custom_call.1} parent=1 // pred_check_branch
      %23 = sbr.rel (0) target = $region13
    $region12: #{tpu_custom_call.1} parent=1 // pred_region
      _
    $region13: #{tpu_custom_call.1} parent=1 // pred_fallthru
      _
    // Predicated region
    $region14: #{tpu_custom_call.1} parent=1 // pred_check
      _
    $region15: #{tpu_custom_call.1} parent=1 // pred_check_branch
      %25 = sbr.rel (0) target = $region17
    $region16: #{tpu_custom_call.1} parent=1 // pred_region
      _
    $region17: #{tpu_custom_call.1} parent=1 // pred_fallthru
      _
    // Predicated region
    $region18: #{tpu_custom_call.1} parent=1 // pred_check
      _
    $region19: #{tpu_custom_call.1} parent=1 // pred_check_branch
      %27 = sbr.rel (0) target = $region21
    $region20: #{tpu_custom_call.1} parent=1 // pred_region
      _
    $region21: #{tpu_custom_call.1} parent=1 // pred_fallthru
      _
    // Predicated region
    $region22: #{tpu_custom_call.1} parent=1 // pred_check
      _
    $region23: #{tpu_custom_call.1} parent=1 // pred_check_branch
      %29 = sbr.rel (0) target = $region25
    $region24: #{tpu_custom_call.1} parent=1 // pred_region
      _
    $region25: #{tpu_custom_call.1} parent=1 // pred_fallthru
      _
    // Predicated region
    $region26: #{tpu_custom_call.1} parent=1 // pred_check
      _
    $region27: #{tpu_custom_call.1} parent=1 // pred_check_branch
      %31 = sbr.rel (0) target = $region29
    $region28: #{tpu_custom_call.1} parent=1 // pred_region
      _
    $region29: #{tpu_custom_call.1} parent=1 // pred_fallthru
      _
    // Predicated region
    $region30: #{tpu_custom_call.1} parent=1 // pred_check
      _
    $region31: #{tpu_custom_call.1} parent=1 // pred_check_branch
      %33 = sbr.rel (0) target = $region33
    $region32: #{tpu_custom_call.1} parent=1 // pred_region
      _
    $region33: #{tpu_custom_call.1} parent=1 // pred_fallthru
      _
    // Predicated region
    $region34: #{tpu_custom_call.1} parent=1 // pred_check
      _
    $region35: #{tpu_custom_call.1} parent=1 // pred_check_branch
      %35 = sbr.rel (0) target = $region37
    $region36: #{tpu_custom_call.1} parent=1 // pred_region
      _
    $region37: #{tpu_custom_call.1} parent=1 // pred_fallthru
      _
    // Predicated region
    $region38: #{tpu_custom_call.1} parent=1 // pred_check
      _
    $region39: #{tpu_custom_call.1} parent=1 // pred_check_branch
      %38 = sbr.rel (0) target = $region41
    $region40: #{tpu_custom_call.1} parent=1 // pred_region
      loop: start=0, step=1, limit=1
      $region42: #{tpu_custom_call.1} parent=40 // loop_pre_header
        _
      $region43: #{tpu_custom_call.1} parent=40 // loop_header
        %s40 = sphi 0, %s44
        %p41 = scmp.ge.s32.totalorder %s40, 1
        %s45 = sphi %s8, %s8
        %s46 = sphi [#allocation2], [#allocation2]
      $region44: #{tpu_custom_call.1} parent=40 // loop_header_branch
        %43 = sbr.rel (%p41) target = $region48
      $region45: #{tpu_custom_call.1} parent=40 // loop_body
        %v47 = vld [vmem:[%s45] sm:$0xff]
        %48 = vst [vmem:[%s46] sm:$0xff] %v47
        %v49 = vld [vmem:[%s45 + $0x8] sm:$0xff]
        %50 = vst [vmem:[%s46 + $0x8] sm:$0xff] %v49
        %v51 = vld [vmem:[%s45 + $0x10] sm:$0xff]
        %52 = vst [vmem:[%s46 + $0x10] sm:$0xff] %v51
        %v53 = vld [vmem:[%s45 + $0x18] sm:$0xff]
        %54 = vst [vmem:[%s46 + $0x18] sm:$0xff] %v53
        %v55 = vld [vmem:[%s45 + $0x20] sm:$0xff]
        %56 = vst [vmem:[%s46 + $0x20] sm:$0xff] %v55
        %v57 = vld [vmem:[%s45 + $0x28] sm:$0xff]
        %58 = vst [vmem:[%s46 + $0x28] sm:$0xff] %v57
        %v59 = vld [vmem:[%s45 + $0x30] sm:$0xff]
        %60 = vst [vmem:[%s46 + $0x30] sm:$0xff] %v59
        %v61 = vld [vmem:[%s45 + $0x38] sm:$0xff]
        %62 = vst [vmem:[%s46 + $0x38] sm:$0xff] %v61
        %v63 = vld [vmem:[%s45 + $0x40] sm:$0xff]
        %64 = vst [vmem:[%s46 + $0x40] sm:$0xff] %v63
        %v65 = vld [vmem:[%s45 + $0x48] sm:$0xff]
        %66 = vst [vmem:[%s46 + $0x48] sm:$0xff] %v65
        %v67 = vld [vmem:[%s45 + $0x50] sm:$0xff]
        %68 = vst [vmem:[%s46 + $0x50] sm:$0xff] %v67
        %v69 = vld [vmem:[%s45 + $0x58] sm:$0xff]
        %70 = vst [vmem:[%s46 + $0x58] sm:$0xff] %v69
        %v71 = vld [vmem:[%s45 + $0x60] sm:$0xff]
        %72 = vst [vmem:[%s46 + $0x60] sm:$0xff] %v71
        %v73 = vld [vmem:[%s45 + $0x68] sm:$0xff]
        %74 = vst [vmem:[%s46 + $0x68] sm:$0xff] %v73
        %v75 = vld [vmem:[%s45 + $0x70] sm:$0xff]
        %76 = vst [vmem:[%s46 + $0x70] sm:$0xff] %v75
        %v77 = vld [vmem:[%s45 + $0x78] sm:$0xff]
        %78 = vst [vmem:[%s46 + $0x78] sm:$0xff] %v77
        %v79 = vld [vmem:[%s45 + $0x80] sm:$0xff]
        %80 = vst [vmem:[%s46 + $0x80] sm:$0xff] %v79
        %v81 = vld [vmem:[%s45 + $0x88] sm:$0xff]
        %82 = vst [vmem:[%s46 + $0x88] sm:$0xff] %v81
        %v83 = vld [vmem:[%s45 + $0x90] sm:$0xff]
        %84 = vst [vmem:[%s46 + $0x90] sm:$0xff] %v83
        %v85 = vld [vmem:[%s45 + $0x98] sm:$0xff]
        %86 = vst [vmem:[%s46 + $0x98] sm:$0xff] %v85
        %v87 = vld [vmem:[%s45 + $0xa0] sm:$0xff]
        %88 = vst [vmem:[%s46 + $0xa0] sm:$0xff] %v87
        %v89 = vld [vmem:[%s45 + $0xa8] sm:$0xff]
        %90 = vst [vmem:[%s46 + $0xa8] sm:$0xff] %v89
        %v91 = vld [vmem:[%s45 + $0xb0] sm:$0xff]
        %92 = vst [vmem:[%s46 + $0xb0] sm:$0xff] %v91
        %v93 = vld [vmem:[%s45 + $0xb8] sm:$0xff]
        %94 = vst [vmem:[%s46 + $0xb8] sm:$0xff] %v93
        %v95 = vld [vmem:[%s45 + $0xc0] sm:$0xff]
        %96 = vst [vmem:[%s46 + $0xc0] sm:$0xff] %v95
        %v97 = vld [vmem:[%s45 + $0xc8] sm:$0xff]
        %98 = vst [vmem:[%s46 + $0xc8] sm:$0xff] %v97
        %v99 = vld [vmem:[%s45 + $0xd0] sm:$0xff]
        %100 = vst [vmem:[%s46 + $0xd0] sm:$0xff] %v99
        %v101 = vld [vmem:[%s45 + $0xd8] sm:$0xff]
        %102 = vst [vmem:[%s46 + $0xd8] sm:$0xff] %v101
        %v103 = vld [vmem:[%s45 + $0xe0] sm:$0xff]
        %104 = vst [vmem:[%s46 + $0xe0] sm:$0xff] %v103
        %v105 = vld [vmem:[%s45 + $0xe8] sm:$0xff]
        %106 = vst [vmem:[%s46 + $0xe8] sm:$0xff] %v105
        %v107 = vld [vmem:[%s45 + $0xf0] sm:$0xff]
        %108 = vst [vmem:[%s46 + $0xf0] sm:$0xff] %v107
        %v109 = vld [vmem:[%s45 + $0xf8] sm:$0xff]
        %110 = vst [vmem:[%s46 + $0xf8] sm:$0xff] %v109
        %v111 = vld [vmem:[%s45 + $0x100] sm:$0xff]
        %112 = vst [vmem:[%s46 + $0x100] sm:$0xff] %v111
        %v113 = vld [vmem:[%s45 + $0x108] sm:$0xff]
        %114 = vst [vmem:[%s46 + $0x108] sm:$0xff] %v113
        %v115 = vld [vmem:[%s45 + $0x110] sm:$0xff]
        %116 = vst [vmem:[%s46 + $0x110] sm:$0xff] %v115
        %v117 = vld [vmem:[%s45 + $0x118] sm:$0xff]
        %118 = vst [vmem:[%s46 + $0x118] sm:$0xff] %v117
        %v119 = vld [vmem:[%s45 + $0x120] sm:$0xff]
        %120 = vst [vmem:[%s46 + $0x120] sm:$0xff] %v119
        %v121 = vld [vmem:[%s45 + $0x128] sm:$0xff]
        %122 = vst [vmem:[%s46 + $0x128] sm:$0xff] %v121
        %v123 = vld [vmem:[%s45 + $0x130] sm:$0xff]
        %124 = vst [vmem:[%s46 + $0x130] sm:$0xff] %v123
        %v125 = vld [vmem:[%s45 + $0x138] sm:$0xff]
        %126 = vst [vmem:[%s46 + $0x138] sm:$0xff] %v125
        %v127 = vld [vmem:[%s45 + $0x140] sm:$0xff]
        %128 = vst [vmem:[%s46 + $0x140] sm:$0xff] %v127
        %v129 = vld [vmem:[%s45 + $0x148] sm:$0xff]
        %130 = vst [vmem:[%s46 + $0x148] sm:$0xff] %v129
        %v131 = vld [vmem:[%s45 + $0x150] sm:$0xff]
        %132 = vst [vmem:[%s46 + $0x150] sm:$0xff] %v131
        %v133 = vld [vmem:[%s45 + $0x158] sm:$0xff]
        %134 = vst [vmem:[%s46 + $0x158] sm:$0xff] %v133
        %v135 = vld [vmem:[%s45 + $0x160] sm:$0xff]
        %136 = vst [vmem:[%s46 + $0x160] sm:$0xff] %v135
        %v137 = vld [vmem:[%s45 + $0x168] sm:$0xff]
        %138 = vst [vmem:[%s46 + $0x168] sm:$0xff] %v137
        %v139 = vld [vmem:[%s45 + $0x170] sm:$0xff]
        %140 = vst [vmem:[%s46 + $0x170] sm:$0xff] %v139
        %v141 = vld [vmem:[%s45 + $0x178] sm:$0xff]
        %142 = vst [vmem:[%s46 + $0x178] sm:$0xff] %v141
        %v143 = vld [vmem:[%s45 + $0x180] sm:$0xff]
        %144 = vst [vmem:[%s46 + $0x180] sm:$0xff] %v143
        %v145 = vld [vmem:[%s45 + $0x188] sm:$0xff]
        %146 = vst [vmem:[%s46 + $0x188] sm:$0xff] %v145
        %v147 = vld [vmem:[%s45 + $0x190] sm:$0xff]
        %148 = vst [vmem:[%s46 + $0x190] sm:$0xff] %v147
        %v149 = vld [vmem:[%s45 + $0x198] sm:$0xff]
        %150 = vst [vmem:[%s46 + $0x198] sm:$0xff] %v149
        %v151 = vld [vmem:[%s45 + $0x1a0] sm:$0xff]
        %152 = vst [vmem:[%s46 + $0x1a0] sm:$0xff] %v151
        %v153 = vld [vmem:[%s45 + $0x1a8] sm:$0xff]
        %154 = vst [vmem:[%s46 + $0x1a8] sm:$0xff] %v153
        %v155 = vld [vmem:[%s45 + $0x1b0] sm:$0xff]
        %156 = vst [vmem:[%s46 + $0x1b0] sm:$0xff] %v155
        %v157 = vld [vmem:[%s45 + $0x1b8] sm:$0xff]
        %158 = vst [vmem:[%s46 + $0x1b8] sm:$0xff] %v157
        %v159 = vld [vmem:[%s45 + $0x1c0] sm:$0xff]
        %160 = vst [vmem:[%s46 + $0x1c0] sm:$0xff] %v159
        %v161 = vld [vmem:[%s45 + $0x1c8] sm:$0xff]
        %162 = vst [vmem:[%s46 + $0x1c8] sm:$0xff] %v161
        %v163 = vld [vmem:[%s45 + $0x1d0] sm:$0xff]
        %164 = vst [vmem:[%s46 + $0x1d0] sm:$0xff] %v163
        %v165 = vld [vmem:[%s45 + $0x1d8] sm:$0xff]
        %166 = vst [vmem:[%s46 + $0x1d8] sm:$0xff] %v165
        %v167 = vld [vmem:[%s45 + $0x1e0] sm:$0xff]
        %168 = vst [vmem:[%s46 + $0x1e0] sm:$0xff] %v167
        %v169 = vld [vmem:[%s45 + $0x1e8] sm:$0xff]
        %170 = vst [vmem:[%s46 + $0x1e8] sm:$0xff] %v169
        %v171 = vld [vmem:[%s45 + $0x1f0] sm:$0xff]
        %172 = vst [vmem:[%s46 + $0x1f0] sm:$0xff] %v171
        %v173 = vld [vmem:[%s45 + $0x1f8] sm:$0xff]
        %174 = vst [vmem:[%s46 + $0x1f8] sm:$0xff] %v173
        %v175 = vld [vmem:[%s45 + $0x200] sm:$0xff]
        %176 = vst [vmem:[%s46 + $0x200] sm:$0xff] %v175
        %v177 = vld [vmem:[%s45 + $0x208] sm:$0xff]
        %178 = vst [vmem:[%s46 + $0x208] sm:$0xff] %v177
        %v179 = vld [vmem:[%s45 + $0x210] sm:$0xff]
        %180 = vst [vmem:[%s46 + $0x210] sm:$0xff] %v179
        %v181 = vld [vmem:[%s45 + $0x218] sm:$0xff]
        %182 = vst [vmem:[%s46 + $0x218] sm:$0xff] %v181
        %v183 = vld [vmem:[%s45 + $0x220] sm:$0xff]
        %184 = vst [vmem:[%s46 + $0x220] sm:$0xff] %v183
        %v185 = vld [vmem:[%s45 + $0x228] sm:$0xff]
        %186 = vst [vmem:[%s46 + $0x228] sm:$0xff] %v185
        %v187 = vld [vmem:[%s45 + $0x230] sm:$0xff]
        %188 = vst [vmem:[%s46 + $0x230] sm:$0xff] %v187
        %v189 = vld [vmem:[%s45 + $0x238] sm:$0xff]
        %190 = vst [vmem:[%s46 + $0x238] sm:$0xff] %v189
        %v191 = vld [vmem:[%s45 + $0x240] sm:$0xff]
        %192 = vst [vmem:[%s46 + $0x240] sm:$0xff] %v191
        %v193 = vld [vmem:[%s45 + $0x248] sm:$0xff]
        %194 = vst [vmem:[%s46 + $0x248] sm:$0xff] %v193
        %v195 = vld [vmem:[%s45 + $0x250] sm:$0xff]
        %196 = vst [vmem:[%s46 + $0x250] sm:$0xff] %v195
        %v197 = vld [vmem:[%s45 + $0x258] sm:$0xff]
        %198 = vst [vmem:[%s46 + $0x258] sm:$0xff] %v197
        %v199 = vld [vmem:[%s45 + $0x260] sm:$0xff]
        %200 = vst [vmem:[%s46 + $0x260] sm:$0xff] %v199
        %v201 = vld [vmem:[%s45 + $0x268] sm:$0xff]
        %202 = vst [vmem:[%s46 + $0x268] sm:$0xff] %v201
        %v203 = vld [vmem:[%s45 + $0x270] sm:$0xff]
        %204 = vst [vmem:[%s46 + $0x270] sm:$0xff] %v203
        %v205 = vld [vmem:[%s45 + $0x278] sm:$0xff]
        %206 = vst [vmem:[%s46 + $0x278] sm:$0xff] %v205
        %v207 = vld [vmem:[%s45 + $0x280] sm:$0xff]
        %208 = vst [vmem:[%s46 + $0x280] sm:$0xff] %v207
        %v209 = vld [vmem:[%s45 + $0x288] sm:$0xff]
        %210 = vst [vmem:[%s46 + $0x288] sm:$0xff] %v209
        %v211 = vld [vmem:[%s45 + $0x290] sm:$0xff]
        %212 = vst [vmem:[%s46 + $0x290] sm:$0xff] %v211
        %v213 = vld [vmem:[%s45 + $0x298] sm:$0xff]
        %214 = vst [vmem:[%s46 + $0x298] sm:$0xff] %v213
        %v215 = vld [vmem:[%s45 + $0x2a0] sm:$0xff]
        %216 = vst [vmem:[%s46 + $0x2a0] sm:$0xff] %v215
        %v217 = vld [vmem:[%s45 + $0x2a8] sm:$0xff]
        %218 = vst [vmem:[%s46 + $0x2a8] sm:$0xff] %v217
        %v219 = vld [vmem:[%s45 + $0x2b0] sm:$0xff]
        %220 = vst [vmem:[%s46 + $0x2b0] sm:$0xff] %v219
        %v221 = vld [vmem:[%s45 + $0x2b8] sm:$0xff]
        %222 = vst [vmem:[%s46 + $0x2b8] sm:$0xff] %v221
        %v223 = vld [vmem:[%s45 + $0x2c0] sm:$0xff]
        %224 = vst [vmem:[%s46 + $0x2c0] sm:$0xff] %v223
        %v225 = vld [vmem:[%s45 + $0x2c8] sm:$0xff]
        %226 = vst [vmem:[%s46 + $0x2c8] sm:$0xff] %v225
        %v227 = vld [vmem:[%s45 + $0x2d0] sm:$0xff]
        %228 = vst [vmem:[%s46 + $0x2d0] sm:$0xff] %v227
        %v229 = vld [vmem:[%s45 + $0x2d8] sm:$0xff]
        %230 = vst [vmem:[%s46 + $0x2d8] sm:$0xff] %v229
        %v231 = vld [vmem:[%s45 + $0x2e0] sm:$0xff]
        %232 = vst [vmem:[%s46 + $0x2e0] sm:$0xff] %v231
        %v233 = vld [vmem:[%s45 + $0x2e8] sm:$0xff]
        %234 = vst [vmem:[%s46 + $0x2e8] sm:$0xff] %v233
        %v235 = vld [vmem:[%s45 + $0x2f0] sm:$0xff]
        %236 = vst [vmem:[%s46 + $0x2f0] sm:$0xff] %v235
        %v237 = vld [vmem:[%s45 + $0x2f8] sm:$0xff]
        %238 = vst [vmem:[%s46 + $0x2f8] sm:$0xff] %v237
        %v239 = vld [vmem:[%s45 + $0x300] sm:$0xff]
        %240 = vst [vmem:[%s46 + $0x300] sm:$0xff] %v239
        %v241 = vld [vmem:[%s45 + $0x308] sm:$0xff]
        %242 = vst [vmem:[%s46 + $0x308] sm:$0xff] %v241
        %v243 = vld [vmem:[%s45 + $0x310] sm:$0xff]
        %244 = vst [vmem:[%s46 + $0x310] sm:$0xff] %v243
        %v245 = vld [vmem:[%s45 + $0x318] sm:$0xff]
        %246 = vst [vmem:[%s46 + $0x318] sm:$0xff] %v245
        %v247 = vld [vmem:[%s45 + $0x320] sm:$0xff]
        %248 = vst [vmem:[%s46 + $0x320] sm:$0xff] %v247
        %v249 = vld [vmem:[%s45 + $0x328] sm:$0xff]
        %250 = vst [vmem:[%s46 + $0x328] sm:$0xff] %v249
        %v251 = vld [vmem:[%s45 + $0x330] sm:$0xff]
        %252 = vst [vmem:[%s46 + $0x330] sm:$0xff] %v251
        %v253 = vld [vmem:[%s45 + $0x338] sm:$0xff]
        %254 = vst [vmem:[%s46 + $0x338] sm:$0xff] %v253
        %v255 = vld [vmem:[%s45 + $0x340] sm:$0xff]
        %256 = vst [vmem:[%s46 + $0x340] sm:$0xff] %v255
        %v257 = vld [vmem:[%s45 + $0x348] sm:$0xff]
        %258 = vst [vmem:[%s46 + $0x348] sm:$0xff] %v257
        %v259 = vld [vmem:[%s45 + $0x350] sm:$0xff]
        %260 = vst [vmem:[%s46 + $0x350] sm:$0xff] %v259
        %v261 = vld [vmem:[%s45 + $0x358] sm:$0xff]
        %262 = vst [vmem:[%s46 + $0x358] sm:$0xff] %v261
        %v263 = vld [vmem:[%s45 + $0x360] sm:$0xff]
        %264 = vst [vmem:[%s46 + $0x360] sm:$0xff] %v263
        %v265 = vld [vmem:[%s45 + $0x368] sm:$0xff]
        %266 = vst [vmem:[%s46 + $0x368] sm:$0xff] %v265
        %v267 = vld [vmem:[%s45 + $0x370] sm:$0xff]
        %268 = vst [vmem:[%s46 + $0x370] sm:$0xff] %v267
        %v269 = vld [vmem:[%s45 + $0x378] sm:$0xff]
        %270 = vst [vmem:[%s46 + $0x378] sm:$0xff] %v269
        %v271 = vld [vmem:[%s45 + $0x380] sm:$0xff]
        %272 = vst [vmem:[%s46 + $0x380] sm:$0xff] %v271
        %v273 = vld [vmem:[%s45 + $0x388] sm:$0xff]
        %274 = vst [vmem:[%s46 + $0x388] sm:$0xff] %v273
        %v275 = vld [vmem:[%s45 + $0x390] sm:$0xff]
        %276 = vst [vmem:[%s46 + $0x390] sm:$0xff] %v275
        %v277 = vld [vmem:[%s45 + $0x398] sm:$0xff]
        %278 = vst [vmem:[%s46 + $0x398] sm:$0xff] %v277
        %v279 = vld [vmem:[%s45 + $0x3a0] sm:$0xff]
        %280 = vst [vmem:[%s46 + $0x3a0] sm:$0xff] %v279
        %v281 = vld [vmem:[%s45 + $0x3a8] sm:$0xff]
        %282 = vst [vmem:[%s46 + $0x3a8] sm:$0xff] %v281
        %v283 = vld [vmem:[%s45 + $0x3b0] sm:$0xff]
        %284 = vst [vmem:[%s46 + $0x3b0] sm:$0xff] %v283
        %v285 = vld [vmem:[%s45 + $0x3b8] sm:$0xff]
        %286 = vst [vmem:[%s46 + $0x3b8] sm:$0xff] %v285
        %v287 = vld [vmem:[%s45 + $0x3c0] sm:$0xff]
        %288 = vst [vmem:[%s46 + $0x3c0] sm:$0xff] %v287
        %v289 = vld [vmem:[%s45 + $0x3c8] sm:$0xff]
        %290 = vst [vmem:[%s46 + $0x3c8] sm:$0xff] %v289
        %v291 = vld [vmem:[%s45 + $0x3d0] sm:$0xff]
        %292 = vst [vmem:[%s46 + $0x3d0] sm:$0xff] %v291
        %v293 = vld [vmem:[%s45 + $0x3d8] sm:$0xff]
        %294 = vst [vmem:[%s46 + $0x3d8] sm:$0xff] %v293
        %v295 = vld [vmem:[%s45 + $0x3e0] sm:$0xff]
        %296 = vst [vmem:[%s46 + $0x3e0] sm:$0xff] %v295
        %v297 = vld [vmem:[%s45 + $0x3e8] sm:$0xff]
        %298 = vst [vmem:[%s46 + $0x3e8] sm:$0xff] %v297
        %v299 = vld [vmem:[%s45 + $0x3f0] sm:$0xff]
        %300 = vst [vmem:[%s46 + $0x3f0] sm:$0xff] %v299
        %v301 = vld [vmem:[%s45 + $0x3f8] sm:$0xff]
        %302 = vst [vmem:[%s46 + $0x3f8] sm:$0xff] %v301
        %v303 = vld [vmem:[%s45 + $0x400] sm:$0xff]
        %304 = vst [vmem:[%s46 + $0x400] sm:$0xff] %v303
        %v305 = vld [vmem:[%s45 + $0x408] sm:$0xff]
        %306 = vst [vmem:[%s46 + $0x408] sm:$0xff] %v305
        %v307 = vld [vmem:[%s45 + $0x410] sm:$0xff]
        %308 = vst [vmem:[%s46 + $0x410] sm:$0xff] %v307
        %v309 = vld [vmem:[%s45 + $0x418] sm:$0xff]
        %310 = vst [vmem:[%s46 + $0x418] sm:$0xff] %v309
        %v311 = vld [vmem:[%s45 + $0x420] sm:$0xff]
        %312 = vst [vmem:[%s46 + $0x420] sm:$0xff] %v311
        %v313 = vld [vmem:[%s45 + $0x428] sm:$0xff]
        %314 = vst [vmem:[%s46 + $0x428] sm:$0xff] %v313
        %v315 = vld [vmem:[%s45 + $0x430] sm:$0xff]
        %316 = vst [vmem:[%s46 + $0x430] sm:$0xff] %v315
        %v317 = vld [vmem:[%s45 + $0x438] sm:$0xff]
        %318 = vst [vmem:[%s46 + $0x438] sm:$0xff] %v317
        %v319 = vld [vmem:[%s45 + $0x440] sm:$0xff]
        %320 = vst [vmem:[%s46 + $0x440] sm:$0xff] %v319
        %v321 = vld [vmem:[%s45 + $0x448] sm:$0xff]
        %322 = vst [vmem:[%s46 + $0x448] sm:$0xff] %v321
        %v323 = vld [vmem:[%s45 + $0x450] sm:$0xff]
        %324 = vst [vmem:[%s46 + $0x450] sm:$0xff] %v323
        %v325 = vld [vmem:[%s45 + $0x458] sm:$0xff]
        %326 = vst [vmem:[%s46 + $0x458] sm:$0xff] %v325
        %v327 = vld [vmem:[%s45 + $0x460] sm:$0xff]
        %328 = vst [vmem:[%s46 + $0x460] sm:$0xff] %v327
        %v329 = vld [vmem:[%s45 + $0x468] sm:$0xff]
        %330 = vst [vmem:[%s46 + $0x468] sm:$0xff] %v329
        %v331 = vld [vmem:[%s45 + $0x470] sm:$0xff]
        %332 = vst [vmem:[%s46 + $0x470] sm:$0xff] %v331
        %v333 = vld [vmem:[%s45 + $0x478] sm:$0xff]
        %334 = vst [vmem:[%s46 + $0x478] sm:$0xff] %v333
        %v335 = vld [vmem:[%s45 + $0x480] sm:$0xff]
        %336 = vst [vmem:[%s46 + $0x480] sm:$0xff] %v335
        %v337 = vld [vmem:[%s45 + $0x488] sm:$0xff]
        %338 = vst [vmem:[%s46 + $0x488] sm:$0xff] %v337
        %v339 = vld [vmem:[%s45 + $0x490] sm:$0xff]
        %340 = vst [vmem:[%s46 + $0x490] sm:$0xff] %v339
        %v341 = vld [vmem:[%s45 + $0x498] sm:$0xff]
        %342 = vst [vmem:[%s46 + $0x498] sm:$0xff] %v341
        %v343 = vld [vmem:[%s45 + $0x4a0] sm:$0xff]
        %344 = vst [vmem:[%s46 + $0x4a0] sm:$0xff] %v343
        %v345 = vld [vmem:[%s45 + $0x4a8] sm:$0xff]
        %346 = vst [vmem:[%s46 + $0x4a8] sm:$0xff] %v345
        %v347 = vld [vmem:[%s45 + $0x4b0] sm:$0xff]
        %348 = vst [vmem:[%s46 + $0x4b0] sm:$0xff] %v347
        %v349 = vld [vmem:[%s45 + $0x4b8] sm:$0xff]
        %350 = vst [vmem:[%s46 + $0x4b8] sm:$0xff] %v349
        %v351 = vld [vmem:[%s45 + $0x4c0] sm:$0xff]
        %352 = vst [vmem:[%s46 + $0x4c0] sm:$0xff] %v351
        %v353 = vld [vmem:[%s45 + $0x4c8] sm:$0xff]
        %354 = vst [vmem:[%s46 + $0x4c8] sm:$0xff] %v353
        %v355 = vld [vmem:[%s45 + $0x4d0] sm:$0xff]
        %356 = vst [vmem:[%s46 + $0x4d0] sm:$0xff] %v355
        %v357 = vld [vmem:[%s45 + $0x4d8] sm:$0xff]
        %358 = vst [vmem:[%s46 + $0x4d8] sm:$0xff] %v357
        %v359 = vld [vmem:[%s45 + $0x4e0] sm:$0xff]
        %360 = vst [vmem:[%s46 + $0x4e0] sm:$0xff] %v359
        %v361 = vld [vmem:[%s45 + $0x4e8] sm:$0xff]
        %362 = vst [vmem:[%s46 + $0x4e8] sm:$0xff] %v361
        %v363 = vld [vmem:[%s45 + $0x4f0] sm:$0xff]
        %364 = vst [vmem:[%s46 + $0x4f0] sm:$0xff] %v363
        %v365 = vld [vmem:[%s45 + $0x4f8] sm:$0xff]
        %366 = vst [vmem:[%s46 + $0x4f8] sm:$0xff] %v365
        %v367 = vld [vmem:[%s45 + $0x500] sm:$0xff]
        %368 = vst [vmem:[%s46 + $0x500] sm:$0xff] %v367
        %v369 = vld [vmem:[%s45 + $0x508] sm:$0xff]
        %370 = vst [vmem:[%s46 + $0x508] sm:$0xff] %v369
        %v371 = vld [vmem:[%s45 + $0x510] sm:$0xff]
        %372 = vst [vmem:[%s46 + $0x510] sm:$0xff] %v371
        %v373 = vld [vmem:[%s45 + $0x518] sm:$0xff]
        %374 = vst [vmem:[%s46 + $0x518] sm:$0xff] %v373
        %v375 = vld [vmem:[%s45 + $0x520] sm:$0xff]
        %376 = vst [vmem:[%s46 + $0x520] sm:$0xff] %v375
        %v377 = vld [vmem:[%s45 + $0x528] sm:$0xff]
        %378 = vst [vmem:[%s46 + $0x528] sm:$0xff] %v377
        %v379 = vld [vmem:[%s45 + $0x530] sm:$0xff]
        %380 = vst [vmem:[%s46 + $0x530] sm:$0xff] %v379
        %v381 = vld [vmem:[%s45 + $0x538] sm:$0xff]
        %382 = vst [vmem:[%s46 + $0x538] sm:$0xff] %v381
        %v383 = vld [vmem:[%s45 + $0x540] sm:$0xff]
        %384 = vst [vmem:[%s46 + $0x540] sm:$0xff] %v383
        %v385 = vld [vmem:[%s45 + $0x548] sm:$0xff]
        %386 = vst [vmem:[%s46 + $0x548] sm:$0xff] %v385
        %v387 = vld [vmem:[%s45 + $0x550] sm:$0xff]
        %388 = vst [vmem:[%s46 + $0x550] sm:$0xff] %v387
        %v389 = vld [vmem:[%s45 + $0x558] sm:$0xff]
        %390 = vst [vmem:[%s46 + $0x558] sm:$0xff] %v389
        %v391 = vld [vmem:[%s45 + $0x560] sm:$0xff]
        %392 = vst [vmem:[%s46 + $0x560] sm:$0xff] %v391
        %v393 = vld [vmem:[%s45 + $0x568] sm:$0xff]
        %394 = vst [vmem:[%s46 + $0x568] sm:$0xff] %v393
        %v395 = vld [vmem:[%s45 + $0x570] sm:$0xff]
        %396 = vst [vmem:[%s46 + $0x570] sm:$0xff] %v395
      $region46: #{tpu_custom_call.1} parent=40 // loop_footer
        %s44 = sadd.s32 1, %s40
      $region47: #{tpu_custom_call.1} parent=40 // loop_footer_branch
        %39 = sbr.rel target = $region43
      $region48: #{tpu_custom_call.1} parent=40 // loop_exit
        _
    $region41: #{tpu_custom_call.1} parent=1 // pred_fallthru
      _
    // Predicated region
    $region49: #{tpu_custom_call.1} parent=1 // pred_check
      _
    $region50: #{tpu_custom_call.1} parent=1 // pred_check_branch
      %398 = sbr.rel target = $region52
    $region51: #{tpu_custom_call.1} parent=1 // pred_region
      _
    $region52: #{tpu_custom_call.1} parent=1 // pred_fallthru
      _
    // Predicated region
    $region53: #{tpu_custom_call.1} parent=1 // pred_check
      _
    $region54: #{tpu_custom_call.1} parent=1 // pred_check_branch
      %401 = sbr.rel (0) target = $region56
    $region55: #{tpu_custom_call.1} parent=1 // pred_region
      %402 = vsyncadd [#allocation3], 22400
    $region56: #{tpu_custom_call.1} parent=1 // pred_fallthru
      _
    %v403 = vld [vmem:[%s0] sm:$0xff]
    %v404 = vld [vmem:[%s0 + $0x8] sm:$0xff]
    %v405 = vld [vmem:[%s0 + $0x10] sm:$0xff]
    %v406 = vld [vmem:[%s0 + $0x18] sm:$0xff]
    %v407 = vld [vmem:[%s0 + $0x20] sm:$0xff]
    %v408 = vld [vmem:[%s0 + $0x28] sm:$0xff]
    %v409 = vld [vmem:[%s0 + $0x30] sm:$0xff]
    %v410 = vpack.c.bf16 %v403, %v403
    %v411 = vpack.c.bf16 %v404, %v404
    %v412 = vpack.c.bf16 %v405, %v405
    %v413 = vpack.c.bf16 %v406, %v406
    %v414 = vpack.c.bf16 %v407, %v407
    %v415 = vpack.c.bf16 %v408, %v408
    %v416 = vpack.c.bf16 %v409, %v409
    %v417 = vld [vmem:[%s2] sm:$0xff]
    %v418 = vld [vmem:[%s2 + $0x8] sm:$0xff]
    %v419 = vld [vmem:[%s2 + $0x10] sm:$0xff]
    %v420 = vld [vmem:[%s2 + $0x18] sm:$0xff]
    %v421 = vld [vmem:[%s2 + $0x20] sm:$0xff]
    %v422 = vld [vmem:[%s2 + $0x28] sm:$0xff]
    %v423 = vld [vmem:[%s2 + $0x30] sm:$0xff]
    %v424 = vld [vmem:[%s2 + $0x38] sm:$0xff]
    %v425 = vld [vmem:[%s2 + $0x40] sm:$0xff]
    %v426 = vld [vmem:[%s2 + $0x48] sm:$0xff]
    %v427 = vld [vmem:[%s2 + $0x50] sm:$0xff]
    %v428 = vld [vmem:[%s2 + $0x58] sm:$0xff]
    %v429 = vld [vmem:[%s2 + $0x60] sm:$0xff]
    %v430 = vld [vmem:[%s2 + $0x68] sm:$0xff]
    %v431 = vld [vmem:[%s2 + $0x70] sm:$0xff]
    %v432 = vld [vmem:[%s2 + $0x78] sm:$0xff]
    %v433 = vld [vmem:[%s2 + $0x80] sm:$0xff]
    %v434 = vld [vmem:[%s2 + $0x88] sm:$0xff]
    %v435 = vld [vmem:[%s2 + $0x90] sm:$0xff]
    %v436 = vld [vmem:[%s2 + $0x98] sm:$0xff]
    %v437 = vld [vmem:[%s2 + $0xa0] sm:$0xff]
    %v438 = vld [vmem:[%s2 + $0xa8] sm:$0xff]
    %v439 = vld [vmem:[%s2 + $0xb0] sm:$0xff]
    %v440 = vld [vmem:[%s2 + $0xb8] sm:$0xff]
    %v441 = vld [vmem:[%s2 + $0xc0] sm:$0xff]
    %v442 = vld [vmem:[%s2 + $0xc8] sm:$0xff]
    %v443 = vld [vmem:[%s2 + $0xd0] sm:$0xff]
    %v444 = vld [vmem:[%s2 + $0xd8] sm:$0xff]
    %v445 = vld [vmem:[%s2 + $0xe0] sm:$0xff]
    %v446 = vld [vmem:[%s2 + $0xe8] sm:$0xff]
    %v447 = vld [vmem:[%s2 + $0xf0] sm:$0xff]
    %v448 = vld [vmem:[%s2 + $0xf8] sm:$0xff]
    %v449 = vld [vmem:[%s2 + $0x100] sm:$0xff]
    %v450 = vld [vmem:[%s2 + $0x108] sm:$0xff]
    %v451 = vld [vmem:[%s2 + $0x110] sm:$0xff]
    %v452 = vld [vmem:[%s2 + $0x118] sm:$0xff]
    %v453 = vld [vmem:[%s2 + $0x120] sm:$0xff]
    %v454 = vld [vmem:[%s2 + $0x128] sm:$0xff]
    %v455 = vld [vmem:[%s2 + $0x130] sm:$0xff]
    %v456 = vld [vmem:[%s2 + $0x138] sm:$0xff]
    %v457 = vld [vmem:[%s2 + $0x140] sm:$0xff]
    %v458 = vld [vmem:[%s2 + $0x148] sm:$0xff]
    %v459 = vld [vmem:[%s2 + $0x150] sm:$0xff]
    %v460 = vld [vmem:[%s2 + $0x158] sm:$0xff]
    %v461 = vld [vmem:[%s2 + $0x160] sm:$0xff]
    %v462 = vld [vmem:[%s2 + $0x168] sm:$0xff]
    %v463 = vld [vmem:[%s2 + $0x170] sm:$0xff]
    %v464 = vld [vmem:[%s2 + $0x178] sm:$0xff]
    %v465 = vld [vmem:[%s2 + $0x180] sm:$0xff]
    %v466 = vld [vmem:[%s2 + $0x188] sm:$0xff]
    %v467 = vld [vmem:[%s2 + $0x190] sm:$0xff]
    %v468 = vld [vmem:[%s2 + $0x198] sm:$0xff]
    %v469 = vld [vmem:[%s2 + $0x1a0] sm:$0xff]
    %v470 = vld [vmem:[%s2 + $0x1a8] sm:$0xff]
    %v471 = vld [vmem:[%s2 + $0x1b0] sm:$0xff]
    %v472 = vld [vmem:[%s2 + $0x1b8] sm:$0xff]
    %v473 = vld [vmem:[%s2 + $0x1c0] sm:$0xff]
    %v474 = vld [vmem:[%s2 + $0x1c8] sm:$0xff]
    %v475 = vld [vmem:[%s2 + $0x1d0] sm:$0xff]
    %v476 = vld [vmem:[%s2 + $0x1d8] sm:$0xff]
    %v477 = vld [vmem:[%s2 + $0x1e0] sm:$0xff]
    %v478 = vld [vmem:[%s2 + $0x1e8] sm:$0xff]
    %v479 = vld [vmem:[%s2 + $0x1f0] sm:$0xff]
    %v480 = vld [vmem:[%s2 + $0x1f8] sm:$0xff]
    %v481 = vld [vmem:[%s2 + $0x200] sm:$0xff]
    %v482 = vld [vmem:[%s2 + $0x208] sm:$0xff]
    %v483 = vld [vmem:[%s2 + $0x210] sm:$0xff]
    %v484 = vld [vmem:[%s2 + $0x218] sm:$0xff]
    %v485 = vld [vmem:[%s2 + $0x220] sm:$0xff]
    %v486 = vld [vmem:[%s2 + $0x228] sm:$0xff]
    %v487 = vld [vmem:[%s2 + $0x230] sm:$0xff]
    %v488 = vld [vmem:[%s2 + $0x238] sm:$0xff]
    %v489 = vld [vmem:[%s2 + $0x240] sm:$0xff]
    %v490 = vld [vmem:[%s2 + $0x248] sm:$0xff]
    %v491 = vld [vmem:[%s2 + $0x250] sm:$0xff]
    %v492 = vld [vmem:[%s2 + $0x258] sm:$0xff]
    %v493 = vld [vmem:[%s2 + $0x260] sm:$0xff]
    %v494 = vld [vmem:[%s2 + $0x268] sm:$0xff]
    %v495 = vld [vmem:[%s2 + $0x270] sm:$0xff]
    %v496 = vld [vmem:[%s2 + $0x278] sm:$0xff]
    %v497 = vld [vmem:[%s2 + $0x280] sm:$0xff]
    %v498 = vld [vmem:[%s2 + $0x288] sm:$0xff]
    %v499 = vld [vmem:[%s2 + $0x290] sm:$0xff]
    %v500 = vld [vmem:[%s2 + $0x298] sm:$0xff]
    %v501 = vld [vmem:[%s2 + $0x2a0] sm:$0xff]
    %v502 = vld [vmem:[%s2 + $0x2a8] sm:$0xff]
    %v503 = vld [vmem:[%s2 + $0x2b0] sm:$0xff]
    %v504 = vld [vmem:[%s2 + $0x2b8] sm:$0xff]
    %v505 = vld [vmem:[%s2 + $0x2c0] sm:$0xff]
    %v506 = vld [vmem:[%s2 + $0x2c8] sm:$0xff]
    %v507 = vld [vmem:[%s2 + $0x2d0] sm:$0xff]
    %v508 = vld [vmem:[%s2 + $0x2d8] sm:$0xff]
    %v509 = vld [vmem:[%s2 + $0x2e0] sm:$0xff]
    %v510 = vld [vmem:[%s2 + $0x2e8] sm:$0xff]
    %v511 = vld [vmem:[%s2 + $0x2f0] sm:$0xff]
    %v512 = vld [vmem:[%s2 + $0x2f8] sm:$0xff]
    %v513 = vld [vmem:[%s2 + $0x300] sm:$0xff]
    %v514 = vld [vmem:[%s2 + $0x308] sm:$0xff]
    %v515 = vld [vmem:[%s2 + $0x310] sm:$0xff]
    %v516 = vld [vmem:[%s2 + $0x318] sm:$0xff]
    %v517 = vld [vmem:[%s2 + $0x320] sm:$0xff]
    %v518 = vld [vmem:[%s2 + $0x328] sm:$0xff]
    %v519 = vld [vmem:[%s2 + $0x330] sm:$0xff]
    %v520 = vld [vmem:[%s2 + $0x338] sm:$0xff]
    %v521 = vld [vmem:[%s2 + $0x340] sm:$0xff]
    %v522 = vld [vmem:[%s2 + $0x348] sm:$0xff]
    %v523 = vld [vmem:[%s2 + $0x350] sm:$0xff]
    %v524 = vld [vmem:[%s2 + $0x358] sm:$0xff]
    %v525 = vld [vmem:[%s2 + $0x360] sm:$0xff]
    %v526 = vld [vmem:[%s2 + $0x368] sm:$0xff]
    %v527 = vld [vmem:[%s2 + $0x370] sm:$0xff]
    %v528 = vld [vmem:[%s2 + $0x378] sm:$0xff]
    %v529 = vld [vmem:[%s2 + $0x380] sm:$0xff]
    %v530 = vld [vmem:[%s2 + $0x388] sm:$0xff]
    %v531 = vld [vmem:[%s2 + $0x390] sm:$0xff]
    %v532 = vld [vmem:[%s2 + $0x398] sm:$0xff]
    %v533 = vld [vmem:[%s2 + $0x3a0] sm:$0xff]
    %v534 = vld [vmem:[%s2 + $0x3a8] sm:$0xff]
    %v535 = vld [vmem:[%s2 + $0x3b0] sm:$0xff]
    %v536 = vld [vmem:[%s2 + $0x3b8] sm:$0xff]
    %v537 = vld [vmem:[%s2 + $0x3c0] sm:$0xff]
    %v538 = vld [vmem:[%s2 + $0x3c8] sm:$0xff]
    %v539 = vld [vmem:[%s2 + $0x3d0] sm:$0xff]
    %v540 = vld [vmem:[%s2 + $0x3d8] sm:$0xff]
    %v541 = vld [vmem:[%s2 + $0x3e0] sm:$0xff]
    %v542 = vld [vmem:[%s2 + $0x3e8] sm:$0xff]
    %v543 = vld [vmem:[%s2 + $0x3f0] sm:$0xff]
    %v544 = vld [vmem:[%s2 + $0x3f8] sm:$0xff]
    %v545 = vld [vmem:[%s2 + $0x400] sm:$0xff]
    %v546 = vld [vmem:[%s2 + $0x408] sm:$0xff]
    %v547 = vld [vmem:[%s2 + $0x410] sm:$0xff]
    %v548 = vld [vmem:[%s2 + $0x418] sm:$0xff]
    %v549 = vld [vmem:[%s2 + $0x420] sm:$0xff]
    %v550 = vld [vmem:[%s2 + $0x428] sm:$0xff]
    %v551 = vld [vmem:[%s2 + $0x430] sm:$0xff]
    %v552 = vld [vmem:[%s2 + $0x438] sm:$0xff]
    %v553 = vld [vmem:[%s2 + $0x440] sm:$0xff]
    %v554 = vld [vmem:[%s2 + $0x448] sm:$0xff]
    %v555 = vld [vmem:[%s2 + $0x450] sm:$0xff]
    %v556 = vld [vmem:[%s2 + $0x458] sm:$0xff]
    %v557 = vld [vmem:[%s2 + $0x460] sm:$0xff]
    %v558 = vld [vmem:[%s2 + $0x468] sm:$0xff]
    %v559 = vld [vmem:[%s2 + $0x470] sm:$0xff]
    %v560 = vld [vmem:[%s2 + $0x478] sm:$0xff]
    %v561 = vld [vmem:[%s2 + $0x480] sm:$0xff]
    %v562 = vld [vmem:[%s2 + $0x488] sm:$0xff]
    %v563 = vld [vmem:[%s2 + $0x490] sm:$0xff]
    %v564 = vld [vmem:[%s2 + $0x498] sm:$0xff]
    %v565 = vld [vmem:[%s2 + $0x4a0] sm:$0xff]
    %v566 = vld [vmem:[%s2 + $0x4a8] sm:$0xff]
    %v567 = vld [vmem:[%s2 + $0x4b0] sm:$0xff]
    %v568 = vld [vmem:[%s2 + $0x4b8] sm:$0xff]
    %v569 = vld [vmem:[%s2 + $0x4c0] sm:$0xff]
    %v570 = vld [vmem:[%s2 + $0x4c8] sm:$0xff]
    %v571 = vld [vmem:[%s2 + $0x4d0] sm:$0xff]
    %v572 = vld [vmem:[%s2 + $0x4d8] sm:$0xff]
    %v573 = vld [vmem:[%s2 + $0x4e0] sm:$0xff]
    %v574 = vld [vmem:[%s2 + $0x4e8] sm:$0xff]
    %v575 = vld [vmem:[%s2 + $0x4f0] sm:$0xff]
    %v576 = vld [vmem:[%s2 + $0x4f8] sm:$0xff]
    %v577 = vld [vmem:[%s2 + $0x500] sm:$0xff]
    %v578 = vld [vmem:[%s2 + $0x508] sm:$0xff]
    %v579 = vld [vmem:[%s2 + $0x510] sm:$0xff]
    %v580 = vld [vmem:[%s2 + $0x518] sm:$0xff]
    %v581 = vld [vmem:[%s2 + $0x520] sm:$0xff]
    %v582 = vld [vmem:[%s2 + $0x528] sm:$0xff]
    %v583 = vld [vmem:[%s2 + $0x530] sm:$0xff]
    %v584 = vld [vmem:[%s2 + $0x538] sm:$0xff]
    %v585 = vld [vmem:[%s2 + $0x540] sm:$0xff]
    %v586 = vld [vmem:[%s2 + $0x548] sm:$0xff]
    %v587 = vld [vmem:[%s2 + $0x550] sm:$0xff]
    %v588 = vld [vmem:[%s2 + $0x558] sm:$0xff]
    %v589 = vld [vmem:[%s2 + $0x560] sm:$0xff]
    %v590 = vld [vmem:[%s2 + $0x568] sm:$0xff]
    %v591 = vld [vmem:[%s2 + $0x570] sm:$0xff]
    %v592 = vld [vmem:[%s2 + $0x578] sm:$0xff]
    %v593 = vld [vmem:[%s2 + $0x580] sm:$0xff]
    %v594 = vld [vmem:[%s2 + $0x588] sm:$0xff]
    %v595 = vld [vmem:[%s2 + $0x590] sm:$0xff]
    %v596 = vld [vmem:[%s2 + $0x598] sm:$0xff]
    %v597 = vld [vmem:[%s2 + $0x5a0] sm:$0xff]
    %v598 = vld [vmem:[%s2 + $0x5a8] sm:$0xff]
    %v599 = vld [vmem:[%s2 + $0x5b0] sm:$0xff]
    %v600 = vld [vmem:[%s2 + $0x5b8] sm:$0xff]
    %v601 = vld [vmem:[%s2 + $0x5c0] sm:$0xff]
    %v602 = vld [vmem:[%s2 + $0x5c8] sm:$0xff]
    %v603 = vld [vmem:[%s2 + $0x5d0] sm:$0xff]
    %v604 = vld [vmem:[%s2 + $0x5d8] sm:$0xff]
    %v605 = vld [vmem:[%s2 + $0x5e0] sm:$0xff]
    %v606 = vld [vmem:[%s2 + $0x5e8] sm:$0xff]
    %v607 = vld [vmem:[%s2 + $0x5f0] sm:$0xff]
    %v608 = vld [vmem:[%s2 + $0x5f8] sm:$0xff]
    %v609 = vld [vmem:[%s2 + $0x600] sm:$0xff]
    %v610 = vld [vmem:[%s2 + $0x608] sm:$0xff]
    %v611 = vld [vmem:[%s2 + $0x610] sm:$0xff]
    %v612 = vld [vmem:[%s2 + $0x618] sm:$0xff]
    %v613 = vld [vmem:[%s3] sm:$0xf]
    %v615 = vperm.slane %v613, 0
    %v616 = vperm.slane %v613, 1
    %v617 = vperm.slane %v613, 2
    %v618 = vperm.slane %v613, 3
    %v819 = vunpack.c.l.b16 %v417
    %v820 = vunpack.c.h.b16 %v417
    %v821 = vunpack.c.l.b16 %v418
    %v822 = vunpack.c.h.b16 %v418
    %v823 = vunpack.c.l.b16 %v419
    %v824 = vunpack.c.h.b16 %v419
    %v825 = vunpack.c.l.b16 %v420
    %v826 = vunpack.c.h.b16 %v420
    %v827 = vunpack.c.l.b16 %v421
    %v828 = vunpack.c.h.b16 %v421
    %v829 = vunpack.c.l.b16 %v422
    %v830 = vunpack.c.h.b16 %v422
    %v831 = vunpack.c.l.b16 %v423
    %v832 = vunpack.c.h.b16 %v423
    %v833 = vunpack.c.l.b16 %v424
    %v834 = vunpack.c.h.b16 %v424
    %v835 = vunpack.c.l.b16 %v425
    %v836 = vunpack.c.h.b16 %v425
    %v837 = vunpack.c.l.b16 %v426
    %v838 = vunpack.c.h.b16 %v426
    %v839 = vunpack.c.l.b16 %v427
    %v840 = vunpack.c.h.b16 %v427
    %v841 = vunpack.c.l.b16 %v428
    %v842 = vunpack.c.h.b16 %v428
    %v843 = vunpack.c.l.b16 %v429
    %v844 = vunpack.c.h.b16 %v429
    %v845 = vunpack.c.l.b16 %v430
    %v846 = vunpack.c.h.b16 %v430
    %v847 = vunpack.c.l.b16 %v431
    %v848 = vunpack.c.h.b16 %v431
    %v849 = vunpack.c.l.b16 %v432
    %v850 = vunpack.c.h.b16 %v432
    %v851 = vunpack.c.l.b16 %v433
    %v852 = vunpack.c.h.b16 %v433
    %v853 = vunpack.c.l.b16 %v434
    %v854 = vunpack.c.h.b16 %v434
    %v855 = vunpack.c.l.b16 %v435
    %v856 = vunpack.c.h.b16 %v435
    %v857 = vunpack.c.l.b16 %v436
    %v858 = vunpack.c.h.b16 %v436
    %v859 = vunpack.c.l.b16 %v437
    %v860 = vunpack.c.h.b16 %v437
    %v861 = vunpack.c.l.b16 %v438
    %v862 = vunpack.c.h.b16 %v438
    %v863 = vunpack.c.l.b16 %v439
    %v864 = vunpack.c.h.b16 %v439
    %v865 = vunpack.c.l.b16 %v440
    %v866 = vunpack.c.h.b16 %v440
    %v867 = vunpack.c.l.b16 %v441
    %v868 = vunpack.c.h.b16 %v441
    %v869 = vunpack.c.l.b16 %v442
    %v870 = vunpack.c.h.b16 %v442
    %v871 = vunpack.c.l.b16 %v443
    %v872 = vunpack.c.h.b16 %v443
    %v873 = vunpack.c.l.b16 %v444
    %v874 = vunpack.c.h.b16 %v444
    %v875 = vunpack.c.l.b16 %v445
    %v876 = vunpack.c.h.b16 %v445
    %v877 = vunpack.c.l.b16 %v446
    %v878 = vunpack.c.h.b16 %v446
    %v879 = vunpack.c.l.b16 %v447
    %v880 = vunpack.c.h.b16 %v447
    %v881 = vunpack.c.l.b16 %v448
    %v882 = vunpack.c.h.b16 %v448
    %v883 = vunpack.c.l.b16 %v449
    %v884 = vunpack.c.h.b16 %v449
    %v885 = vunpack.c.l.b16 %v450
    %v886 = vunpack.c.h.b16 %v450
    %v887 = vunpack.c.l.b16 %v451
    %v888 = vunpack.c.h.b16 %v451
    %v889 = vunpack.c.l.b16 %v452
    %v890 = vunpack.c.h.b16 %v452
    %v891 = vunpack.c.l.b16 %v453
    %v892 = vunpack.c.h.b16 %v453
    %v893 = vunpack.c.l.b16 %v454
    %v894 = vunpack.c.h.b16 %v454
    %v895 = vunpack.c.l.b16 %v455
    %v896 = vunpack.c.h.b16 %v455
    %v897 = vunpack.c.l.b16 %v456
    %v898 = vunpack.c.h.b16 %v456
    %v899 = vunpack.c.l.b16 %v457
    %v900 = vunpack.c.h.b16 %v457
    %v901 = vunpack.c.l.b16 %v458
    %v902 = vunpack.c.h.b16 %v458
    %v903 = vunpack.c.l.b16 %v459
    %v904 = vunpack.c.h.b16 %v459
    %v905 = vunpack.c.l.b16 %v460
    %v906 = vunpack.c.h.b16 %v460
    %v907 = vunpack.c.l.b16 %v461
    %v908 = vunpack.c.h.b16 %v461
    %v909 = vunpack.c.l.b16 %v462
    %v910 = vunpack.c.h.b16 %v462
    %v911 = vunpack.c.l.b16 %v463
    %v912 = vunpack.c.h.b16 %v463
    %v913 = vunpack.c.l.b16 %v464
    %v914 = vunpack.c.h.b16 %v464
    %v915 = vunpack.c.l.b16 %v465
    %v916 = vunpack.c.h.b16 %v465
    %v917 = vunpack.c.l.b16 %v466
    %v918 = vunpack.c.h.b16 %v466
    %v919 = vunpack.c.l.b16 %v467
    %v920 = vunpack.c.h.b16 %v467
    %v921 = vunpack.c.l.b16 %v468
    %v922 = vunpack.c.h.b16 %v468
    %v923 = vunpack.c.l.b16 %v469
    %v924 = vunpack.c.h.b16 %v469
    %v925 = vunpack.c.l.b16 %v470
    %v926 = vunpack.c.h.b16 %v470
    %v927 = vunpack.c.l.b16 %v471
    %v928 = vunpack.c.h.b16 %v471
    %v929 = vunpack.c.l.b16 %v472
    %v930 = vunpack.c.h.b16 %v472
    %v931 = vunpack.c.l.b16 %v473
    %v932 = vunpack.c.h.b16 %v473
    %v933 = vunpack.c.l.b16 %v474
    %v934 = vunpack.c.h.b16 %v474
    %v935 = vunpack.c.l.b16 %v475
    %v936 = vunpack.c.h.b16 %v475
    %v937 = vunpack.c.l.b16 %v476
    %v938 = vunpack.c.h.b16 %v476
    %v939 = vunpack.c.l.b16 %v477
    %v940 = vunpack.c.h.b16 %v477
    %v941 = vunpack.c.l.b16 %v478
    %v942 = vunpack.c.h.b16 %v478
    %v943 = vunpack.c.l.b16 %v479
    %v944 = vunpack.c.h.b16 %v479
    %v945 = vunpack.c.l.b16 %v480
    %v946 = vunpack.c.h.b16 %v480
    %v947 = vunpack.c.l.b16 %v481
    %v948 = vunpack.c.h.b16 %v481
    %v949 = vunpack.c.l.b16 %v482
    %v950 = vunpack.c.h.b16 %v482
    %v951 = vunpack.c.l.b16 %v483
    %v952 = vunpack.c.h.b16 %v483
    %v953 = vunpack.c.l.b16 %v484
    %v954 = vunpack.c.h.b16 %v484
    %v955 = vunpack.c.l.b16 %v485
    %v956 = vunpack.c.h.b16 %v485
    %v957 = vunpack.c.l.b16 %v486
    %v958 = vunpack.c.h.b16 %v486
    %v959 = vunpack.c.l.b16 %v487
    %v960 = vunpack.c.h.b16 %v487
    %v961 = vunpack.c.l.b16 %v488
    %v962 = vunpack.c.h.b16 %v488
    %v963 = vunpack.c.l.b16 %v489
    %v964 = vunpack.c.h.b16 %v489
    %v965 = vunpack.c.l.b16 %v490
    %v966 = vunpack.c.h.b16 %v490
    %v967 = vunpack.c.l.b16 %v491
    %v968 = vunpack.c.h.b16 %v491
    %v969 = vunpack.c.l.b16 %v492
    %v970 = vunpack.c.h.b16 %v492
    %v971 = vunpack.c.l.b16 %v493
    %v972 = vunpack.c.h.b16 %v493
    %v973 = vunpack.c.l.b16 %v494
    %v974 = vunpack.c.h.b16 %v494
    %v975 = vunpack.c.l.b16 %v495
    %v976 = vunpack.c.h.b16 %v495
    %v977 = vunpack.c.l.b16 %v496
    %v978 = vunpack.c.h.b16 %v496
    %v979 = vunpack.c.l.b16 %v497
    %v980 = vunpack.c.h.b16 %v497
    %v981 = vunpack.c.l.b16 %v498
    %v982 = vunpack.c.h.b16 %v498
    %v983 = vunpack.c.l.b16 %v499
    %v984 = vunpack.c.h.b16 %v499
    %v985 = vunpack.c.l.b16 %v500
    %v986 = vunpack.c.h.b16 %v500
    %v987 = vunpack.c.l.b16 %v501
    %v988 = vunpack.c.h.b16 %v501
    %v989 = vunpack.c.l.b16 %v502
    %v990 = vunpack.c.h.b16 %v502
    %v991 = vunpack.c.l.b16 %v503
    %v992 = vunpack.c.h.b16 %v503
    %v993 = vunpack.c.l.b16 %v504
    %v994 = vunpack.c.h.b16 %v504
    %v995 = vunpack.c.l.b16 %v505
    %v996 = vunpack.c.h.b16 %v505
    %v997 = vunpack.c.l.b16 %v506
    %v998 = vunpack.c.h.b16 %v506
    %v999 = vunpack.c.l.b16 %v507
    %v1000 = vunpack.c.h.b16 %v507
    %v1001 = vunpack.c.l.b16 %v508
    %v1002 = vunpack.c.h.b16 %v508
    %v1003 = vunpack.c.l.b16 %v509
    %v1004 = vunpack.c.h.b16 %v509
    %v1005 = vunpack.c.l.b16 %v510
    %v1006 = vunpack.c.h.b16 %v510
    %v1007 = vunpack.c.l.b16 %v511
    %v1008 = vunpack.c.h.b16 %v511
    %v1009 = vunpack.c.l.b16 %v512
    %v1010 = vunpack.c.h.b16 %v512
    %v1011 = vunpack.c.l.b16 %v513
    %v1012 = vunpack.c.h.b16 %v513
    %v1013 = vunpack.c.l.b16 %v514
    %v1014 = vunpack.c.h.b16 %v514
    %v1015 = vunpack.c.l.b16 %v515
    %v1016 = vunpack.c.h.b16 %v515
    %v1017 = vunpack.c.l.b16 %v516
    %v1018 = vunpack.c.h.b16 %v516
    %v1019 = vunpack.c.l.b16 %v517
    %v1020 = vunpack.c.h.b16 %v517
    %v1021 = vunpack.c.l.b16 %v518
    %v1022 = vunpack.c.h.b16 %v518
    %v1023 = vunpack.c.l.b16 %v519
    %v1024 = vunpack.c.h.b16 %v519
    %v1025 = vunpack.c.l.b16 %v520
    %v1026 = vunpack.c.h.b16 %v520
    %v1027 = vunpack.c.l.b16 %v521
    %v1028 = vunpack.c.h.b16 %v521
    %v1029 = vunpack.c.l.b16 %v522
    %v1030 = vunpack.c.h.b16 %v522
    %v1031 = vunpack.c.l.b16 %v523
    %v1032 = vunpack.c.h.b16 %v523
    %v1033 = vunpack.c.l.b16 %v524
    %v1034 = vunpack.c.h.b16 %v524
    %v1035 = vunpack.c.l.b16 %v525
    %v1036 = vunpack.c.h.b16 %v525
    %v1037 = vunpack.c.l.b16 %v526
    %v1038 = vunpack.c.h.b16 %v526
    %v1039 = vunpack.c.l.b16 %v527
    %v1040 = vunpack.c.h.b16 %v527
    %v1041 = vunpack.c.l.b16 %v528
    %v1042 = vunpack.c.h.b16 %v528
    %v1043 = vunpack.c.l.b16 %v529
    %v1044 = vunpack.c.h.b16 %v529
    %v1045 = vunpack.c.l.b16 %v530
    %v1046 = vunpack.c.h.b16 %v530
    %v1047 = vunpack.c.l.b16 %v531
    %v1048 = vunpack.c.h.b16 %v531
    %v1049 = vunpack.c.l.b16 %v532
    %v1050 = vunpack.c.h.b16 %v532
    %v1051 = vunpack.c.l.b16 %v533
    %v1052 = vunpack.c.h.b16 %v533
    %v1053 = vunpack.c.l.b16 %v534
    %v1054 = vunpack.c.h.b16 %v534
    %v1055 = vunpack.c.l.b16 %v535
    %v1056 = vunpack.c.h.b16 %v535
    %v1057 = vunpack.c.l.b16 %v536
    %v1058 = vunpack.c.h.b16 %v536
    %v1059 = vunpack.c.l.b16 %v537
    %v1060 = vunpack.c.h.b16 %v537
    %v1061 = vunpack.c.l.b16 %v538
    %v1062 = vunpack.c.h.b16 %v538
    %v1063 = vunpack.c.l.b16 %v539
    %v1064 = vunpack.c.h.b16 %v539
    %v1065 = vunpack.c.l.b16 %v540
    %v1066 = vunpack.c.h.b16 %v540
    %v1067 = vunpack.c.l.b16 %v541
    %v1068 = vunpack.c.h.b16 %v541
    %v1069 = vunpack.c.l.b16 %v542
    %v1070 = vunpack.c.h.b16 %v542
    %v1071 = vunpack.c.l.b16 %v543
    %v1072 = vunpack.c.h.b16 %v543
    %v1073 = vunpack.c.l.b16 %v544
    %v1074 = vunpack.c.h.b16 %v544
    %v1075 = vunpack.c.l.b16 %v545
    %v1076 = vunpack.c.h.b16 %v545
    %v1077 = vunpack.c.l.b16 %v546
    %v1078 = vunpack.c.h.b16 %v546
    %v1079 = vunpack.c.l.b16 %v547
    %v1080 = vunpack.c.h.b16 %v547
    %v1081 = vunpack.c.l.b16 %v548
    %v1082 = vunpack.c.h.b16 %v548
    %v1083 = vunpack.c.l.b16 %v549
    %v1084 = vunpack.c.h.b16 %v549
    %v1085 = vunpack.c.l.b16 %v550
    %v1086 = vunpack.c.h.b16 %v550
    %v1087 = vunpack.c.l.b16 %v551
    %v1088 = vunpack.c.h.b16 %v551
    %v1089 = vunpack.c.l.b16 %v552
    %v1090 = vunpack.c.h.b16 %v552
    %v1091 = vunpack.c.l.b16 %v553
    %v1092 = vunpack.c.h.b16 %v553
    %v1093 = vunpack.c.l.b16 %v554
    %v1094 = vunpack.c.h.b16 %v554
    %v1095 = vunpack.c.l.b16 %v555
    %v1096 = vunpack.c.h.b16 %v555
    %v1097 = vunpack.c.l.b16 %v556
    %v1098 = vunpack.c.h.b16 %v556
    %v1099 = vunpack.c.l.b16 %v557
    %v1100 = vunpack.c.h.b16 %v557
    %v1101 = vunpack.c.l.b16 %v558
    %v1102 = vunpack.c.h.b16 %v558
    %v1103 = vunpack.c.l.b16 %v559
    %v1104 = vunpack.c.h.b16 %v559
    %v1105 = vunpack.c.l.b16 %v560
    %v1106 = vunpack.c.h.b16 %v560
    %v1107 = vunpack.c.l.b16 %v561
    %v1108 = vunpack.c.h.b16 %v561
    %v1109 = vunpack.c.l.b16 %v562
    %v1110 = vunpack.c.h.b16 %v562
    %v1111 = vunpack.c.l.b16 %v563
    %v1112 = vunpack.c.h.b16 %v563
    %v1113 = vunpack.c.l.b16 %v564
    %v1114 = vunpack.c.h.b16 %v564
    %v1115 = vunpack.c.l.b16 %v565
    %v1116 = vunpack.c.h.b16 %v565
    %v1117 = vunpack.c.l.b16 %v566
    %v1118 = vunpack.c.h.b16 %v566
    %v1119 = vunpack.c.l.b16 %v567
    %v1120 = vunpack.c.h.b16 %v567
    %v1121 = vunpack.c.l.b16 %v568
    %v1122 = vunpack.c.h.b16 %v568
    %v1123 = vunpack.c.l.b16 %v569
    %v1124 = vunpack.c.h.b16 %v569
    %v1125 = vunpack.c.l.b16 %v570
    %v1126 = vunpack.c.h.b16 %v570
    %v1127 = vunpack.c.l.b16 %v571
    %v1128 = vunpack.c.h.b16 %v571
    %v1129 = vunpack.c.l.b16 %v572
    %v1130 = vunpack.c.h.b16 %v572
    %v1131 = vunpack.c.l.b16 %v573
    %v1132 = vunpack.c.h.b16 %v573
    %v1133 = vunpack.c.l.b16 %v574
    %v1134 = vunpack.c.h.b16 %v574
    %v1135 = vunpack.c.l.b16 %v575
    %v1136 = vunpack.c.h.b16 %v575
    %v1137 = vunpack.c.l.b16 %v576
    %v1138 = vunpack.c.h.b16 %v576
    %v1139 = vunpack.c.l.b16 %v577
    %v1140 = vunpack.c.h.b16 %v577
    %v1141 = vunpack.c.l.b16 %v578
    %v1142 = vunpack.c.h.b16 %v578
    %v1143 = vunpack.c.l.b16 %v579
    %v1144 = vunpack.c.h.b16 %v579
    %v1145 = vunpack.c.l.b16 %v580
    %v1146 = vunpack.c.h.b16 %v580
    %v1147 = vunpack.c.l.b16 %v581
    %v1148 = vunpack.c.h.b16 %v581
    %v1149 = vunpack.c.l.b16 %v582
    %v1150 = vunpack.c.h.b16 %v582
    %v1151 = vunpack.c.l.b16 %v583
    %v1152 = vunpack.c.h.b16 %v583
    %v1153 = vunpack.c.l.b16 %v584
    %v1154 = vunpack.c.h.b16 %v584
    %v1155 = vunpack.c.l.b16 %v585
    %v1156 = vunpack.c.h.b16 %v585
    %v1157 = vunpack.c.l.b16 %v586
    %v1158 = vunpack.c.h.b16 %v586
    %v1159 = vunpack.c.l.b16 %v587
    %v1160 = vunpack.c.h.b16 %v587
    %v1161 = vunpack.c.l.b16 %v588
    %v1162 = vunpack.c.h.b16 %v588
    %v1163 = vunpack.c.l.b16 %v589
    %v1164 = vunpack.c.h.b16 %v589
    %v1165 = vunpack.c.l.b16 %v590
    %v1166 = vunpack.c.h.b16 %v590
    %v1167 = vunpack.c.l.b16 %v591
    %v1168 = vunpack.c.h.b16 %v591
    %v1169 = vunpack.c.l.b16 %v592
    %v1170 = vunpack.c.h.b16 %v592
    %v1171 = vunpack.c.l.b16 %v593
    %v1172 = vunpack.c.h.b16 %v593
    %v1173 = vunpack.c.l.b16 %v594
    %v1174 = vunpack.c.h.b16 %v594
    %v1175 = vunpack.c.l.b16 %v595
    %v1176 = vunpack.c.h.b16 %v595
    %v1177 = vunpack.c.l.b16 %v596
    %v1178 = vunpack.c.h.b16 %v596
    %v1179 = vunpack.c.l.b16 %v597
    %v1180 = vunpack.c.h.b16 %v597
    %v1181 = vunpack.c.l.b16 %v598
    %v1182 = vunpack.c.h.b16 %v598
    %v1183 = vunpack.c.l.b16 %v599
    %v1184 = vunpack.c.h.b16 %v599
    %v1185 = vunpack.c.l.b16 %v600
    %v1186 = vunpack.c.h.b16 %v600
    %v1187 = vunpack.c.l.b16 %v601
    %v1188 = vunpack.c.h.b16 %v601
    %v1189 = vunpack.c.l.b16 %v602
    %v1190 = vunpack.c.h.b16 %v602
    %v1191 = vunpack.c.l.b16 %v603
    %v1192 = vunpack.c.h.b16 %v603
    %v1193 = vunpack.c.l.b16 %v604
    %v1194 = vunpack.c.h.b16 %v604
    %v1195 = vunpack.c.l.b16 %v605
    %v1196 = vunpack.c.h.b16 %v605
    %v1197 = vunpack.c.l.b16 %v606
    %v1198 = vunpack.c.h.b16 %v606
    %v1199 = vunpack.c.l.b16 %v607
    %v1200 = vunpack.c.h.b16 %v607
    %v1201 = vunpack.c.l.b16 %v608
    %v1202 = vunpack.c.h.b16 %v608
    %v1203 = vunpack.c.l.b16 %v609
    %v1204 = vunpack.c.h.b16 %v609
    %v1205 = vunpack.c.l.b16 %v610
    %v1206 = vunpack.c.h.b16 %v610
    %v1207 = vunpack.c.l.b16 %v611
    %v1208 = vunpack.c.h.b16 %v611
    %v1209 = vunpack.c.l.b16 %v612
    %v1210 = vunpack.c.h.b16 %v612
    %v1211 = vpack.c.b16 %v823, %v819
    %v1212 = vpack.c.b16 %v824, %v820
    %v1213 = vpack.c.b16 %v825, %v821
    %v1214 = vpack.c.b16 %v826, %v822
    %v1215 = vpack.c.b16 %v831, %v827
    %v1216 = vpack.c.b16 %v832, %v828
    %v1217 = vpack.c.b16 %v833, %v829
    %v1218 = vpack.c.b16 %v834, %v830
    %v1219 = vpack.c.b16 %v839, %v835
    %v1220 = vpack.c.b16 %v840, %v836
    %v1221 = vpack.c.b16 %v841, %v837
    %v1222 = vpack.c.b16 %v842, %v838
    %v1223 = vpack.c.b16 %v847, %v843
    %v1224 = vpack.c.b16 %v848, %v844
    %v1225 = vpack.c.b16 %v849, %v845
    %v1226 = vpack.c.b16 %v850, %v846
    %v1227 = vpack.c.b16 %v855, %v851
    %v1228 = vpack.c.b16 %v856, %v852
    %v1229 = vpack.c.b16 %v857, %v853
    %v1230 = vpack.c.b16 %v858, %v854
    %v1231 = vpack.c.b16 %v863, %v859
    %v1232 = vpack.c.b16 %v864, %v860
    %v1233 = vpack.c.b16 %v865, %v861
    %v1234 = vpack.c.b16 %v866, %v862
    %v1235 = vpack.c.b16 %v871, %v867
    %v1236 = vpack.c.b16 %v872, %v868
    %v1237 = vpack.c.b16 %v873, %v869
    %v1238 = vpack.c.b16 %v874, %v870
    %v1239 = vpack.c.b16 %v879, %v875
    %v1240 = vpack.c.b16 %v880, %v876
    %v1241 = vpack.c.b16 %v881, %v877
    %v1242 = vpack.c.b16 %v882, %v878
    %v1243 = vpack.c.b16 %v887, %v883
    %v1244 = vpack.c.b16 %v888, %v884
    %v1245 = vpack.c.b16 %v889, %v885
    %v1246 = vpack.c.b16 %v890, %v886
    %v1247 = vpack.c.b16 %v895, %v891
    %v1248 = vpack.c.b16 %v896, %v892
    %v1249 = vpack.c.b16 %v897, %v893
    %v1250 = vpack.c.b16 %v898, %v894
    %v1251 = vpack.c.b16 %v903, %v899
    %v1252 = vpack.c.b16 %v904, %v900
    %v1253 = vpack.c.b16 %v905, %v901
    %v1254 = vpack.c.b16 %v906, %v902
    %v1255 = vpack.c.b16 %v911, %v907
    %v1256 = vpack.c.b16 %v912, %v908
    %v1257 = vpack.c.b16 %v913, %v909
    %v1258 = vpack.c.b16 %v914, %v910
    %v1259 = vpack.c.b16 %v919, %v915
    %v1260 = vpack.c.b16 %v920, %v916
    %v1261 = vpack.c.b16 %v921, %v917
    %v1262 = vpack.c.b16 %v922, %v918
    %v1263 = vpack.c.b16 %v927, %v923
    %v1264 = vpack.c.b16 %v928, %v924
    %v1265 = vpack.c.b16 %v929, %v925
    %v1266 = vpack.c.b16 %v930, %v926
    %v1267 = vpack.c.b16 %v935, %v931
    %v1268 = vpack.c.b16 %v936, %v932
    %v1269 = vpack.c.b16 %v937, %v933
    %v1270 = vpack.c.b16 %v938, %v934
    %v1271 = vpack.c.b16 %v943, %v939
    %v1272 = vpack.c.b16 %v944, %v940
    %v1273 = vpack.c.b16 %v945, %v941
    %v1274 = vpack.c.b16 %v946, %v942
    %v1275 = vpack.c.b16 %v951, %v947
    %v1276 = vpack.c.b16 %v952, %v948
    %v1277 = vpack.c.b16 %v953, %v949
    %v1278 = vpack.c.b16 %v954, %v950
    %v1279 = vpack.c.b16 %v959, %v955
    %v1280 = vpack.c.b16 %v960, %v956
    %v1281 = vpack.c.b16 %v961, %v957
    %v1282 = vpack.c.b16 %v962, %v958
    %v1283 = vpack.c.b16 %v967, %v963
    %v1284 = vpack.c.b16 %v968, %v964
    %v1285 = vpack.c.b16 %v969, %v965
    %v1286 = vpack.c.b16 %v970, %v966
    %v1287 = vpack.c.b16 %v975, %v971
    %v1288 = vpack.c.b16 %v976, %v972
    %v1289 = vpack.c.b16 %v977, %v973
    %v1290 = vpack.c.b16 %v978, %v974
    %v1291 = vpack.c.b16 %v983, %v979
    %v1292 = vpack.c.b16 %v984, %v980
    %v1293 = vpack.c.b16 %v985, %v981
    %v1294 = vpack.c.b16 %v986, %v982
    %v1295 = vpack.c.b16 %v991, %v987
    %v1296 = vpack.c.b16 %v992, %v988
    %v1297 = vpack.c.b16 %v993, %v989
    %v1298 = vpack.c.b16 %v994, %v990
    %v1299 = vpack.c.b16 %v999, %v995
    %v1300 = vpack.c.b16 %v1000, %v996
    %v1301 = vpack.c.b16 %v1001, %v997
    %v1302 = vpack.c.b16 %v1002, %v998
    %v1303 = vpack.c.b16 %v1007, %v1003
    %v1304 = vpack.c.b16 %v1008, %v1004
    %v1305 = vpack.c.b16 %v1009, %v1005
    %v1306 = vpack.c.b16 %v1010, %v1006
    %v1307 = vpack.c.b16 %v1015, %v1011
    %v1308 = vpack.c.b16 %v1016, %v1012
    %v1309 = vpack.c.b16 %v1017, %v1013
    %v1310 = vpack.c.b16 %v1018, %v1014
    %v1311 = vpack.c.b16 %v1023, %v1019
    %v1312 = vpack.c.b16 %v1024, %v1020
    %v1313 = vpack.c.b16 %v1025, %v1021
    %v1314 = vpack.c.b16 %v1026, %v1022
    %v1315 = vpack.c.b16 %v1031, %v1027
    %v1316 = vpack.c.b16 %v1032, %v1028
    %v1317 = vpack.c.b16 %v1033, %v1029
    %v1318 = vpack.c.b16 %v1034, %v1030
    %v1319 = vpack.c.b16 %v1039, %v1035
    %v1320 = vpack.c.b16 %v1040, %v1036
    %v1321 = vpack.c.b16 %v1041, %v1037
    %v1322 = vpack.c.b16 %v1042, %v1038
    %v1323 = vpack.c.b16 %v1047, %v1043
    %v1324 = vpack.c.b16 %v1048, %v1044
    %v1325 = vpack.c.b16 %v1049, %v1045
    %v1326 = vpack.c.b16 %v1050, %v1046
    %v1327 = vpack.c.b16 %v1055, %v1051
    %v1328 = vpack.c.b16 %v1056, %v1052
    %v1329 = vpack.c.b16 %v1057, %v1053
    %v1330 = vpack.c.b16 %v1058, %v1054
    %v1331 = vpack.c.b16 %v1063, %v1059
    %v1332 = vpack.c.b16 %v1064, %v1060
    %v1333 = vpack.c.b16 %v1065, %v1061
    %v1334 = vpack.c.b16 %v1066, %v1062
    %v1335 = vpack.c.b16 %v1071, %v1067
    %v1336 = vpack.c.b16 %v1072, %v1068
    %v1337 = vpack.c.b16 %v1073, %v1069
    %v1338 = vpack.c.b16 %v1074, %v1070
    %v1339 = vpack.c.b16 %v1079, %v1075
    %v1340 = vpack.c.b16 %v1080, %v1076
    %v1341 = vpack.c.b16 %v1081, %v1077
    %v1342 = vpack.c.b16 %v1082, %v1078
    %v1343 = vpack.c.b16 %v1087, %v1083
    %v1344 = vpack.c.b16 %v1088, %v1084
    %v1345 = vpack.c.b16 %v1089, %v1085
    %v1346 = vpack.c.b16 %v1090, %v1086
    %v1347 = vpack.c.b16 %v1095, %v1091
    %v1348 = vpack.c.b16 %v1096, %v1092
    %v1349 = vpack.c.b16 %v1097, %v1093
    %v1350 = vpack.c.b16 %v1098, %v1094
    %v1351 = vpack.c.b16 %v1103, %v1099
    %v1352 = vpack.c.b16 %v1104, %v1100
    %v1353 = vpack.c.b16 %v1105, %v1101
    %v1354 = vpack.c.b16 %v1106, %v1102
    %v1355 = vpack.c.b16 %v1111, %v1107
    %v1356 = vpack.c.b16 %v1112, %v1108
    %v1357 = vpack.c.b16 %v1113, %v1109
    %v1358 = vpack.c.b16 %v1114, %v1110
    %v1359 = vpack.c.b16 %v1119, %v1115
    %v1360 = vpack.c.b16 %v1120, %v1116
    %v1361 = vpack.c.b16 %v1121, %v1117
    %v1362 = vpack.c.b16 %v1122, %v1118
    %v1363 = vpack.c.b16 %v1127, %v1123
    %v1364 = vpack.c.b16 %v1128, %v1124
    %v1365 = vpack.c.b16 %v1129, %v1125
    %v1366 = vpack.c.b16 %v1130, %v1126
    %v1367 = vpack.c.b16 %v1135, %v1131
    %v1368 = vpack.c.b16 %v1136, %v1132
    %v1369 = vpack.c.b16 %v1137, %v1133
    %v1370 = vpack.c.b16 %v1138, %v1134
    %v1371 = vpack.c.b16 %v1143, %v1139
    %v1372 = vpack.c.b16 %v1144, %v1140
    %v1373 = vpack.c.b16 %v1145, %v1141
    %v1374 = vpack.c.b16 %v1146, %v1142
    %v1375 = vpack.c.b16 %v1151, %v1147
    %v1376 = vpack.c.b16 %v1152, %v1148
    %v1377 = vpack.c.b16 %v1153, %v1149
    %v1378 = vpack.c.b16 %v1154, %v1150
    %v1379 = vpack.c.b16 %v1159, %v1155
    %v1380 = vpack.c.b16 %v1160, %v1156
    %v1381 = vpack.c.b16 %v1161, %v1157
    %v1382 = vpack.c.b16 %v1162, %v1158
    %v1383 = vpack.c.b16 %v1167, %v1163
    %v1384 = vpack.c.b16 %v1168, %v1164
    %v1385 = vpack.c.b16 %v1169, %v1165
    %v1386 = vpack.c.b16 %v1170, %v1166
    %v1387 = vpack.c.b16 %v1175, %v1171
    %v1388 = vpack.c.b16 %v1176, %v1172
    %v1389 = vpack.c.b16 %v1177, %v1173
    %v1390 = vpack.c.b16 %v1178, %v1174
    %v1391 = vpack.c.b16 %v1183, %v1179
    %v1392 = vpack.c.b16 %v1184, %v1180
    %v1393 = vpack.c.b16 %v1185, %v1181
    %v1394 = vpack.c.b16 %v1186, %v1182
    %v1395 = vpack.c.b16 %v1191, %v1187
    %v1396 = vpack.c.b16 %v1192, %v1188
    %v1397 = vpack.c.b16 %v1193, %v1189
    %v1398 = vpack.c.b16 %v1194, %v1190
    %v1399 = vpack.c.b16 %v1199, %v1195
    %v1400 = vpack.c.b16 %v1200, %v1196
    %v1401 = vpack.c.b16 %v1201, %v1197
    %v1402 = vpack.c.b16 %v1202, %v1198
    %v1403 = vpack.c.b16 %v1207, %v1203
    %v1404 = vpack.c.b16 %v1208, %v1204
    %v1405 = vpack.c.b16 %v1209, %v1205
    %v1406 = vpack.c.b16 %v1210, %v1206
    %vm1603 = vcmask 130048
    %v1605 = vsel %vm1603, %v416, 0
    %1607 = vmatpush.bf16.msra.mxu0 %v1239
    %1608 = vmatpush.bf16.msra.mxu0 %v1235
    %1609 = vmatpush.bf16.msra.mxu0 %v1231
    %1610 = vmatpush.bf16.msra.mxu0 %v1227
    %1611 = vmatpush.bf16.msra.mxu0 %v1223
    %1612 = vmatpush.bf16.msra.mxu0 %v1219
    %1613 = vmatpush.bf16.msra.mxu0 %v1215
    %1614 = vmatpush.bf16.msra.mxu0 %v1211
    %1615 = vmatmul.bf16.gmra.mxu0 %v410
    %v1616 = vpop.f32.mrf.mxu0
    %v1617 = vadd.f32 %v615, %v1616
    %v1618 = vpop.f32.mrf.mxu0
    %1619 = vdwg.mxu0
    %1620 = vmatpush.bf16.msra.mxu0 %v1271
    %1621 = vmatpush.bf16.msra.mxu0 %v1267
    %1622 = vmatpush.bf16.msra.mxu0 %v1263
    %1623 = vmatpush.bf16.msra.mxu0 %v1259
    %1624 = vmatpush.bf16.msra.mxu0 %v1255
    %1625 = vmatpush.bf16.msra.mxu0 %v1251
    %1626 = vmatpush.bf16.msra.mxu0 %v1247
    %1627 = vmatpush.bf16.msra.mxu0 %v1243
    %1628 = vmatmul.bf16.gmra.mxu0 %v411
    %v1629 = vpop.f32.mrf.mxu0
    %v1630 = vadd.f32 %v1617, %v1629
    %v1631 = vpop.f32.mrf.mxu0
    %1632 = vdwg.mxu0
    %1633 = vmatpush.bf16.msra.mxu0 %v1303
    %1634 = vmatpush.bf16.msra.mxu0 %v1299
    %1635 = vmatpush.bf16.msra.mxu0 %v1295
    %1636 = vmatpush.bf16.msra.mxu0 %v1291
    %1637 = vmatpush.bf16.msra.mxu0 %v1287
    %1638 = vmatpush.bf16.msra.mxu0 %v1283
    %1639 = vmatpush.bf16.msra.mxu0 %v1279
    %1640 = vmatpush.bf16.msra.mxu0 %v1275
    %1641 = vmatmul.bf16.gmra.mxu0 %v412
    %v1642 = vpop.f32.mrf.mxu0
    %v1643 = vadd.f32 %v1630, %v1642
    %v1644 = vpop.f32.mrf.mxu0
    %1645 = vdwg.mxu0
    %1646 = vmatpush.bf16.msra.mxu0 %v1335
    %1647 = vmatpush.bf16.msra.mxu0 %v1331
    %1648 = vmatpush.bf16.msra.mxu0 %v1327
    %1649 = vmatpush.bf16.msra.mxu0 %v1323
    %1650 = vmatpush.bf16.msra.mxu0 %v1319
    %1651 = vmatpush.bf16.msra.mxu0 %v1315
    %1652 = vmatpush.bf16.msra.mxu0 %v1311
    %1653 = vmatpush.bf16.msra.mxu0 %v1307
    %1654 = vmatmul.bf16.gmra.mxu0 %v413
    %v1655 = vpop.f32.mrf.mxu0
    %v1656 = vadd.f32 %v1643, %v1655
    %v1657 = vpop.f32.mrf.mxu0
    %1658 = vdwg.mxu0
    %1659 = vmatpush.bf16.msra.mxu0 %v1367
    %1660 = vmatpush.bf16.msra.mxu0 %v1363
    %1661 = vmatpush.bf16.msra.mxu0 %v1359
    %1662 = vmatpush.bf16.msra.mxu0 %v1355
    %1663 = vmatpush.bf16.msra.mxu0 %v1351
    %1664 = vmatpush.bf16.msra.mxu0 %v1347
    %1665 = vmatpush.bf16.msra.mxu0 %v1343
    %1666 = vmatpush.bf16.msra.mxu0 %v1339
    %1667 = vmatmul.bf16.gmra.mxu0 %v414
    %v1668 = vpop.f32.mrf.mxu0
    %v1669 = vadd.f32 %v1656, %v1668
    %v1670 = vpop.f32.mrf.mxu0
    %1671 = vdwg.mxu0
    %1672 = vmatpush.bf16.msra.mxu0 %v1399
    %1673 = vmatpush.bf16.msra.mxu0 %v1395
    %1674 = vmatpush.bf16.msra.mxu0 %v1391
    %1675 = vmatpush.bf16.msra.mxu0 %v1387
    %1676 = vmatpush.bf16.msra.mxu0 %v1383
    %1677 = vmatpush.bf16.msra.mxu0 %v1379
    %1678 = vmatpush.bf16.msra.mxu0 %v1375
    %1679 = vmatpush.bf16.msra.mxu0 %v1371
    %1680 = vmatmul.bf16.gmra.mxu0 %v415
    %v1681 = vpop.f32.mrf.mxu0
    %v1682 = vadd.f32 %v1669, %v1681
    %v1683 = vpop.f32.mrf.mxu0
    %1684 = vdwg.mxu0
    %1685 = vmatpush.bf16.msra.mxu0 0
    %1686 = vmatpush.bf16.msra.mxu0 0
    %1687 = vmatpush.bf16.msra.mxu0 0
    %1688 = vmatpush.bf16.msra.mxu0 0
    %1689 = vmatpush.bf16.msra.mxu0 0
    %1690 = vmatpush.bf16.msra.mxu0 0
    %1691 = vmatpush.bf16.msra.mxu0 0
    %1692 = vmatpush.bf16.msra.mxu0 %v1403
    %1693 = vmatmul.bf16.gmra.mxu0 %v1605
    %v1694 = vpop.f32.mrf.mxu0
    %v1695 = vadd.f32 %v1682, %v1694
    %v1696 = vpop.f32.mrf.mxu0
    %1697 = vdwg.mxu0
    %1698 = vmatpush.bf16.msra.mxu0 %v1240
    %1699 = vmatpush.bf16.msra.mxu0 %v1236
    %1700 = vmatpush.bf16.msra.mxu0 %v1232
    %1701 = vmatpush.bf16.msra.mxu0 %v1228
    %1702 = vmatpush.bf16.msra.mxu0 %v1224
    %1703 = vmatpush.bf16.msra.mxu0 %v1220
    %1704 = vmatpush.bf16.msra.mxu0 %v1216
    %1705 = vmatpush.bf16.msra.mxu0 %v1212
    %1706 = vmatmul.bf16.gmra.mxu0 %v410
    %v1707 = vpop.f32.mrf.mxu0
    %v1708 = vadd.f32 %v616, %v1707
    %v1709 = vpop.f32.mrf.mxu0
    %1710 = vdwg.mxu0
    %1711 = vmatpush.bf16.msra.mxu0 %v1272
    %1712 = vmatpush.bf16.msra.mxu0 %v1268
    %1713 = vmatpush.bf16.msra.mxu0 %v1264
    %1714 = vmatpush.bf16.msra.mxu0 %v1260
    %1715 = vmatpush.bf16.msra.mxu0 %v1256
    %1716 = vmatpush.bf16.msra.mxu0 %v1252
    %1717 = vmatpush.bf16.msra.mxu0 %v1248
    %1718 = vmatpush.bf16.msra.mxu0 %v1244
    %1719 = vmatmul.bf16.gmra.mxu0 %v411
    %v1720 = vpop.f32.mrf.mxu0
    %v1721 = vadd.f32 %v1708, %v1720
    %v1722 = vpop.f32.mrf.mxu0
    %1723 = vdwg.mxu0
    %1724 = vmatpush.bf16.msra.mxu0 %v1304
    %1725 = vmatpush.bf16.msra.mxu0 %v1300
    %1726 = vmatpush.bf16.msra.mxu0 %v1296
    %1727 = vmatpush.bf16.msra.mxu0 %v1292
    %1728 = vmatpush.bf16.msra.mxu0 %v1288
    %1729 = vmatpush.bf16.msra.mxu0 %v1284
    %1730 = vmatpush.bf16.msra.mxu0 %v1280
    %1731 = vmatpush.bf16.msra.mxu0 %v1276
    %1732 = vmatmul.bf16.gmra.mxu0 %v412
    %v1733 = vpop.f32.mrf.mxu0
    %v1734 = vadd.f32 %v1721, %v1733
    %v1735 = vpop.f32.mrf.mxu0
    %1736 = vdwg.mxu0
    %1737 = vmatpush.bf16.msra.mxu0 %v1336
    %1738 = vmatpush.bf16.msra.mxu0 %v1332
    %1739 = vmatpush.bf16.msra.mxu0 %v1328
    %1740 = vmatpush.bf16.msra.mxu0 %v1324
    %1741 = vmatpush.bf16.msra.mxu0 %v1320
    %1742 = vmatpush.bf16.msra.mxu0 %v1316
    %1743 = vmatpush.bf16.msra.mxu0 %v1312
    %1744 = vmatpush.bf16.msra.mxu0 %v1308
    %1745 = vmatmul.bf16.gmra.mxu0 %v413
    %v1746 = vpop.f32.mrf.mxu0
    %v1747 = vadd.f32 %v1734, %v1746
    %v1748 = vpop.f32.mrf.mxu0
    %1749 = vdwg.mxu0
    %1750 = vmatpush.bf16.msra.mxu0 %v1368
    %1751 = vmatpush.bf16.msra.mxu0 %v1364
    %1752 = vmatpush.bf16.msra.mxu0 %v1360
    %1753 = vmatpush.bf16.msra.mxu0 %v1356
    %1754 = vmatpush.bf16.msra.mxu0 %v1352
    %1755 = vmatpush.bf16.msra.mxu0 %v1348
    %1756 = vmatpush.bf16.msra.mxu0 %v1344
    %1757 = vmatpush.bf16.msra.mxu0 %v1340
    %1758 = vmatmul.bf16.gmra.mxu0 %v414
    %v1759 = vpop.f32.mrf.mxu0
    %v1760 = vadd.f32 %v1747, %v1759
    %v1761 = vpop.f32.mrf.mxu0
    %1762 = vdwg.mxu0
    %1763 = vmatpush.bf16.msra.mxu0 %v1400
    %1764 = vmatpush.bf16.msra.mxu0 %v1396
    %1765 = vmatpush.bf16.msra.mxu0 %v1392
    %1766 = vmatpush.bf16.msra.mxu0 %v1388
    %1767 = vmatpush.bf16.msra.mxu0 %v1384
    %1768 = vmatpush.bf16.msra.mxu0 %v1380
    %1769 = vmatpush.bf16.msra.mxu0 %v1376
    %1770 = vmatpush.bf16.msra.mxu0 %v1372
    %1771 = vmatmul.bf16.gmra.mxu0 %v415
    %v1772 = vpop.f32.mrf.mxu0
    %v1773 = vadd.f32 %v1760, %v1772
    %v1774 = vpop.f32.mrf.mxu0
    %1775 = vdwg.mxu0
    %1776 = vmatpush.bf16.msra.mxu0 0
    %1777 = vmatpush.bf16.msra.mxu0 0
    %1778 = vmatpush.bf16.msra.mxu0 0
    %1779 = vmatpush.bf16.msra.mxu0 0
    %1780 = vmatpush.bf16.msra.mxu0 0
    %1781 = vmatpush.bf16.msra.mxu0 0
    %1782 = vmatpush.bf16.msra.mxu0 0
    %1783 = vmatpush.bf16.msra.mxu0 %v1404
    %1784 = vmatmul.bf16.gmra.mxu0 %v1605
    %v1785 = vpop.f32.mrf.mxu0
    %v1786 = vadd.f32 %v1773, %v1785
    %v1787 = vpop.f32.mrf.mxu0
    %1788 = vdwg.mxu0
    %1789 = vmatpush.bf16.msra.mxu0 %v1241
    %1790 = vmatpush.bf16.msra.mxu0 %v1237
    %1791 = vmatpush.bf16.msra.mxu0 %v1233
    %1792 = vmatpush.bf16.msra.mxu0 %v1229
    %1793 = vmatpush.bf16.msra.mxu0 %v1225
    %1794 = vmatpush.bf16.msra.mxu0 %v1221
    %1795 = vmatpush.bf16.msra.mxu0 %v1217
    %1796 = vmatpush.bf16.msra.mxu0 %v1213
    %1797 = vmatmul.bf16.gmra.mxu0 %v410
    %v1798 = vpop.f32.mrf.mxu0
    %v1799 = vadd.f32 %v617, %v1798
    %v1800 = vpop.f32.mrf.mxu0
    %1801 = vdwg.mxu0
    %1802 = vmatpush.bf16.msra.mxu0 %v1273
    %1803 = vmatpush.bf16.msra.mxu0 %v1269
    %1804 = vmatpush.bf16.msra.mxu0 %v1265
    %1805 = vmatpush.bf16.msra.mxu0 %v1261
    %1806 = vmatpush.bf16.msra.mxu0 %v1257
    %1807 = vmatpush.bf16.msra.mxu0 %v1253
    %1808 = vmatpush.bf16.msra.mxu0 %v1249
    %1809 = vmatpush.bf16.msra.mxu0 %v1245
    %1810 = vmatmul.bf16.gmra.mxu0 %v411
    %v1811 = vpop.f32.mrf.mxu0
    %v1812 = vadd.f32 %v1799, %v1811
    %v1813 = vpop.f32.mrf.mxu0
    %1814 = vdwg.mxu0
    %1815 = vmatpush.bf16.msra.mxu0 %v1305
    %1816 = vmatpush.bf16.msra.mxu0 %v1301
    %1817 = vmatpush.bf16.msra.mxu0 %v1297
    %1818 = vmatpush.bf16.msra.mxu0 %v1293
    %1819 = vmatpush.bf16.msra.mxu0 %v1289
    %1820 = vmatpush.bf16.msra.mxu0 %v1285
    %1821 = vmatpush.bf16.msra.mxu0 %v1281
    %1822 = vmatpush.bf16.msra.mxu0 %v1277
    %1823 = vmatmul.bf16.gmra.mxu0 %v412
    %v1824 = vpop.f32.mrf.mxu0
    %v1825 = vadd.f32 %v1812, %v1824
    %v1826 = vpop.f32.mrf.mxu0
    %1827 = vdwg.mxu0
    %1828 = vmatpush.bf16.msra.mxu0 %v1337
    %1829 = vmatpush.bf16.msra.mxu0 %v1333
    %1830 = vmatpush.bf16.msra.mxu0 %v1329
    %1831 = vmatpush.bf16.msra.mxu0 %v1325
    %1832 = vmatpush.bf16.msra.mxu0 %v1321
    %1833 = vmatpush.bf16.msra.mxu0 %v1317
    %1834 = vmatpush.bf16.msra.mxu0 %v1313
    %1835 = vmatpush.bf16.msra.mxu0 %v1309
    %1836 = vmatmul.bf16.gmra.mxu0 %v413
    %v1837 = vpop.f32.mrf.mxu0
    %v1838 = vadd.f32 %v1825, %v1837
    %v1839 = vpop.f32.mrf.mxu0
    %1840 = vdwg.mxu0
    %1841 = vmatpush.bf16.msra.mxu0 %v1369
    %1842 = vmatpush.bf16.msra.mxu0 %v1365
    %1843 = vmatpush.bf16.msra.mxu0 %v1361
    %1844 = vmatpush.bf16.msra.mxu0 %v1357
    %1845 = vmatpush.bf16.msra.mxu0 %v1353
    %1846 = vmatpush.bf16.msra.mxu0 %v1349
    %1847 = vmatpush.bf16.msra.mxu0 %v1345
    %1848 = vmatpush.bf16.msra.mxu0 %v1341
    %1849 = vmatmul.bf16.gmra.mxu0 %v414
    %v1850 = vpop.f32.mrf.mxu0
    %v1851 = vadd.f32 %v1838, %v1850
    %v1852 = vpop.f32.mrf.mxu0
    %1853 = vdwg.mxu0
    %1854 = vmatpush.bf16.msra.mxu0 %v1401
    %1855 = vmatpush.bf16.msra.mxu0 %v1397
    %1856 = vmatpush.bf16.msra.mxu0 %v1393
    %1857 = vmatpush.bf16.msra.mxu0 %v1389
    %1858 = vmatpush.bf16.msra.mxu0 %v1385
    %1859 = vmatpush.bf16.msra.mxu0 %v1381
    %1860 = vmatpush.bf16.msra.mxu0 %v1377
    %1861 = vmatpush.bf16.msra.mxu0 %v1373
    %1862 = vmatmul.bf16.gmra.mxu0 %v415
    %v1863 = vpop.f32.mrf.mxu0
    %v1864 = vadd.f32 %v1851, %v1863
    %v1865 = vpop.f32.mrf.mxu0
    %1866 = vdwg.mxu0
    %1867 = vmatpush.bf16.msra.mxu0 0
    %1868 = vmatpush.bf16.msra.mxu0 0
    %1869 = vmatpush.bf16.msra.mxu0 0
    %1870 = vmatpush.bf16.msra.mxu0 0
    %1871 = vmatpush.bf16.msra.mxu0 0
    %1872 = vmatpush.bf16.msra.mxu0 0
    %1873 = vmatpush.bf16.msra.mxu0 0
    %1874 = vmatpush.bf16.msra.mxu0 %v1405
    %1875 = vmatmul.bf16.gmra.mxu0 %v1605
    %v1876 = vpop.f32.mrf.mxu0
    %v1877 = vadd.f32 %v1864, %v1876
    %v1878 = vpop.f32.mrf.mxu0
    %1879 = vdwg.mxu0
    %1880 = vmatpush.bf16.msra.mxu0 %v1242
    %1881 = vmatpush.bf16.msra.mxu0 %v1238
    %1882 = vmatpush.bf16.msra.mxu0 %v1234
    %1883 = vmatpush.bf16.msra.mxu0 %v1230
    %1884 = vmatpush.bf16.msra.mxu0 %v1226
    %1885 = vmatpush.bf16.msra.mxu0 %v1222
    %1886 = vmatpush.bf16.msra.mxu0 %v1218
    %1887 = vmatpush.bf16.msra.mxu0 %v1214
    %1888 = vmatmul.bf16.gmra.mxu0 %v410
    %v1889 = vpop.f32.mrf.mxu0
    %v1890 = vadd.f32 %v618, %v1889
    %v1891 = vpop.f32.mrf.mxu0
    %1892 = vdwg.mxu0
    %1893 = vmatpush.bf16.msra.mxu0 %v1274
    %1894 = vmatpush.bf16.msra.mxu0 %v1270
    %1895 = vmatpush.bf16.msra.mxu0 %v1266
    %1896 = vmatpush.bf16.msra.mxu0 %v1262
    %1897 = vmatpush.bf16.msra.mxu0 %v1258
    %1898 = vmatpush.bf16.msra.mxu0 %v1254
    %1899 = vmatpush.bf16.msra.mxu0 %v1250
    %1900 = vmatpush.bf16.msra.mxu0 %v1246
    %1901 = vmatmul.bf16.gmra.mxu0 %v411
    %v1902 = vpop.f32.mrf.mxu0
    %v1903 = vadd.f32 %v1890, %v1902
    %v1904 = vpop.f32.mrf.mxu0
    %1905 = vdwg.mxu0
    %1906 = vmatpush.bf16.msra.mxu0 %v1306
    %1907 = vmatpush.bf16.msra.mxu0 %v1302
    %1908 = vmatpush.bf16.msra.mxu0 %v1298
    %1909 = vmatpush.bf16.msra.mxu0 %v1294
    %1910 = vmatpush.bf16.msra.mxu0 %v1290
    %1911 = vmatpush.bf16.msra.mxu0 %v1286
    %1912 = vmatpush.bf16.msra.mxu0 %v1282
    %1913 = vmatpush.bf16.msra.mxu0 %v1278
    %1914 = vmatmul.bf16.gmra.mxu0 %v412
    %v1915 = vpop.f32.mrf.mxu0
    %v1916 = vadd.f32 %v1903, %v1915
    %v1917 = vpop.f32.mrf.mxu0
    %1918 = vdwg.mxu0
    %1919 = vmatpush.bf16.msra.mxu0 %v1338
    %1920 = vmatpush.bf16.msra.mxu0 %v1334
    %1921 = vmatpush.bf16.msra.mxu0 %v1330
    %1922 = vmatpush.bf16.msra.mxu0 %v1326
    %1923 = vmatpush.bf16.msra.mxu0 %v1322
    %1924 = vmatpush.bf16.msra.mxu0 %v1318
    %1925 = vmatpush.bf16.msra.mxu0 %v1314
    %1926 = vmatpush.bf16.msra.mxu0 %v1310
    %1927 = vmatmul.bf16.gmra.mxu0 %v413
    %v1928 = vpop.f32.mrf.mxu0
    %v1929 = vadd.f32 %v1916, %v1928
    %v1930 = vpop.f32.mrf.mxu0
    %1931 = vdwg.mxu0
    %1932 = vmatpush.bf16.msra.mxu0 %v1370
    %1933 = vmatpush.bf16.msra.mxu0 %v1366
    %1934 = vmatpush.bf16.msra.mxu0 %v1362
    %1935 = vmatpush.bf16.msra.mxu0 %v1358
    %1936 = vmatpush.bf16.msra.mxu0 %v1354
    %1937 = vmatpush.bf16.msra.mxu0 %v1350
    %1938 = vmatpush.bf16.msra.mxu0 %v1346
    %1939 = vmatpush.bf16.msra.mxu0 %v1342
    %1940 = vmatmul.bf16.gmra.mxu0 %v414
    %v1941 = vpop.f32.mrf.mxu0
    %v1942 = vadd.f32 %v1929, %v1941
    %v1943 = vpop.f32.mrf.mxu0
    %1944 = vdwg.mxu0
    %1945 = vmatpush.bf16.msra.mxu0 %v1402
    %1946 = vmatpush.bf16.msra.mxu0 %v1398
    %1947 = vmatpush.bf16.msra.mxu0 %v1394
    %1948 = vmatpush.bf16.msra.mxu0 %v1390
    %1949 = vmatpush.bf16.msra.mxu0 %v1386
    %1950 = vmatpush.bf16.msra.mxu0 %v1382
    %1951 = vmatpush.bf16.msra.mxu0 %v1378
    %1952 = vmatpush.bf16.msra.mxu0 %v1374
    %1953 = vmatmul.bf16.gmra.mxu0 %v415
    %v1954 = vpop.f32.mrf.mxu0
    %v1955 = vadd.f32 %v1942, %v1954
    %v1956 = vpop.f32.mrf.mxu0
    %1957 = vdwg.mxu0
    %1958 = vmatpush.bf16.msra.mxu0 0
    %1959 = vmatpush.bf16.msra.mxu0 0
    %1960 = vmatpush.bf16.msra.mxu0 0
    %1961 = vmatpush.bf16.msra.mxu0 0
    %1962 = vmatpush.bf16.msra.mxu0 0
    %1963 = vmatpush.bf16.msra.mxu0 0
    %1964 = vmatpush.bf16.msra.mxu0 0
    %1965 = vmatpush.bf16.msra.mxu0 %v1406
    %1966 = vmatmul.bf16.gmra.mxu0 %v1605
    %v1967 = vpop.f32.mrf.mxu0
    %v1968 = vadd.f32 %v1955, %v1967
    %v1969 = vpop.f32.mrf.mxu0
    %1970 = vdwg.mxu0
    %v1971 = vmax.f32 %v1695, 0.0
    %v1972 = vmax.f32 %v1786, 0.0
    %v1973 = vmax.f32 %v1877, 0.0
    %v1974 = vmax.f32 %v1968, 0.0
    %v1975 = vld [vmem:[%s4] sm:$0xff]
    %v1976 = vld [vmem:[%s4 + $0x8] sm:$0xff]
    %v1977 = vld [vmem:[%s4 + $0x10] sm:$0xff]
    %v1978 = vld [vmem:[%s4 + $0x18] sm:$0xff]
    %v1979 = vld [vmem:[%s4 + $0x20] sm:$0xff]
    %v1980 = vld [vmem:[%s4 + $0x28] sm:$0xff]
    %v1981 = vld [vmem:[%s4 + $0x30] sm:$0xff]
    %v1982 = vld [vmem:[%s4 + $0x38] sm:$0xff]
    %v1983 = vld [vmem:[%s4 + $0x40] sm:$0xff]
    %v1984 = vld [vmem:[%s4 + $0x48] sm:$0xff]
    %v1985 = vld [vmem:[%s4 + $0x50] sm:$0xff]
    %v1986 = vld [vmem:[%s4 + $0x58] sm:$0xff]
    %v1987 = vld [vmem:[%s4 + $0x60] sm:$0xff]
    %v1988 = vld [vmem:[%s4 + $0x68] sm:$0xff]
    %v1989 = vld [vmem:[%s4 + $0x70] sm:$0xff]
    %v1990 = vld [vmem:[%s4 + $0x78] sm:$0xff]
    %v1991 = vld [vmem:[%s4 + $0x80] sm:$0xff]
    %v1992 = vld [vmem:[%s4 + $0x88] sm:$0xff]
    %v1993 = vld [vmem:[%s4 + $0x90] sm:$0xff]
    %v1994 = vld [vmem:[%s4 + $0x98] sm:$0xff]
    %v1995 = vld [vmem:[%s4 + $0xa0] sm:$0xff]
    %v1996 = vld [vmem:[%s4 + $0xa8] sm:$0xff]
    %v1997 = vld [vmem:[%s4 + $0xb0] sm:$0xff]
    %v1998 = vld [vmem:[%s4 + $0xb8] sm:$0xff]
    %v1999 = vld [vmem:[%s4 + $0xc0] sm:$0xff]
    %v2000 = vld [vmem:[%s4 + $0xc8] sm:$0xff]
    %v2001 = vld [vmem:[%s4 + $0xd0] sm:$0xff]
    %v2002 = vld [vmem:[%s4 + $0xd8] sm:$0xff]
    %v2003 = vld [vmem:[%s4 + $0xe0] sm:$0xff]
    %v2004 = vld [vmem:[%s4 + $0xe8] sm:$0xff]
    %v2005 = vld [vmem:[%s4 + $0xf0] sm:$0xff]
    %v2006 = vld [vmem:[%s4 + $0xf8] sm:$0xff]
    %v2007 = vld [vmem:[%s4 + $0x100] sm:$0xff]
    %v2008 = vld [vmem:[%s4 + $0x108] sm:$0xff]
    %v2009 = vld [vmem:[%s4 + $0x110] sm:$0xff]
    %v2010 = vld [vmem:[%s4 + $0x118] sm:$0xff]
    %v2011 = vld [vmem:[%s4 + $0x120] sm:$0xff]
    %v2012 = vld [vmem:[%s4 + $0x128] sm:$0xff]
    %v2013 = vld [vmem:[%s4 + $0x130] sm:$0xff]
    %v2014 = vld [vmem:[%s4 + $0x138] sm:$0xff]
    %v2015 = vld [vmem:[%s4 + $0x140] sm:$0xff]
    %v2016 = vld [vmem:[%s4 + $0x148] sm:$0xff]
    %v2017 = vld [vmem:[%s4 + $0x150] sm:$0xff]
    %v2018 = vld [vmem:[%s4 + $0x158] sm:$0xff]
    %v2019 = vld [vmem:[%s4 + $0x160] sm:$0xff]
    %v2020 = vld [vmem:[%s4 + $0x168] sm:$0xff]
    %v2021 = vld [vmem:[%s4 + $0x170] sm:$0xff]
    %v2022 = vld [vmem:[%s4 + $0x178] sm:$0xff]
    %v2023 = vld [vmem:[%s4 + $0x180] sm:$0xff]
    %v2024 = vld [vmem:[%s4 + $0x188] sm:$0xff]
    %v2025 = vld [vmem:[%s5] sm:$0x1]
    %v2027 = vperm.slane %v2025, 0
    %v2030 = vsel %vm1603, %v1974, 0
    %2032 = vmatpush.msra.mxu0 %v1990
    %2033 = vmatpush.msra.mxu0 %v1989
    %2034 = vmatpush.msra.mxu0 %v1988
    %2035 = vmatpush.msra.mxu0 %v1987
    %2036 = vmatpush.msra.mxu0 %v1986
    %2037 = vmatpush.msra.mxu0 %v1985
    %2038 = vmatpush.msra.mxu0 %v1984
    %2039 = vmatpush.msra.mxu0 %v1983
    %2040 = vmatpush.msra.mxu0 %v1982
    %2041 = vmatpush.msra.mxu0 %v1981
    %2042 = vmatpush.msra.mxu0 %v1980
    %2043 = vmatpush.msra.mxu0 %v1979
    %2044 = vmatpush.msra.mxu0 %v1978
    %2045 = vmatpush.msra.mxu0 %v1977
    %2046 = vmatpush.msra.mxu0 %v1976
    %2047 = vmatpush.msra.mxu0 %v1975
    %2048 = vmatmul.f32.gmra.mxu0 %v1971
    %v2049 = vpop.f32.mrf.mxu0
    %v2050 = vadd.f32 %v2027, %v2049
    %2051 = vdwg.mxu0
    %2052 = vmatpush.msra.mxu0 %v2006
    %2053 = vmatpush.msra.mxu0 %v2005
    %2054 = vmatpush.msra.mxu0 %v2004
    %2055 = vmatpush.msra.mxu0 %v2003
    %2056 = vmatpush.msra.mxu0 %v2002
    %2057 = vmatpush.msra.mxu0 %v2001
    %2058 = vmatpush.msra.mxu0 %v2000
    %2059 = vmatpush.msra.mxu0 %v1999
    %2060 = vmatpush.msra.mxu0 %v1998
    %2061 = vmatpush.msra.mxu0 %v1997
    %2062 = vmatpush.msra.mxu0 %v1996
    %2063 = vmatpush.msra.mxu0 %v1995
    %2064 = vmatpush.msra.mxu0 %v1994
    %2065 = vmatpush.msra.mxu0 %v1993
    %2066 = vmatpush.msra.mxu0 %v1992
    %2067 = vmatpush.msra.mxu0 %v1991
    %2068 = vmatmul.f32.gmra.mxu0 %v1972
    %v2069 = vpop.f32.mrf.mxu0
    %v2070 = vadd.f32 %v2050, %v2069
    %2071 = vdwg.mxu0
    %2072 = vmatpush.msra.mxu0 %v2022
    %2073 = vmatpush.msra.mxu0 %v2021
    %2074 = vmatpush.msra.mxu0 %v2020
    %2075 = vmatpush.msra.mxu0 %v2019
    %2076 = vmatpush.msra.mxu0 %v2018
    %2077 = vmatpush.msra.mxu0 %v2017
    %2078 = vmatpush.msra.mxu0 %v2016
    %2079 = vmatpush.msra.mxu0 %v2015
    %2080 = vmatpush.msra.mxu0 %v2014
    %2081 = vmatpush.msra.mxu0 %v2013
    %2082 = vmatpush.msra.mxu0 %v2012
    %2083 = vmatpush.msra.mxu0 %v2011
    %2084 = vmatpush.msra.mxu0 %v2010
    %2085 = vmatpush.msra.mxu0 %v2009
    %2086 = vmatpush.msra.mxu0 %v2008
    %2087 = vmatpush.msra.mxu0 %v2007
    %2088 = vmatmul.f32.gmra.mxu0 %v1973
    %v2089 = vpop.f32.mrf.mxu0
    %v2090 = vadd.f32 %v2070, %v2089
    %2091 = vdwg.mxu0
    %2092 = vmatpush.msra.mxu0 0.0
    %2093 = vmatpush.msra.mxu0 0.0
    %2094 = vmatpush.msra.mxu0 0.0
    %2095 = vmatpush.msra.mxu0 0.0
    %2096 = vmatpush.msra.mxu0 0.0
    %2097 = vmatpush.msra.mxu0 0.0
    %2098 = vmatpush.msra.mxu0 0.0
    %2099 = vmatpush.msra.mxu0 0.0
    %2100 = vmatpush.msra.mxu0 0.0
    %2101 = vmatpush.msra.mxu0 0.0
    %2102 = vmatpush.msra.mxu0 0.0
    %2103 = vmatpush.msra.mxu0 0.0
    %2104 = vmatpush.msra.mxu0 0.0
    %2105 = vmatpush.msra.mxu0 0.0
    %2106 = vmatpush.msra.mxu0 %v2024
    %2107 = vmatpush.msra.mxu0 %v2023
    %2108 = vmatmul.f32.gmra.mxu0 %v2030
    %v2109 = vpop.f32.mrf.mxu0
    %v2110 = vadd.f32 %v2090, %v2109
    %2111 = vdwg.mxu0
    %v2112 = vmul.f32 %v2110, 0.5
    %v2113 = vmul.f32 %v2112, 1.442695
    %v2114 = vpow.pop %v2113
    %v2115 = vld [vmem:[%s1] sm:$0xff]
    %2117 = vrot.lane.b32.xlu0 %v2115, 2
    %v2118 = vpop.permute.xlu0 %2117
    %v2120 = vmul.f32 %v2114, %v2118
    %2122 = vrot.lane.b32.xlu0 %v2120, 126
    %v2123 = vpop.permute.xlu0 %2122
    %v2125 = vadd.f32 %v2110, %v2123
    %v2126 = vld [vmem:[%s6] ss:$2 sm:$0xf]
    %2128 = vset.pattern.permute.xlu0 0
    %2129 = vperm.xlu0 %2128, %v2125
    %v2130 = vpop.permute.xlu0 %2129
    %v2133 = vperm.slane %v2126, 0
    %v2134 = vperm.slane %v2126, 1
    %v2135 = vperm.slane %v2126, 2
    %v2136 = vperm.slane %v2126, 3
    %v2141 = vmul.f32 %v2130, %v2133
    %v2142 = vmul.f32 %v2130, %v2134
    %v2143 = vmul.f32 %v2130, %v2135
    %v2144 = vmul.f32 %v2130, %v2136
    %s2145 = scalar_lea.vmem %s6, 1
    %v2146 = vld [vmem:[%s2145] ss:$2 sm:$0xf]
    %2147 = vset.pattern.permute.xlu0 1
    %2148 = vperm.xlu0 %2147, %v2125
    %v2149 = vpop.permute.xlu0 %2148
    %v2152 = vperm.slane %v2146, 0
    %v2153 = vperm.slane %v2146, 1
    %v2154 = vperm.slane %v2146, 2
    %v2155 = vperm.slane %v2146, 3
    %v2160 = vmul.f32 %v2149, %v2152
    %v2161 = vmul.f32 %v2149, %v2153
    %v2162 = vmul.f32 %v2149, %v2154
    %v2163 = vmul.f32 %v2149, %v2155
    %v2164 = vadd.f32 %v2141, %v2160
    %v2165 = vadd.f32 %v2142, %v2161
    %v2166 = vadd.f32 %v2143, %v2162
    %v2167 = vadd.f32 %v2144, %v2163
    %v2168 = vld [vmem:[%s7] sm:$0xf]
    %v2170 = vperm.slane %v2168, 0
    %v2171 = vperm.slane %v2168, 1
    %v2172 = vperm.slane %v2168, 2
    %v2173 = vperm.slane %v2168, 3
    %v2178 = vadd.f32 %v2164, %v2170
    %v2179 = vadd.f32 %v2165, %v2171
    %v2180 = vadd.f32 %v2166, %v2172
    %v2181 = vadd.f32 %v2167, %v2173
    %v2182 = vmax.f32 %v2178, 0.0
    %v2183 = vmax.f32 %v2179, 0.0
    %v2184 = vmax.f32 %v2180, 0.0
    %v2185 = vmax.f32 %v2181, 0.0
    %s2186 = smul.u32 4, 50
    %s2187 = smul.u32 %s2186, 7
    %s2188 = sshll.u32 %s2187, 4
    %2189 = dma.done [#allocation3], %s2188
    %v2190 = vpack.c.bf16 %v2182, %v2182
    %v2191 = vpack.c.bf16 %v2183, %v2183
    %v2192 = vpack.c.bf16 %v2184, %v2184
    %v2193 = vpack.c.bf16 %v2185, %v2185
    %v2194 = vld [vmem:[#allocation2] sm:$0xff]
    %v2195 = vld [vmem:[#allocation2 + $0x8] sm:$0xff]
    %v2196 = vld [vmem:[#allocation2 + $0x10] sm:$0xff]
    %v2197 = vld [vmem:[#allocation2 + $0x18] sm:$0xf]
    %v2198 = vld [vmem:[#allocation2 + $0x1c] sm:$0xff]
    %v2199 = vld [vmem:[#allocation2 + $0x24] sm:$0xff]
    %v2200 = vld [vmem:[#allocation2 + $0x2c] sm:$0xff]
    %v2201 = vld [vmem:[#allocation2 + $0x34] sm:$0xf]
    %v2202 = vld [vmem:[#allocation2 + $0x38] sm:$0xff]
    %v2203 = vld [vmem:[#allocation2 + $0x40] sm:$0xff]
    %v2204 = vld [vmem:[#allocation2 + $0x48] sm:$0xff]
    %v2205 = vld [vmem:[#allocation2 + $0x50] sm:$0xf]
    %v2206 = vld [vmem:[#allocation2 + $0x54] sm:$0xff]
    %v2207 = vld [vmem:[#allocation2 + $0x5c] sm:$0xff]
    %v2208 = vld [vmem:[#allocation2 + $0x64] sm:$0xff]
    %v2209 = vld [vmem:[#allocation2 + $0x6c] sm:$0xf]
    %v2210 = vld [vmem:[#allocation2 + $0x70] sm:$0xff]
    %v2211 = vld [vmem:[#allocation2 + $0x78] sm:$0xff]
    %v2212 = vld [vmem:[#allocation2 + $0x80] sm:$0xff]
    %v2213 = vld [vmem:[#allocation2 + $0x88] sm:$0xf]
    %v2214 = vld [vmem:[#allocation2 + $0x8c] sm:$0xff]
    %v2215 = vld [vmem:[#allocation2 + $0x94] sm:$0xff]
    %v2216 = vld [vmem:[#allocation2 + $0x9c] sm:$0xff]
    %v2217 = vld [vmem:[#allocation2 + $0xa4] sm:$0xf]
    %v2218 = vld [vmem:[#allocation2 + $0xa8] sm:$0xff]
    %v2219 = vld [vmem:[#allocation2 + $0xb0] sm:$0xff]
    %v2220 = vld [vmem:[#allocation2 + $0xb8] sm:$0xff]
    %v2221 = vld [vmem:[#allocation2 + $0xc0] sm:$0xf]
    %v2222 = vld [vmem:[#allocation2 + $0xc4] sm:$0xff]
    %v2223 = vld [vmem:[#allocation2 + $0xcc] sm:$0xff]
    %v2224 = vld [vmem:[#allocation2 + $0xd4] sm:$0xff]
    %v2225 = vld [vmem:[#allocation2 + $0xdc] sm:$0xf]
    %v2226 = vld [vmem:[#allocation2 + $0xe0] sm:$0xff]
    %v2227 = vld [vmem:[#allocation2 + $0xe8] sm:$0xff]
    %v2228 = vld [vmem:[#allocation2 + $0xf0] sm:$0xff]
    %v2229 = vld [vmem:[#allocation2 + $0xf8] sm:$0xf]
    %v2230 = vld [vmem:[#allocation2 + $0xfc] sm:$0xff]
    %v2231 = vld [vmem:[#allocation2 + $0x104] sm:$0xff]
    %v2232 = vld [vmem:[#allocation2 + $0x10c] sm:$0xff]
    %v2233 = vld [vmem:[#allocation2 + $0x114] sm:$0xf]
    %v2234 = vld [vmem:[#allocation2 + $0x118] sm:$0xff]
    %v2235 = vld [vmem:[#allocation2 + $0x120] sm:$0xff]
    %v2236 = vld [vmem:[#allocation2 + $0x128] sm:$0xff]
    %v2237 = vld [vmem:[#allocation2 + $0x130] sm:$0xf]
    %v2238 = vld [vmem:[#allocation2 + $0x134] sm:$0xff]
    %v2239 = vld [vmem:[#allocation2 + $0x13c] sm:$0xff]
    %v2240 = vld [vmem:[#allocation2 + $0x144] sm:$0xff]
    %v2241 = vld [vmem:[#allocation2 + $0x14c] sm:$0xf]
    %v2242 = vld [vmem:[#allocation2 + $0x150] sm:$0xff]
    %v2243 = vld [vmem:[#allocation2 + $0x158] sm:$0xff]
    %v2244 = vld [vmem:[#allocation2 + $0x160] sm:$0xff]
    %v2245 = vld [vmem:[#allocation2 + $0x168] sm:$0xf]
    %v2246 = vld [vmem:[#allocation2 + $0x16c] sm:$0xff]
    %v2247 = vld [vmem:[#allocation2 + $0x174] sm:$0xff]
    %v2248 = vld [vmem:[#allocation2 + $0x17c] sm:$0xff]
    %v2249 = vld [vmem:[#allocation2 + $0x184] sm:$0xf]
    %v2250 = vld [vmem:[#allocation2 + $0x188] sm:$0xff]
    %v2251 = vld [vmem:[#allocation2 + $0x190] sm:$0xff]
    %v2252 = vld [vmem:[#allocation2 + $0x198] sm:$0xff]
    %v2253 = vld [vmem:[#allocation2 + $0x1a0] sm:$0xf]
    %v2254 = vld [vmem:[#allocation2 + $0x1a4] sm:$0xff]
    %v2255 = vld [vmem:[#allocation2 + $0x1ac] sm:$0xff]
    %v2256 = vld [vmem:[#allocation2 + $0x1b4] sm:$0xff]
    %v2257 = vld [vmem:[#allocation2 + $0x1bc] sm:$0xf]
    %v2258 = vld [vmem:[#allocation2 + $0x1c0] sm:$0xff]
    %v2259 = vld [vmem:[#allocation2 + $0x1c8] sm:$0xff]
    %v2260 = vld [vmem:[#allocation2 + $0x1d0] sm:$0xff]
    %v2261 = vld [vmem:[#allocation2 + $0x1d8] sm:$0xf]
    %v2262 = vld [vmem:[#allocation2 + $0x1dc] sm:$0xff]
    %v2263 = vld [vmem:[#allocation2 + $0x1e4] sm:$0xff]
    %v2264 = vld [vmem:[#allocation2 + $0x1ec] sm:$0xff]
    %v2265 = vld [vmem:[#allocation2 + $0x1f4] sm:$0xf]
    %v2266 = vld [vmem:[#allocation2 + $0x1f8] sm:$0xff]
    %v2267 = vld [vmem:[#allocation2 + $0x200] sm:$0xff]
    %v2268 = vld [vmem:[#allocation2 + $0x208] sm:$0xff]
    %v2269 = vld [vmem:[#allocation2 + $0x210] sm:$0xf]
    %v2270 = vld [vmem:[#allocation2 + $0x214] sm:$0xff]
    %v2271 = vld [vmem:[#allocation2 + $0x21c] sm:$0xff]
    %v2272 = vld [vmem:[#allocation2 + $0x224] sm:$0xff]
    %v2273 = vld [vmem:[#allocation2 + $0x22c] sm:$0xf]
    %v2274 = vld [vmem:[#allocation2 + $0x230] sm:$0xff]
    %v2275 = vld [vmem:[#allocation2 + $0x238] sm:$0xff]
    %v2276 = vld [vmem:[#allocation2 + $0x240] sm:$0xff]
    %v2277 = vld [vmem:[#allocation2 + $0x248] sm:$0xf]
    %v2278 = vld [vmem:[#allocation2 + $0x24c] sm:$0xff]
    %v2279 = vld [vmem:[#allocation2 + $0x254] sm:$0xff]
    %v2280 = vld [vmem:[#allocation2 + $0x25c] sm:$0xff]
    %v2281 = vld [vmem:[#allocation2 + $0x264] sm:$0xf]
    %v2282 = vld [vmem:[#allocation2 + $0x268] sm:$0xff]
    %v2283 = vld [vmem:[#allocation2 + $0x270] sm:$0xff]
    %v2284 = vld [vmem:[#allocation2 + $0x278] sm:$0xff]
    %v2285 = vld [vmem:[#allocation2 + $0x280] sm:$0xf]
    %v2286 = vld [vmem:[#allocation2 + $0x284] sm:$0xff]
    %v2287 = vld [vmem:[#allocation2 + $0x28c] sm:$0xff]
    %v2288 = vld [vmem:[#allocation2 + $0x294] sm:$0xff]
    %v2289 = vld [vmem:[#allocation2 + $0x29c] sm:$0xf]
    %v2290 = vld [vmem:[#allocation2 + $0x2a0] sm:$0xff]
    %v2291 = vld [vmem:[#allocation2 + $0x2a8] sm:$0xff]
    %v2292 = vld [vmem:[#allocation2 + $0x2b0] sm:$0xff]
    %v2293 = vld [vmem:[#allocation2 + $0x2b8] sm:$0xf]
    %v2294 = vld [vmem:[#allocation2 + $0x2bc] sm:$0xff]
    %v2295 = vld [vmem:[#allocation2 + $0x2c4] sm:$0xff]
    %v2296 = vld [vmem:[#allocation2 + $0x2cc] sm:$0xff]
    %v2297 = vld [vmem:[#allocation2 + $0x2d4] sm:$0xf]
    %v2298 = vld [vmem:[#allocation2 + $0x2d8] sm:$0xff]
    %v2299 = vld [vmem:[#allocation2 + $0x2e0] sm:$0xff]
    %v2300 = vld [vmem:[#allocation2 + $0x2e8] sm:$0xff]
    %v2301 = vld [vmem:[#allocation2 + $0x2f0] sm:$0xf]
    %v2302 = vld [vmem:[#allocation2 + $0x2f4] sm:$0xff]
    %v2303 = vld [vmem:[#allocation2 + $0x2fc] sm:$0xff]
    %v2304 = vld [vmem:[#allocation2 + $0x304] sm:$0xff]
    %v2305 = vld [vmem:[#allocation2 + $0x30c] sm:$0xf]
    %v2306 = vld [vmem:[#allocation2 + $0x310] sm:$0xff]
    %v2307 = vld [vmem:[#allocation2 + $0x318] sm:$0xff]
    %v2308 = vld [vmem:[#allocation2 + $0x320] sm:$0xff]
    %v2309 = vld [vmem:[#allocation2 + $0x328] sm:$0xf]
    %v2310 = vld [vmem:[#allocation2 + $0x32c] sm:$0xff]
    %v2311 = vld [vmem:[#allocation2 + $0x334] sm:$0xff]
    %v2312 = vld [vmem:[#allocation2 + $0x33c] sm:$0xff]
    %v2313 = vld [vmem:[#allocation2 + $0x344] sm:$0xf]
    %v2314 = vld [vmem:[#allocation2 + $0x348] sm:$0xff]
    %v2315 = vld [vmem:[#allocation2 + $0x350] sm:$0xff]
    %v2316 = vld [vmem:[#allocation2 + $0x358] sm:$0xff]
    %v2317 = vld [vmem:[#allocation2 + $0x360] sm:$0xf]
    %v2318 = vld [vmem:[#allocation2 + $0x364] sm:$0xff]
    %v2319 = vld [vmem:[#allocation2 + $0x36c] sm:$0xff]
    %v2320 = vld [vmem:[#allocation2 + $0x374] sm:$0xff]
    %v2321 = vld [vmem:[#allocation2 + $0x37c] sm:$0xf]
    %v2322 = vld [vmem:[#allocation2 + $0x380] sm:$0xff]
    %v2323 = vld [vmem:[#allocation2 + $0x388] sm:$0xff]
    %v2324 = vld [vmem:[#allocation2 + $0x390] sm:$0xff]
    %v2325 = vld [vmem:[#allocation2 + $0x398] sm:$0xf]
    %v2326 = vld [vmem:[#allocation2 + $0x39c] sm:$0xff]
    %v2327 = vld [vmem:[#allocation2 + $0x3a4] sm:$0xff]
    %v2328 = vld [vmem:[#allocation2 + $0x3ac] sm:$0xff]
    %v2329 = vld [vmem:[#allocation2 + $0x3b4] sm:$0xf]
    %v2330 = vld [vmem:[#allocation2 + $0x3b8] sm:$0xff]
    %v2331 = vld [vmem:[#allocation2 + $0x3c0] sm:$0xff]
    %v2332 = vld [vmem:[#allocation2 + $0x3c8] sm:$0xff]
    %v2333 = vld [vmem:[#allocation2 + $0x3d0] sm:$0xf]
    %v2334 = vld [vmem:[#allocation2 + $0x3d4] sm:$0xff]
    %v2335 = vld [vmem:[#allocation2 + $0x3dc] sm:$0xff]
    %v2336 = vld [vmem:[#allocation2 + $0x3e4] sm:$0xff]
    %v2337 = vld [vmem:[#allocation2 + $0x3ec] sm:$0xf]
    %v2338 = vld [vmem:[#allocation2 + $0x3f0] sm:$0xff]
    %v2339 = vld [vmem:[#allocation2 + $0x3f8] sm:$0xff]
    %v2340 = vld [vmem:[#allocation2 + $0x400] sm:$0xff]
    %v2341 = vld [vmem:[#allocation2 + $0x408] sm:$0xf]
    %v2342 = vld [vmem:[#allocation2 + $0x40c] sm:$0xff]
    %v2343 = vld [vmem:[#allocation2 + $0x414] sm:$0xff]
    %v2344 = vld [vmem:[#allocation2 + $0x41c] sm:$0xff]
    %v2345 = vld [vmem:[#allocation2 + $0x424] sm:$0xf]
    %v2346 = vld [vmem:[#allocation2 + $0x428] sm:$0xff]
    %v2347 = vld [vmem:[#allocation2 + $0x430] sm:$0xff]
    %v2348 = vld [vmem:[#allocation2 + $0x438] sm:$0xff]
    %v2349 = vld [vmem:[#allocation2 + $0x440] sm:$0xf]
    %v2350 = vld [vmem:[#allocation2 + $0x444] sm:$0xff]
    %v2351 = vld [vmem:[#allocation2 + $0x44c] sm:$0xff]
    %v2352 = vld [vmem:[#allocation2 + $0x454] sm:$0xff]
    %v2353 = vld [vmem:[#allocation2 + $0x45c] sm:$0xf]
    %v2354 = vld [vmem:[#allocation2 + $0x460] sm:$0xff]
    %v2355 = vld [vmem:[#allocation2 + $0x468] sm:$0xff]
    %v2356 = vld [vmem:[#allocation2 + $0x470] sm:$0xff]
    %v2357 = vld [vmem:[#allocation2 + $0x478] sm:$0xf]
    %v2358 = vld [vmem:[#allocation2 + $0x47c] sm:$0xff]
    %v2359 = vld [vmem:[#allocation2 + $0x484] sm:$0xff]
    %v2360 = vld [vmem:[#allocation2 + $0x48c] sm:$0xff]
    %v2361 = vld [vmem:[#allocation2 + $0x494] sm:$0xf]
    %v2362 = vld [vmem:[#allocation2 + $0x498] sm:$0xff]
    %v2363 = vld [vmem:[#allocation2 + $0x4a0] sm:$0xff]
    %v2364 = vld [vmem:[#allocation2 + $0x4a8] sm:$0xff]
    %v2365 = vld [vmem:[#allocation2 + $0x4b0] sm:$0xf]
    %v2366 = vld [vmem:[#allocation2 + $0x4b4] sm:$0xff]
    %v2367 = vld [vmem:[#allocation2 + $0x4bc] sm:$0xff]
    %v2368 = vld [vmem:[#allocation2 + $0x4c4] sm:$0xff]
    %v2369 = vld [vmem:[#allocation2 + $0x4cc] sm:$0xf]
    %v2370 = vld [vmem:[#allocation2 + $0x4d0] sm:$0xff]
    %v2371 = vld [vmem:[#allocation2 + $0x4d8] sm:$0xff]
    %v2372 = vld [vmem:[#allocation2 + $0x4e0] sm:$0xff]
    %v2373 = vld [vmem:[#allocation2 + $0x4e8] sm:$0xf]
    %v2374 = vld [vmem:[#allocation2 + $0x4ec] sm:$0xff]
    %v2375 = vld [vmem:[#allocation2 + $0x4f4] sm:$0xff]
    %v2376 = vld [vmem:[#allocation2 + $0x4fc] sm:$0xff]
    %v2377 = vld [vmem:[#allocation2 + $0x504] sm:$0xf]
    %v2378 = vld [vmem:[#allocation2 + $0x508] sm:$0xff]
    %v2379 = vld [vmem:[#allocation2 + $0x510] sm:$0xff]
    %v2380 = vld [vmem:[#allocation2 + $0x518] sm:$0xff]
    %v2381 = vld [vmem:[#allocation2 + $0x520] sm:$0xf]
    %v2382 = vld [vmem:[#allocation2 + $0x524] sm:$0xff]
    %v2383 = vld [vmem:[#allocation2 + $0x52c] sm:$0xff]
    %v2384 = vld [vmem:[#allocation2 + $0x534] sm:$0xff]
    %v2385 = vld [vmem:[#allocation2 + $0x53c] sm:$0xf]
    %v2386 = vld [vmem:[#allocation2 + $0x540] sm:$0xff]
    %v2387 = vld [vmem:[#allocation2 + $0x548] sm:$0xff]
    %v2388 = vld [vmem:[#allocation2 + $0x550] sm:$0xff]
    %v2389 = vld [vmem:[#allocation2 + $0x558] sm:$0xf]
    %v2390 = vld [vmem:[#allocation2 + $0x55c] sm:$0xff]
    %v2391 = vld [vmem:[#allocation2 + $0x564] sm:$0xff]
    %v2392 = vld [vmem:[#allocation2 + $0x56c] sm:$0xff]
    %v2393 = vld [vmem:[#allocation2 + $0x574] sm:$0xf]
    %v2394 = vld [vmem:[%s9] sm:$0x7f]
    %v2396 = vperm.slane %v2394, 0
    %v2397 = vperm.slane %v2394, 1
    %v2398 = vperm.slane %v2394, 2
    %v2399 = vperm.slane %v2394, 3
    %v2400 = vperm.slane %v2394, 4
    %v2401 = vperm.slane %v2394, 5
    %v2402 = vperm.slane %v2394, 6
    %v2610 = vunpack.c.l.b16 %v2194
    %v2611 = vunpack.c.h.b16 %v2194
    %v2612 = vunpack.c.l.b16 %v2195
    %v2613 = vunpack.c.h.b16 %v2195
    %v2614 = vunpack.c.l.b16 %v2196
    %v2615 = vunpack.c.h.b16 %v2196
    %v2616 = vunpack.c.l.b16 %v2197
    %v2617 = vunpack.c.l.b16 %v2198
    %v2618 = vunpack.c.h.b16 %v2198
    %v2619 = vunpack.c.l.b16 %v2199
    %v2620 = vunpack.c.h.b16 %v2199
    %v2621 = vunpack.c.l.b16 %v2200
    %v2622 = vunpack.c.h.b16 %v2200
    %v2623 = vunpack.c.l.b16 %v2201
    %v2624 = vunpack.c.l.b16 %v2202
    %v2625 = vunpack.c.h.b16 %v2202
    %v2626 = vunpack.c.l.b16 %v2203
    %v2627 = vunpack.c.h.b16 %v2203
    %v2628 = vunpack.c.l.b16 %v2204
    %v2629 = vunpack.c.h.b16 %v2204
    %v2630 = vunpack.c.l.b16 %v2205
    %v2631 = vunpack.c.l.b16 %v2206
    %v2632 = vunpack.c.h.b16 %v2206
    %v2633 = vunpack.c.l.b16 %v2207
    %v2634 = vunpack.c.h.b16 %v2207
    %v2635 = vunpack.c.l.b16 %v2208
    %v2636 = vunpack.c.h.b16 %v2208
    %v2637 = vunpack.c.l.b16 %v2209
    %v2638 = vunpack.c.l.b16 %v2210
    %v2639 = vunpack.c.h.b16 %v2210
    %v2640 = vunpack.c.l.b16 %v2211
    %v2641 = vunpack.c.h.b16 %v2211
    %v2642 = vunpack.c.l.b16 %v2212
    %v2643 = vunpack.c.h.b16 %v2212
    %v2644 = vunpack.c.l.b16 %v2213
    %v2645 = vunpack.c.l.b16 %v2214
    %v2646 = vunpack.c.h.b16 %v2214
    %v2647 = vunpack.c.l.b16 %v2215
    %v2648 = vunpack.c.h.b16 %v2215
    %v2649 = vunpack.c.l.b16 %v2216
    %v2650 = vunpack.c.h.b16 %v2216
    %v2651 = vunpack.c.l.b16 %v2217
    %v2652 = vunpack.c.l.b16 %v2218
    %v2653 = vunpack.c.h.b16 %v2218
    %v2654 = vunpack.c.l.b16 %v2219
    %v2655 = vunpack.c.h.b16 %v2219
    %v2656 = vunpack.c.l.b16 %v2220
    %v2657 = vunpack.c.h.b16 %v2220
    %v2658 = vunpack.c.l.b16 %v2221
    %v2659 = vunpack.c.l.b16 %v2222
    %v2660 = vunpack.c.h.b16 %v2222
    %v2661 = vunpack.c.l.b16 %v2223
    %v2662 = vunpack.c.h.b16 %v2223
    %v2663 = vunpack.c.l.b16 %v2224
    %v2664 = vunpack.c.h.b16 %v2224
    %v2665 = vunpack.c.l.b16 %v2225
    %v2666 = vunpack.c.l.b16 %v2226
    %v2667 = vunpack.c.h.b16 %v2226
    %v2668 = vunpack.c.l.b16 %v2227
    %v2669 = vunpack.c.h.b16 %v2227
    %v2670 = vunpack.c.l.b16 %v2228
    %v2671 = vunpack.c.h.b16 %v2228
    %v2672 = vunpack.c.l.b16 %v2229
    %v2673 = vunpack.c.l.b16 %v2230
    %v2674 = vunpack.c.h.b16 %v2230
    %v2675 = vunpack.c.l.b16 %v2231
    %v2676 = vunpack.c.h.b16 %v2231
    %v2677 = vunpack.c.l.b16 %v2232
    %v2678 = vunpack.c.h.b16 %v2232
    %v2679 = vunpack.c.l.b16 %v2233
    %v2680 = vunpack.c.l.b16 %v2234
    %v2681 = vunpack.c.h.b16 %v2234
    %v2682 = vunpack.c.l.b16 %v2235
    %v2683 = vunpack.c.h.b16 %v2235
    %v2684 = vunpack.c.l.b16 %v2236
    %v2685 = vunpack.c.h.b16 %v2236
    %v2686 = vunpack.c.l.b16 %v2237
    %v2687 = vunpack.c.l.b16 %v2238
    %v2688 = vunpack.c.h.b16 %v2238
    %v2689 = vunpack.c.l.b16 %v2239
    %v2690 = vunpack.c.h.b16 %v2239
    %v2691 = vunpack.c.l.b16 %v2240
    %v2692 = vunpack.c.h.b16 %v2240
    %v2693 = vunpack.c.l.b16 %v2241
    %v2694 = vunpack.c.l.b16 %v2242
    %v2695 = vunpack.c.h.b16 %v2242
    %v2696 = vunpack.c.l.b16 %v2243
    %v2697 = vunpack.c.h.b16 %v2243
    %v2698 = vunpack.c.l.b16 %v2244
    %v2699 = vunpack.c.h.b16 %v2244
    %v2700 = vunpack.c.l.b16 %v2245
    %v2701 = vunpack.c.l.b16 %v2246
    %v2702 = vunpack.c.h.b16 %v2246
    %v2703 = vunpack.c.l.b16 %v2247
    %v2704 = vunpack.c.h.b16 %v2247
    %v2705 = vunpack.c.l.b16 %v2248
    %v2706 = vunpack.c.h.b16 %v2248
    %v2707 = vunpack.c.l.b16 %v2249
    %v2708 = vunpack.c.l.b16 %v2250
    %v2709 = vunpack.c.h.b16 %v2250
    %v2710 = vunpack.c.l.b16 %v2251
    %v2711 = vunpack.c.h.b16 %v2251
    %v2712 = vunpack.c.l.b16 %v2252
    %v2713 = vunpack.c.h.b16 %v2252
    %v2714 = vunpack.c.l.b16 %v2253
    %v2715 = vunpack.c.l.b16 %v2254
    %v2716 = vunpack.c.h.b16 %v2254
    %v2717 = vunpack.c.l.b16 %v2255
    %v2718 = vunpack.c.h.b16 %v2255
    %v2719 = vunpack.c.l.b16 %v2256
    %v2720 = vunpack.c.h.b16 %v2256
    %v2721 = vunpack.c.l.b16 %v2257
    %v2722 = vunpack.c.l.b16 %v2258
    %v2723 = vunpack.c.h.b16 %v2258
    %v2724 = vunpack.c.l.b16 %v2259
    %v2725 = vunpack.c.h.b16 %v2259
    %v2726 = vunpack.c.l.b16 %v2260
    %v2727 = vunpack.c.h.b16 %v2260
    %v2728 = vunpack.c.l.b16 %v2261
    %v2729 = vunpack.c.l.b16 %v2262
    %v2730 = vunpack.c.h.b16 %v2262
    %v2731 = vunpack.c.l.b16 %v2263
    %v2732 = vunpack.c.h.b16 %v2263
    %v2733 = vunpack.c.l.b16 %v2264
    %v2734 = vunpack.c.h.b16 %v2264
    %v2735 = vunpack.c.l.b16 %v2265
    %v2736 = vunpack.c.l.b16 %v2266
    %v2737 = vunpack.c.h.b16 %v2266
    %v2738 = vunpack.c.l.b16 %v2267
    %v2739 = vunpack.c.h.b16 %v2267
    %v2740 = vunpack.c.l.b16 %v2268
    %v2741 = vunpack.c.h.b16 %v2268
    %v2742 = vunpack.c.l.b16 %v2269
    %v2743 = vunpack.c.l.b16 %v2270
    %v2744 = vunpack.c.h.b16 %v2270
    %v2745 = vunpack.c.l.b16 %v2271
    %v2746 = vunpack.c.h.b16 %v2271
    %v2747 = vunpack.c.l.b16 %v2272
    %v2748 = vunpack.c.h.b16 %v2272
    %v2749 = vunpack.c.l.b16 %v2273
    %v2750 = vunpack.c.l.b16 %v2274
    %v2751 = vunpack.c.h.b16 %v2274
    %v2752 = vunpack.c.l.b16 %v2275
    %v2753 = vunpack.c.h.b16 %v2275
    %v2754 = vunpack.c.l.b16 %v2276
    %v2755 = vunpack.c.h.b16 %v2276
    %v2756 = vunpack.c.l.b16 %v2277
    %v2757 = vunpack.c.l.b16 %v2278
    %v2758 = vunpack.c.h.b16 %v2278
    %v2759 = vunpack.c.l.b16 %v2279
    %v2760 = vunpack.c.h.b16 %v2279
    %v2761 = vunpack.c.l.b16 %v2280
    %v2762 = vunpack.c.h.b16 %v2280
    %v2763 = vunpack.c.l.b16 %v2281
    %v2764 = vunpack.c.l.b16 %v2282
    %v2765 = vunpack.c.h.b16 %v2282
    %v2766 = vunpack.c.l.b16 %v2283
    %v2767 = vunpack.c.h.b16 %v2283
    %v2768 = vunpack.c.l.b16 %v2284
    %v2769 = vunpack.c.h.b16 %v2284
    %v2770 = vunpack.c.l.b16 %v2285
    %v2771 = vunpack.c.l.b16 %v2286
    %v2772 = vunpack.c.h.b16 %v2286
    %v2773 = vunpack.c.l.b16 %v2287
    %v2774 = vunpack.c.h.b16 %v2287
    %v2775 = vunpack.c.l.b16 %v2288
    %v2776 = vunpack.c.h.b16 %v2288
    %v2777 = vunpack.c.l.b16 %v2289
    %v2778 = vunpack.c.l.b16 %v2290
    %v2779 = vunpack.c.h.b16 %v2290
    %v2780 = vunpack.c.l.b16 %v2291
    %v2781 = vunpack.c.h.b16 %v2291
    %v2782 = vunpack.c.l.b16 %v2292
    %v2783 = vunpack.c.h.b16 %v2292
    %v2784 = vunpack.c.l.b16 %v2293
    %v2785 = vunpack.c.l.b16 %v2294
    %v2786 = vunpack.c.h.b16 %v2294
    %v2787 = vunpack.c.l.b16 %v2295
    %v2788 = vunpack.c.h.b16 %v2295
    %v2789 = vunpack.c.l.b16 %v2296
    %v2790 = vunpack.c.h.b16 %v2296
    %v2791 = vunpack.c.l.b16 %v2297
    %v2792 = vunpack.c.l.b16 %v2298
    %v2793 = vunpack.c.h.b16 %v2298
    %v2794 = vunpack.c.l.b16 %v2299
    %v2795 = vunpack.c.h.b16 %v2299
    %v2796 = vunpack.c.l.b16 %v2300
    %v2797 = vunpack.c.h.b16 %v2300
    %v2798 = vunpack.c.l.b16 %v2301
    %v2799 = vunpack.c.l.b16 %v2302
    %v2800 = vunpack.c.h.b16 %v2302
    %v2801 = vunpack.c.l.b16 %v2303
    %v2802 = vunpack.c.h.b16 %v2303
    %v2803 = vunpack.c.l.b16 %v2304
    %v2804 = vunpack.c.h.b16 %v2304
    %v2805 = vunpack.c.l.b16 %v2305
    %v2806 = vunpack.c.l.b16 %v2306
    %v2807 = vunpack.c.h.b16 %v2306
    %v2808 = vunpack.c.l.b16 %v2307
    %v2809 = vunpack.c.h.b16 %v2307
    %v2810 = vunpack.c.l.b16 %v2308
    %v2811 = vunpack.c.h.b16 %v2308
    %v2812 = vunpack.c.l.b16 %v2309
    %v2813 = vunpack.c.l.b16 %v2310
    %v2814 = vunpack.c.h.b16 %v2310
    %v2815 = vunpack.c.l.b16 %v2311
    %v2816 = vunpack.c.h.b16 %v2311
    %v2817 = vunpack.c.l.b16 %v2312
    %v2818 = vunpack.c.h.b16 %v2312
    %v2819 = vunpack.c.l.b16 %v2313
    %v2820 = vunpack.c.l.b16 %v2314
    %v2821 = vunpack.c.h.b16 %v2314
    %v2822 = vunpack.c.l.b16 %v2315
    %v2823 = vunpack.c.h.b16 %v2315
    %v2824 = vunpack.c.l.b16 %v2316
    %v2825 = vunpack.c.h.b16 %v2316
    %v2826 = vunpack.c.l.b16 %v2317
    %v2827 = vunpack.c.l.b16 %v2318
    %v2828 = vunpack.c.h.b16 %v2318
    %v2829 = vunpack.c.l.b16 %v2319
    %v2830 = vunpack.c.h.b16 %v2319
    %v2831 = vunpack.c.l.b16 %v2320
    %v2832 = vunpack.c.h.b16 %v2320
    %v2833 = vunpack.c.l.b16 %v2321
    %v2834 = vunpack.c.l.b16 %v2322
    %v2835 = vunpack.c.h.b16 %v2322
    %v2836 = vunpack.c.l.b16 %v2323
    %v2837 = vunpack.c.h.b16 %v2323
    %v2838 = vunpack.c.l.b16 %v2324
    %v2839 = vunpack.c.h.b16 %v2324
    %v2840 = vunpack.c.l.b16 %v2325
    %v2841 = vunpack.c.l.b16 %v2326
    %v2842 = vunpack.c.h.b16 %v2326
    %v2843 = vunpack.c.l.b16 %v2327
    %v2844 = vunpack.c.h.b16 %v2327
    %v2845 = vunpack.c.l.b16 %v2328
    %v2846 = vunpack.c.h.b16 %v2328
    %v2847 = vunpack.c.l.b16 %v2329
    %v2848 = vunpack.c.l.b16 %v2330
    %v2849 = vunpack.c.h.b16 %v2330
    %v2850 = vunpack.c.l.b16 %v2331
    %v2851 = vunpack.c.h.b16 %v2331
    %v2852 = vunpack.c.l.b16 %v2332
    %v2853 = vunpack.c.h.b16 %v2332
    %v2854 = vunpack.c.l.b16 %v2333
    %v2855 = vunpack.c.l.b16 %v2334
    %v2856 = vunpack.c.h.b16 %v2334
    %v2857 = vunpack.c.l.b16 %v2335
    %v2858 = vunpack.c.h.b16 %v2335
    %v2859 = vunpack.c.l.b16 %v2336
    %v2860 = vunpack.c.h.b16 %v2336
    %v2861 = vunpack.c.l.b16 %v2337
    %v2862 = vunpack.c.l.b16 %v2338
    %v2863 = vunpack.c.h.b16 %v2338
    %v2864 = vunpack.c.l.b16 %v2339
    %v2865 = vunpack.c.h.b16 %v2339
    %v2866 = vunpack.c.l.b16 %v2340
    %v2867 = vunpack.c.h.b16 %v2340
    %v2868 = vunpack.c.l.b16 %v2341
    %v2869 = vunpack.c.l.b16 %v2342
    %v2870 = vunpack.c.h.b16 %v2342
    %v2871 = vunpack.c.l.b16 %v2343
    %v2872 = vunpack.c.h.b16 %v2343
    %v2873 = vunpack.c.l.b16 %v2344
    %v2874 = vunpack.c.h.b16 %v2344
    %v2875 = vunpack.c.l.b16 %v2345
    %v2876 = vunpack.c.l.b16 %v2346
    %v2877 = vunpack.c.h.b16 %v2346
    %v2878 = vunpack.c.l.b16 %v2347
    %v2879 = vunpack.c.h.b16 %v2347
    %v2880 = vunpack.c.l.b16 %v2348
    %v2881 = vunpack.c.h.b16 %v2348
    %v2882 = vunpack.c.l.b16 %v2349
    %v2883 = vunpack.c.l.b16 %v2350
    %v2884 = vunpack.c.h.b16 %v2350
    %v2885 = vunpack.c.l.b16 %v2351
    %v2886 = vunpack.c.h.b16 %v2351
    %v2887 = vunpack.c.l.b16 %v2352
    %v2888 = vunpack.c.h.b16 %v2352
    %v2889 = vunpack.c.l.b16 %v2353
    %v2890 = vunpack.c.l.b16 %v2354
    %v2891 = vunpack.c.h.b16 %v2354
    %v2892 = vunpack.c.l.b16 %v2355
    %v2893 = vunpack.c.h.b16 %v2355
    %v2894 = vunpack.c.l.b16 %v2356
    %v2895 = vunpack.c.h.b16 %v2356
    %v2896 = vunpack.c.l.b16 %v2357
    %v2897 = vunpack.c.l.b16 %v2358
    %v2898 = vunpack.c.h.b16 %v2358
    %v2899 = vunpack.c.l.b16 %v2359
    %v2900 = vunpack.c.h.b16 %v2359
    %v2901 = vunpack.c.l.b16 %v2360
    %v2902 = vunpack.c.h.b16 %v2360
    %v2903 = vunpack.c.l.b16 %v2361
    %v2904 = vunpack.c.l.b16 %v2362
    %v2905 = vunpack.c.h.b16 %v2362
    %v2906 = vunpack.c.l.b16 %v2363
    %v2907 = vunpack.c.h.b16 %v2363
    %v2908 = vunpack.c.l.b16 %v2364
    %v2909 = vunpack.c.h.b16 %v2364
    %v2910 = vunpack.c.l.b16 %v2365
    %v2911 = vunpack.c.l.b16 %v2366
    %v2912 = vunpack.c.h.b16 %v2366
    %v2913 = vunpack.c.l.b16 %v2367
    %v2914 = vunpack.c.h.b16 %v2367
    %v2915 = vunpack.c.l.b16 %v2368
    %v2916 = vunpack.c.h.b16 %v2368
    %v2917 = vunpack.c.l.b16 %v2369
    %v2918 = vunpack.c.l.b16 %v2370
    %v2919 = vunpack.c.h.b16 %v2370
    %v2920 = vunpack.c.l.b16 %v2371
    %v2921 = vunpack.c.h.b16 %v2371
    %v2922 = vunpack.c.l.b16 %v2372
    %v2923 = vunpack.c.h.b16 %v2372
    %v2924 = vunpack.c.l.b16 %v2373
    %v2925 = vunpack.c.l.b16 %v2374
    %v2926 = vunpack.c.h.b16 %v2374
    %v2927 = vunpack.c.l.b16 %v2375
    %v2928 = vunpack.c.h.b16 %v2375
    %v2929 = vunpack.c.l.b16 %v2376
    %v2930 = vunpack.c.h.b16 %v2376
    %v2931 = vunpack.c.l.b16 %v2377
    %v2932 = vunpack.c.l.b16 %v2378
    %v2933 = vunpack.c.h.b16 %v2378
    %v2934 = vunpack.c.l.b16 %v2379
    %v2935 = vunpack.c.h.b16 %v2379
    %v2936 = vunpack.c.l.b16 %v2380
    %v2937 = vunpack.c.h.b16 %v2380
    %v2938 = vunpack.c.l.b16 %v2381
    %v2939 = vunpack.c.l.b16 %v2382
    %v2940 = vunpack.c.h.b16 %v2382
    %v2941 = vunpack.c.l.b16 %v2383
    %v2942 = vunpack.c.h.b16 %v2383
    %v2943 = vunpack.c.l.b16 %v2384
    %v2944 = vunpack.c.h.b16 %v2384
    %v2945 = vunpack.c.l.b16 %v2385
    %v2946 = vunpack.c.l.b16 %v2386
    %v2947 = vunpack.c.h.b16 %v2386
    %v2948 = vunpack.c.l.b16 %v2387
    %v2949 = vunpack.c.h.b16 %v2387
    %v2950 = vunpack.c.l.b16 %v2388
    %v2951 = vunpack.c.h.b16 %v2388
    %v2952 = vunpack.c.l.b16 %v2389
    %v2953 = vunpack.c.l.b16 %v2390
    %v2954 = vunpack.c.h.b16 %v2390
    %v2955 = vunpack.c.l.b16 %v2391
    %v2956 = vunpack.c.h.b16 %v2391
    %v2957 = vunpack.c.l.b16 %v2392
    %v2958 = vunpack.c.h.b16 %v2392
    %v2959 = vunpack.c.l.b16 %v2393
    %v2960 = vpack.c.b16 %v2617, %v2610
    %v2961 = vpack.c.b16 %v2618, %v2611
    %v2962 = vpack.c.b16 %v2619, %v2612
    %v2963 = vpack.c.b16 %v2620, %v2613
    %v2964 = vpack.c.b16 %v2621, %v2614
    %v2965 = vpack.c.b16 %v2622, %v2615
    %v2966 = vpack.c.b16 %v2623, %v2616
    %v2967 = vpack.c.b16 %v2631, %v2624
    %v2968 = vpack.c.b16 %v2632, %v2625
    %v2969 = vpack.c.b16 %v2633, %v2626
    %v2970 = vpack.c.b16 %v2634, %v2627
    %v2971 = vpack.c.b16 %v2635, %v2628
    %v2972 = vpack.c.b16 %v2636, %v2629
    %v2973 = vpack.c.b16 %v2637, %v2630
    %v2974 = vpack.c.b16 %v2645, %v2638
    %v2975 = vpack.c.b16 %v2646, %v2639
    %v2976 = vpack.c.b16 %v2647, %v2640
    %v2977 = vpack.c.b16 %v2648, %v2641
    %v2978 = vpack.c.b16 %v2649, %v2642
    %v2979 = vpack.c.b16 %v2650, %v2643
    %v2980 = vpack.c.b16 %v2651, %v2644
    %v2981 = vpack.c.b16 %v2659, %v2652
    %v2982 = vpack.c.b16 %v2660, %v2653
    %v2983 = vpack.c.b16 %v2661, %v2654
    %v2984 = vpack.c.b16 %v2662, %v2655
    %v2985 = vpack.c.b16 %v2663, %v2656
    %v2986 = vpack.c.b16 %v2664, %v2657
    %v2987 = vpack.c.b16 %v2665, %v2658
    %v2988 = vpack.c.b16 %v2673, %v2666
    %v2989 = vpack.c.b16 %v2674, %v2667
    %v2990 = vpack.c.b16 %v2675, %v2668
    %v2991 = vpack.c.b16 %v2676, %v2669
    %v2992 = vpack.c.b16 %v2677, %v2670
    %v2993 = vpack.c.b16 %v2678, %v2671
    %v2994 = vpack.c.b16 %v2679, %v2672
    %v2995 = vpack.c.b16 %v2687, %v2680
    %v2996 = vpack.c.b16 %v2688, %v2681
    %v2997 = vpack.c.b16 %v2689, %v2682
    %v2998 = vpack.c.b16 %v2690, %v2683
    %v2999 = vpack.c.b16 %v2691, %v2684
    %v3000 = vpack.c.b16 %v2692, %v2685
    %v3001 = vpack.c.b16 %v2693, %v2686
    %v3002 = vpack.c.b16 %v2701, %v2694
    %v3003 = vpack.c.b16 %v2702, %v2695
    %v3004 = vpack.c.b16 %v2703, %v2696
    %v3005 = vpack.c.b16 %v2704, %v2697
    %v3006 = vpack.c.b16 %v2705, %v2698
    %v3007 = vpack.c.b16 %v2706, %v2699
    %v3008 = vpack.c.b16 %v2707, %v2700
    %v3009 = vpack.c.b16 %v2715, %v2708
    %v3010 = vpack.c.b16 %v2716, %v2709
    %v3011 = vpack.c.b16 %v2717, %v2710
    %v3012 = vpack.c.b16 %v2718, %v2711
    %v3013 = vpack.c.b16 %v2719, %v2712
    %v3014 = vpack.c.b16 %v2720, %v2713
    %v3015 = vpack.c.b16 %v2721, %v2714
    %v3016 = vpack.c.b16 %v2729, %v2722
    %v3017 = vpack.c.b16 %v2730, %v2723
    %v3018 = vpack.c.b16 %v2731, %v2724
    %v3019 = vpack.c.b16 %v2732, %v2725
    %v3020 = vpack.c.b16 %v2733, %v2726
    %v3021 = vpack.c.b16 %v2734, %v2727
    %v3022 = vpack.c.b16 %v2735, %v2728
    %v3023 = vpack.c.b16 %v2743, %v2736
    %v3024 = vpack.c.b16 %v2744, %v2737
    %v3025 = vpack.c.b16 %v2745, %v2738
    %v3026 = vpack.c.b16 %v2746, %v2739
    %v3027 = vpack.c.b16 %v2747, %v2740
    %v3028 = vpack.c.b16 %v2748, %v2741
    %v3029 = vpack.c.b16 %v2749, %v2742
    %v3030 = vpack.c.b16 %v2757, %v2750
    %v3031 = vpack.c.b16 %v2758, %v2751
    %v3032 = vpack.c.b16 %v2759, %v2752
    %v3033 = vpack.c.b16 %v2760, %v2753
    %v3034 = vpack.c.b16 %v2761, %v2754
    %v3035 = vpack.c.b16 %v2762, %v2755
    %v3036 = vpack.c.b16 %v2763, %v2756
    %v3037 = vpack.c.b16 %v2771, %v2764
    %v3038 = vpack.c.b16 %v2772, %v2765
    %v3039 = vpack.c.b16 %v2773, %v2766
    %v3040 = vpack.c.b16 %v2774, %v2767
    %v3041 = vpack.c.b16 %v2775, %v2768
    %v3042 = vpack.c.b16 %v2776, %v2769
    %v3043 = vpack.c.b16 %v2777, %v2770
    %v3044 = vpack.c.b16 %v2785, %v2778
    %v3045 = vpack.c.b16 %v2786, %v2779
    %v3046 = vpack.c.b16 %v2787, %v2780
    %v3047 = vpack.c.b16 %v2788, %v2781
    %v3048 = vpack.c.b16 %v2789, %v2782
    %v3049 = vpack.c.b16 %v2790, %v2783
    %v3050 = vpack.c.b16 %v2791, %v2784
    %v3051 = vpack.c.b16 %v2799, %v2792
    %v3052 = vpack.c.b16 %v2800, %v2793
    %v3053 = vpack.c.b16 %v2801, %v2794
    %v3054 = vpack.c.b16 %v2802, %v2795
    %v3055 = vpack.c.b16 %v2803, %v2796
    %v3056 = vpack.c.b16 %v2804, %v2797
    %v3057 = vpack.c.b16 %v2805, %v2798
    %v3058 = vpack.c.b16 %v2813, %v2806
    %v3059 = vpack.c.b16 %v2814, %v2807
    %v3060 = vpack.c.b16 %v2815, %v2808
    %v3061 = vpack.c.b16 %v2816, %v2809
    %v3062 = vpack.c.b16 %v2817, %v2810
    %v3063 = vpack.c.b16 %v2818, %v2811
    %v3064 = vpack.c.b16 %v2819, %v2812
    %v3065 = vpack.c.b16 %v2827, %v2820
    %v3066 = vpack.c.b16 %v2828, %v2821
    %v3067 = vpack.c.b16 %v2829, %v2822
    %v3068 = vpack.c.b16 %v2830, %v2823
    %v3069 = vpack.c.b16 %v2831, %v2824
    %v3070 = vpack.c.b16 %v2832, %v2825
    %v3071 = vpack.c.b16 %v2833, %v2826
    %v3072 = vpack.c.b16 %v2841, %v2834
    %v3073 = vpack.c.b16 %v2842, %v2835
    %v3074 = vpack.c.b16 %v2843, %v2836
    %v3075 = vpack.c.b16 %v2844, %v2837
    %v3076 = vpack.c.b16 %v2845, %v2838
    %v3077 = vpack.c.b16 %v2846, %v2839
    %v3078 = vpack.c.b16 %v2847, %v2840
    %v3079 = vpack.c.b16 %v2855, %v2848
    %v3080 = vpack.c.b16 %v2856, %v2849
    %v3081 = vpack.c.b16 %v2857, %v2850
    %v3082 = vpack.c.b16 %v2858, %v2851
    %v3083 = vpack.c.b16 %v2859, %v2852
    %v3084 = vpack.c.b16 %v2860, %v2853
    %v3085 = vpack.c.b16 %v2861, %v2854
    %v3086 = vpack.c.b16 %v2869, %v2862
    %v3087 = vpack.c.b16 %v2870, %v2863
    %v3088 = vpack.c.b16 %v2871, %v2864
    %v3089 = vpack.c.b16 %v2872, %v2865
    %v3090 = vpack.c.b16 %v2873, %v2866
    %v3091 = vpack.c.b16 %v2874, %v2867
    %v3092 = vpack.c.b16 %v2875, %v2868
    %v3093 = vpack.c.b16 %v2883, %v2876
    %v3094 = vpack.c.b16 %v2884, %v2877
    %v3095 = vpack.c.b16 %v2885, %v2878
    %v3096 = vpack.c.b16 %v2886, %v2879
    %v3097 = vpack.c.b16 %v2887, %v2880
    %v3098 = vpack.c.b16 %v2888, %v2881
    %v3099 = vpack.c.b16 %v2889, %v2882
    %v3100 = vpack.c.b16 %v2897, %v2890
    %v3101 = vpack.c.b16 %v2898, %v2891
    %v3102 = vpack.c.b16 %v2899, %v2892
    %v3103 = vpack.c.b16 %v2900, %v2893
    %v3104 = vpack.c.b16 %v2901, %v2894
    %v3105 = vpack.c.b16 %v2902, %v2895
    %v3106 = vpack.c.b16 %v2903, %v2896
    %v3107 = vpack.c.b16 %v2911, %v2904
    %v3108 = vpack.c.b16 %v2912, %v2905
    %v3109 = vpack.c.b16 %v2913, %v2906
    %v3110 = vpack.c.b16 %v2914, %v2907
    %v3111 = vpack.c.b16 %v2915, %v2908
    %v3112 = vpack.c.b16 %v2916, %v2909
    %v3113 = vpack.c.b16 %v2917, %v2910
    %v3114 = vpack.c.b16 %v2925, %v2918
    %v3115 = vpack.c.b16 %v2926, %v2919
    %v3116 = vpack.c.b16 %v2927, %v2920
    %v3117 = vpack.c.b16 %v2928, %v2921
    %v3118 = vpack.c.b16 %v2929, %v2922
    %v3119 = vpack.c.b16 %v2930, %v2923
    %v3120 = vpack.c.b16 %v2931, %v2924
    %v3121 = vpack.c.b16 %v2939, %v2932
    %v3122 = vpack.c.b16 %v2940, %v2933
    %v3123 = vpack.c.b16 %v2941, %v2934
    %v3124 = vpack.c.b16 %v2942, %v2935
    %v3125 = vpack.c.b16 %v2943, %v2936
    %v3126 = vpack.c.b16 %v2944, %v2937
    %v3127 = vpack.c.b16 %v2945, %v2938
    %v3128 = vpack.c.b16 %v2953, %v2946
    %v3129 = vpack.c.b16 %v2954, %v2947
    %v3130 = vpack.c.b16 %v2955, %v2948
    %v3131 = vpack.c.b16 %v2956, %v2949
    %v3132 = vpack.c.b16 %v2957, %v2950
    %v3133 = vpack.c.b16 %v2958, %v2951
    %v3134 = vpack.c.b16 %v2959, %v2952
    %v3311 = vsel %vm1603, %v2193, 0
    %3313 = vmatpush.bf16.msra.mxu0 %v3009
    %3314 = vmatpush.bf16.msra.mxu0 %v3002
    %3315 = vmatpush.bf16.msra.mxu0 %v2995
    %3316 = vmatpush.bf16.msra.mxu0 %v2988
    %3317 = vmatpush.bf16.msra.mxu0 %v2981
    %3318 = vmatpush.bf16.msra.mxu0 %v2974
    %3319 = vmatpush.bf16.msra.mxu0 %v2967
    %3320 = vmatpush.bf16.msra.mxu0 %v2960
    %3321 = vmatmul.bf16.gmra.mxu0 %v2190
    %v3322 = vpop.f32.mrf.mxu0
    %v3323 = vadd.f32 %v2396, %v3322
    %v3324 = vpop.f32.mrf.mxu0
    %3325 = vdwg.mxu0
    %3326 = vmatpush.bf16.msra.mxu0 %v3065
    %3327 = vmatpush.bf16.msra.mxu0 %v3058
    %3328 = vmatpush.bf16.msra.mxu0 %v3051
    %3329 = vmatpush.bf16.msra.mxu0 %v3044
    %3330 = vmatpush.bf16.msra.mxu0 %v3037
    %3331 = vmatpush.bf16.msra.mxu0 %v3030
    %3332 = vmatpush.bf16.msra.mxu0 %v3023
    %3333 = vmatpush.bf16.msra.mxu0 %v3016
    %3334 = vmatmul.bf16.gmra.mxu0 %v2191
    %v3335 = vpop.f32.mrf.mxu0
    %v3336 = vadd.f32 %v3323, %v3335
    %v3337 = vpop.f32.mrf.mxu0
    %3338 = vdwg.mxu0
    %3339 = vmatpush.bf16.msra.mxu0 %v3121
    %3340 = vmatpush.bf16.msra.mxu0 %v3114
    %3341 = vmatpush.bf16.msra.mxu0 %v3107
    %3342 = vmatpush.bf16.msra.mxu0 %v3100
    %3343 = vmatpush.bf16.msra.mxu0 %v3093
    %3344 = vmatpush.bf16.msra.mxu0 %v3086
    %3345 = vmatpush.bf16.msra.mxu0 %v3079
    %3346 = vmatpush.bf16.msra.mxu0 %v3072
    %3347 = vmatmul.bf16.gmra.mxu0 %v2192
    %v3348 = vpop.f32.mrf.mxu0
    %v3349 = vadd.f32 %v3336, %v3348
    %v3350 = vpop.f32.mrf.mxu0
    %3351 = vdwg.mxu0
    %3352 = vmatpush.bf16.msra.mxu0 0
    %3353 = vmatpush.bf16.msra.mxu0 0
    %3354 = vmatpush.bf16.msra.mxu0 0
    %3355 = vmatpush.bf16.msra.mxu0 0
    %3356 = vmatpush.bf16.msra.mxu0 0
    %3357 = vmatpush.bf16.msra.mxu0 0
    %3358 = vmatpush.bf16.msra.mxu0 0
    %3359 = vmatpush.bf16.msra.mxu0 %v3128
    %3360 = vmatmul.bf16.gmra.mxu0 %v3311
    %v3361 = vpop.f32.mrf.mxu0
    %v3362 = vadd.f32 %v3349, %v3361
    %v3363 = vpop.f32.mrf.mxu0
    %3364 = vdwg.mxu0
    %3365 = vmatpush.bf16.msra.mxu0 %v3010
    %3366 = vmatpush.bf16.msra.mxu0 %v3003
    %3367 = vmatpush.bf16.msra.mxu0 %v2996
    %3368 = vmatpush.bf16.msra.mxu0 %v2989
    %3369 = vmatpush.bf16.msra.mxu0 %v2982
    %3370 = vmatpush.bf16.msra.mxu0 %v2975
    %3371 = vmatpush.bf16.msra.mxu0 %v2968
    %3372 = vmatpush.bf16.msra.mxu0 %v2961
    %3373 = vmatmul.bf16.gmra.mxu0 %v2190
    %v3374 = vpop.f32.mrf.mxu0
    %v3375 = vadd.f32 %v2397, %v3374
    %v3376 = vpop.f32.mrf.mxu0
    %3377 = vdwg.mxu0
    %3378 = vmatpush.bf16.msra.mxu0 %v3066
    %3379 = vmatpush.bf16.msra.mxu0 %v3059
    %3380 = vmatpush.bf16.msra.mxu0 %v3052
    %3381 = vmatpush.bf16.msra.mxu0 %v3045
    %3382 = vmatpush.bf16.msra.mxu0 %v3038
    %3383 = vmatpush.bf16.msra.mxu0 %v3031
    %3384 = vmatpush.bf16.msra.mxu0 %v3024
    %3385 = vmatpush.bf16.msra.mxu0 %v3017
    %3386 = vmatmul.bf16.gmra.mxu0 %v2191
    %v3387 = vpop.f32.mrf.mxu0
    %v3388 = vadd.f32 %v3375, %v3387
    %v3389 = vpop.f32.mrf.mxu0
    %3390 = vdwg.mxu0
    %3391 = vmatpush.bf16.msra.mxu0 %v3122
    %3392 = vmatpush.bf16.msra.mxu0 %v3115
    %3393 = vmatpush.bf16.msra.mxu0 %v3108
    %3394 = vmatpush.bf16.msra.mxu0 %v3101
    %3395 = vmatpush.bf16.msra.mxu0 %v3094
    %3396 = vmatpush.bf16.msra.mxu0 %v3087
    %3397 = vmatpush.bf16.msra.mxu0 %v3080
    %3398 = vmatpush.bf16.msra.mxu0 %v3073
    %3399 = vmatmul.bf16.gmra.mxu0 %v2192
    %v3400 = vpop.f32.mrf.mxu0
    %v3401 = vadd.f32 %v3388, %v3400
    %v3402 = vpop.f32.mrf.mxu0
    %3403 = vdwg.mxu0
    %3404 = vmatpush.bf16.msra.mxu0 0
    %3405 = vmatpush.bf16.msra.mxu0 0
    %3406 = vmatpush.bf16.msra.mxu0 0
    %3407 = vmatpush.bf16.msra.mxu0 0
    %3408 = vmatpush.bf16.msra.mxu0 0
    %3409 = vmatpush.bf16.msra.mxu0 0
    %3410 = vmatpush.bf16.msra.mxu0 0
    %3411 = vmatpush.bf16.msra.mxu0 %v3129
    %3412 = vmatmul.bf16.gmra.mxu0 %v3311
    %v3413 = vpop.f32.mrf.mxu0
    %v3414 = vadd.f32 %v3401, %v3413
    %v3415 = vpop.f32.mrf.mxu0
    %3416 = vdwg.mxu0
    %3417 = vmatpush.bf16.msra.mxu0 %v3011
    %3418 = vmatpush.bf16.msra.mxu0 %v3004
    %3419 = vmatpush.bf16.msra.mxu0 %v2997
    %3420 = vmatpush.bf16.msra.mxu0 %v2990
    %3421 = vmatpush.bf16.msra.mxu0 %v2983
    %3422 = vmatpush.bf16.msra.mxu0 %v2976
    %3423 = vmatpush.bf16.msra.mxu0 %v2969
    %3424 = vmatpush.bf16.msra.mxu0 %v2962
    %3425 = vmatmul.bf16.gmra.mxu0 %v2190
    %v3426 = vpop.f32.mrf.mxu0
    %v3427 = vadd.f32 %v2398, %v3426
    %v3428 = vpop.f32.mrf.mxu0
    %3429 = vdwg.mxu0
    %3430 = vmatpush.bf16.msra.mxu0 %v3067
    %3431 = vmatpush.bf16.msra.mxu0 %v3060
    %3432 = vmatpush.bf16.msra.mxu0 %v3053
    %3433 = vmatpush.bf16.msra.mxu0 %v3046
    %3434 = vmatpush.bf16.msra.mxu0 %v3039
    %3435 = vmatpush.bf16.msra.mxu0 %v3032
    %3436 = vmatpush.bf16.msra.mxu0 %v3025
    %3437 = vmatpush.bf16.msra.mxu0 %v3018
    %3438 = vmatmul.bf16.gmra.mxu0 %v2191
    %v3439 = vpop.f32.mrf.mxu0
    %v3440 = vadd.f32 %v3427, %v3439
    %v3441 = vpop.f32.mrf.mxu0
    %3442 = vdwg.mxu0
    %3443 = vmatpush.bf16.msra.mxu0 %v3123
    %3444 = vmatpush.bf16.msra.mxu0 %v3116
    %3445 = vmatpush.bf16.msra.mxu0 %v3109
    %3446 = vmatpush.bf16.msra.mxu0 %v3102
    %3447 = vmatpush.bf16.msra.mxu0 %v3095
    %3448 = vmatpush.bf16.msra.mxu0 %v3088
    %3449 = vmatpush.bf16.msra.mxu0 %v3081
    %3450 = vmatpush.bf16.msra.mxu0 %v3074
    %3451 = vmatmul.bf16.gmra.mxu0 %v2192
    %v3452 = vpop.f32.mrf.mxu0
    %v3453 = vadd.f32 %v3440, %v3452
    %v3454 = vpop.f32.mrf.mxu0
    %3455 = vdwg.mxu0
    %3456 = vmatpush.bf16.msra.mxu0 0
    %3457 = vmatpush.bf16.msra.mxu0 0
    %3458 = vmatpush.bf16.msra.mxu0 0
    %3459 = vmatpush.bf16.msra.mxu0 0
    %3460 = vmatpush.bf16.msra.mxu0 0
    %3461 = vmatpush.bf16.msra.mxu0 0
    %3462 = vmatpush.bf16.msra.mxu0 0
    %3463 = vmatpush.bf16.msra.mxu0 %v3130
    %3464 = vmatmul.bf16.gmra.mxu0 %v3311
    %v3465 = vpop.f32.mrf.mxu0
    %v3466 = vadd.f32 %v3453, %v3465
    %v3467 = vpop.f32.mrf.mxu0
    %3468 = vdwg.mxu0
    %3469 = vmatpush.bf16.msra.mxu0 %v3012
    %3470 = vmatpush.bf16.msra.mxu0 %v3005
    %3471 = vmatpush.bf16.msra.mxu0 %v2998
    %3472 = vmatpush.bf16.msra.mxu0 %v2991
    %3473 = vmatpush.bf16.msra.mxu0 %v2984
    %3474 = vmatpush.bf16.msra.mxu0 %v2977
    %3475 = vmatpush.bf16.msra.mxu0 %v2970
    %3476 = vmatpush.bf16.msra.mxu0 %v2963
    %3477 = vmatmul.bf16.gmra.mxu0 %v2190
    %v3478 = vpop.f32.mrf.mxu0
    %v3479 = vadd.f32 %v2399, %v3478
    %v3480 = vpop.f32.mrf.mxu0
    %3481 = vdwg.mxu0
    %3482 = vmatpush.bf16.msra.mxu0 %v3068
    %3483 = vmatpush.bf16.msra.mxu0 %v3061
    %3484 = vmatpush.bf16.msra.mxu0 %v3054
    %3485 = vmatpush.bf16.msra.mxu0 %v3047
    %3486 = vmatpush.bf16.msra.mxu0 %v3040
    %3487 = vmatpush.bf16.msra.mxu0 %v3033
    %3488 = vmatpush.bf16.msra.mxu0 %v3026
    %3489 = vmatpush.bf16.msra.mxu0 %v3019
    %3490 = vmatmul.bf16.gmra.mxu0 %v2191
    %v3491 = vpop.f32.mrf.mxu0
    %v3492 = vadd.f32 %v3479, %v3491
    %v3493 = vpop.f32.mrf.mxu0
    %3494 = vdwg.mxu0
    %3495 = vmatpush.bf16.msra.mxu0 %v3124
    %3496 = vmatpush.bf16.msra.mxu0 %v3117
    %3497 = vmatpush.bf16.msra.mxu0 %v3110
    %3498 = vmatpush.bf16.msra.mxu0 %v3103
    %3499 = vmatpush.bf16.msra.mxu0 %v3096
    %3500 = vmatpush.bf16.msra.mxu0 %v3089
    %3501 = vmatpush.bf16.msra.mxu0 %v3082
    %3502 = vmatpush.bf16.msra.mxu0 %v3075
    %3503 = vmatmul.bf16.gmra.mxu0 %v2192
    %v3504 = vpop.f32.mrf.mxu0
    %v3505 = vadd.f32 %v3492, %v3504
    %v3506 = vpop.f32.mrf.mxu0
    %3507 = vdwg.mxu0
    %3508 = vmatpush.bf16.msra.mxu0 0
    %3509 = vmatpush.bf16.msra.mxu0 0
    %3510 = vmatpush.bf16.msra.mxu0 0
    %3511 = vmatpush.bf16.msra.mxu0 0
    %3512 = vmatpush.bf16.msra.mxu0 0
    %3513 = vmatpush.bf16.msra.mxu0 0
    %3514 = vmatpush.bf16.msra.mxu0 0
    %3515 = vmatpush.bf16.msra.mxu0 %v3131
    %3516 = vmatmul.bf16.gmra.mxu0 %v3311
    %v3517 = vpop.f32.mrf.mxu0
    %v3518 = vadd.f32 %v3505, %v3517
    %v3519 = vpop.f32.mrf.mxu0
    %3520 = vdwg.mxu0
    %3521 = vmatpush.bf16.msra.mxu0 %v3013
    %3522 = vmatpush.bf16.msra.mxu0 %v3006
    %3523 = vmatpush.bf16.msra.mxu0 %v2999
    %3524 = vmatpush.bf16.msra.mxu0 %v2992
    %3525 = vmatpush.bf16.msra.mxu0 %v2985
    %3526 = vmatpush.bf16.msra.mxu0 %v2978
    %3527 = vmatpush.bf16.msra.mxu0 %v2971
    %3528 = vmatpush.bf16.msra.mxu0 %v2964
    %3529 = vmatmul.bf16.gmra.mxu0 %v2190
    %v3530 = vpop.f32.mrf.mxu0
    %v3531 = vadd.f32 %v2400, %v3530
    %v3532 = vpop.f32.mrf.mxu0
    %3533 = vdwg.mxu0
    %3534 = vmatpush.bf16.msra.mxu0 %v3069
    %3535 = vmatpush.bf16.msra.mxu0 %v3062
    %3536 = vmatpush.bf16.msra.mxu0 %v3055
    %3537 = vmatpush.bf16.msra.mxu0 %v3048
    %3538 = vmatpush.bf16.msra.mxu0 %v3041
    %3539 = vmatpush.bf16.msra.mxu0 %v3034
    %3540 = vmatpush.bf16.msra.mxu0 %v3027
    %3541 = vmatpush.bf16.msra.mxu0 %v3020
    %3542 = vmatmul.bf16.gmra.mxu0 %v2191
    %v3543 = vpop.f32.mrf.mxu0
    %v3544 = vadd.f32 %v3531, %v3543
    %v3545 = vpop.f32.mrf.mxu0
    %3546 = vdwg.mxu0
    %3547 = vmatpush.bf16.msra.mxu0 %v3125
    %3548 = vmatpush.bf16.msra.mxu0 %v3118
    %3549 = vmatpush.bf16.msra.mxu0 %v3111
    %3550 = vmatpush.bf16.msra.mxu0 %v3104
    %3551 = vmatpush.bf16.msra.mxu0 %v3097
    %3552 = vmatpush.bf16.msra.mxu0 %v3090
    %3553 = vmatpush.bf16.msra.mxu0 %v3083
    %3554 = vmatpush.bf16.msra.mxu0 %v3076
    %3555 = vmatmul.bf16.gmra.mxu0 %v2192
    %v3556 = vpop.f32.mrf.mxu0
    %v3557 = vadd.f32 %v3544, %v3556
    %v3558 = vpop.f32.mrf.mxu0
    %3559 = vdwg.mxu0
    %3560 = vmatpush.bf16.msra.mxu0 0
    %3561 = vmatpush.bf16.msra.mxu0 0
    %3562 = vmatpush.bf16.msra.mxu0 0
    %3563 = vmatpush.bf16.msra.mxu0 0
    %3564 = vmatpush.bf16.msra.mxu0 0
    %3565 = vmatpush.bf16.msra.mxu0 0
    %3566 = vmatpush.bf16.msra.mxu0 0
    %3567 = vmatpush.bf16.msra.mxu0 %v3132
    %3568 = vmatmul.bf16.gmra.mxu0 %v3311
    %v3569 = vpop.f32.mrf.mxu0
    %v3570 = vadd.f32 %v3557, %v3569
    %v3571 = vpop.f32.mrf.mxu0
    %3572 = vdwg.mxu0
    %3573 = vmatpush.bf16.msra.mxu0 %v3014
    %3574 = vmatpush.bf16.msra.mxu0 %v3007
    %3575 = vmatpush.bf16.msra.mxu0 %v3000
    %3576 = vmatpush.bf16.msra.mxu0 %v2993
    %3577 = vmatpush.bf16.msra.mxu0 %v2986
    %3578 = vmatpush.bf16.msra.mxu0 %v2979
    %3579 = vmatpush.bf16.msra.mxu0 %v2972
    %3580 = vmatpush.bf16.msra.mxu0 %v2965
    %3581 = vmatmul.bf16.gmra.mxu0 %v2190
    %v3582 = vpop.f32.mrf.mxu0
    %v3583 = vadd.f32 %v2401, %v3582
    %v3584 = vpop.f32.mrf.mxu0
    %3585 = vdwg.mxu0
    %3586 = vmatpush.bf16.msra.mxu0 %v3070
    %3587 = vmatpush.bf16.msra.mxu0 %v3063
    %3588 = vmatpush.bf16.msra.mxu0 %v3056
    %3589 = vmatpush.bf16.msra.mxu0 %v3049
    %3590 = vmatpush.bf16.msra.mxu0 %v3042
    %3591 = vmatpush.bf16.msra.mxu0 %v3035
    %3592 = vmatpush.bf16.msra.mxu0 %v3028
    %3593 = vmatpush.bf16.msra.mxu0 %v3021
    %3594 = vmatmul.bf16.gmra.mxu0 %v2191
    %v3595 = vpop.f32.mrf.mxu0
    %v3596 = vadd.f32 %v3583, %v3595
    %v3597 = vpop.f32.mrf.mxu0
    %3598 = vdwg.mxu0
    %3599 = vmatpush.bf16.msra.mxu0 %v3126
    %3600 = vmatpush.bf16.msra.mxu0 %v3119
    %3601 = vmatpush.bf16.msra.mxu0 %v3112
    %3602 = vmatpush.bf16.msra.mxu0 %v3105
    %3603 = vmatpush.bf16.msra.mxu0 %v3098
    %3604 = vmatpush.bf16.msra.mxu0 %v3091
    %3605 = vmatpush.bf16.msra.mxu0 %v3084
    %3606 = vmatpush.bf16.msra.mxu0 %v3077
    %3607 = vmatmul.bf16.gmra.mxu0 %v2192
    %v3608 = vpop.f32.mrf.mxu0
    %v3609 = vadd.f32 %v3596, %v3608
    %v3610 = vpop.f32.mrf.mxu0
    %3611 = vdwg.mxu0
    %3612 = vmatpush.bf16.msra.mxu0 0
    %3613 = vmatpush.bf16.msra.mxu0 0
    %3614 = vmatpush.bf16.msra.mxu0 0
    %3615 = vmatpush.bf16.msra.mxu0 0
    %3616 = vmatpush.bf16.msra.mxu0 0
    %3617 = vmatpush.bf16.msra.mxu0 0
    %3618 = vmatpush.bf16.msra.mxu0 0
    %3619 = vmatpush.bf16.msra.mxu0 %v3133
    %3620 = vmatmul.bf16.gmra.mxu0 %v3311
    %v3621 = vpop.f32.mrf.mxu0
    %v3622 = vadd.f32 %v3609, %v3621
    %v3623 = vpop.f32.mrf.mxu0
    %3624 = vdwg.mxu0
    %3625 = vmatpush.bf16.msra.mxu0 %v3015
    %3626 = vmatpush.bf16.msra.mxu0 %v3008
    %3627 = vmatpush.bf16.msra.mxu0 %v3001
    %3628 = vmatpush.bf16.msra.mxu0 %v2994
    %3629 = vmatpush.bf16.msra.mxu0 %v2987
    %3630 = vmatpush.bf16.msra.mxu0 %v2980
    %3631 = vmatpush.bf16.msra.mxu0 %v2973
    %3632 = vmatpush.bf16.msra.mxu0 %v2966
    %3633 = vmatmul.bf16.gmra.mxu0 %v2190
    %v3634 = vpop.f32.mrf.mxu0
    %v3635 = vadd.f32 %v2402, %v3634
    %v3636 = vpop.f32.mrf.mxu0
    %3637 = vdwg.mxu0
    %3638 = vmatpush.bf16.msra.mxu0 %v3071
    %3639 = vmatpush.bf16.msra.mxu0 %v3064
    %3640 = vmatpush.bf16.msra.mxu0 %v3057
    %3641 = vmatpush.bf16.msra.mxu0 %v3050
    %3642 = vmatpush.bf16.msra.mxu0 %v3043
    %3643 = vmatpush.bf16.msra.mxu0 %v3036
    %3644 = vmatpush.bf16.msra.mxu0 %v3029
    %3645 = vmatpush.bf16.msra.mxu0 %v3022
    %3646 = vmatmul.bf16.gmra.mxu0 %v2191
    %v3647 = vpop.f32.mrf.mxu0
    %v3648 = vadd.f32 %v3635, %v3647
    %v3649 = vpop.f32.mrf.mxu0
    %3650 = vdwg.mxu0
    %3651 = vmatpush.bf16.msra.mxu0 %v3127
    %3652 = vmatpush.bf16.msra.mxu0 %v3120
    %3653 = vmatpush.bf16.msra.mxu0 %v3113
    %3654 = vmatpush.bf16.msra.mxu0 %v3106
    %3655 = vmatpush.bf16.msra.mxu0 %v3099
    %3656 = vmatpush.bf16.msra.mxu0 %v3092
    %3657 = vmatpush.bf16.msra.mxu0 %v3085
    %3658 = vmatpush.bf16.msra.mxu0 %v3078
    %3659 = vmatmul.bf16.gmra.mxu0 %v2192
    %v3660 = vpop.f32.mrf.mxu0
    %v3661 = vadd.f32 %v3648, %v3660
    %v3662 = vpop.f32.mrf.mxu0
    %3663 = vdwg.mxu0
    %3664 = vmatpush.bf16.msra.mxu0 0
    %3665 = vmatpush.bf16.msra.mxu0 0
    %3666 = vmatpush.bf16.msra.mxu0 0
    %3667 = vmatpush.bf16.msra.mxu0 0
    %3668 = vmatpush.bf16.msra.mxu0 0
    %3669 = vmatpush.bf16.msra.mxu0 0
    %3670 = vmatpush.bf16.msra.mxu0 0
    %3671 = vmatpush.bf16.msra.mxu0 %v3134
    %3672 = vmatmul.bf16.gmra.mxu0 %v3311
    %v3673 = vpop.f32.mrf.mxu0
    %v3674 = vadd.f32 %v3661, %v3673
    %v3675 = vpop.f32.mrf.mxu0
    %3676 = vdwg.mxu0
    %v3677 = vxor.u32 %v3362, 2147483648
    %v3678 = vxor.u32 %v3414, 2147483648
    %v3679 = vxor.u32 %v3466, 2147483648
    %v3680 = vxor.u32 %v3518, 2147483648
    %v3681 = vxor.u32 %v3570, 2147483648
    %v3682 = vxor.u32 %v3622, 2147483648
    %v3683 = vxor.u32 %v3674, 2147483648
    %v3684 = vmul.f32 %v3677, 1.442695
    %v3685 = vpow.pop %v3684
    %v3686 = vmul.f32 %v3678, 1.442695
    %v3687 = vpow.pop %v3686
    %v3688 = vmul.f32 %v3679, 1.442695
    %v3689 = vpow.pop %v3688
    %v3690 = vmul.f32 %v3680, 1.442695
    %v3691 = vpow.pop %v3690
    %v3692 = vmul.f32 %v3681, 1.442695
    %v3693 = vpow.pop %v3692
    %v3694 = vmul.f32 %v3682, 1.442695
    %v3695 = vpow.pop %v3694
    %v3696 = vmul.f32 %v3683, 1.442695
    %v3697 = vpow.pop %v3696
    %v3698 = vadd.f32 %v3685, 1.0
    %v3699 = vadd.f32 %v3687, 1.0
    %v3700 = vadd.f32 %v3689, 1.0
    %v3701 = vadd.f32 %v3691, 1.0
    %v3702 = vadd.f32 %v3693, 1.0
    %v3703 = vadd.f32 %v3695, 1.0
    %v3704 = vadd.f32 %v3697, 1.0
    %v3705 = vrcp.pop %v3698
    %v3706 = vmul.f32 %v3698, %v3705
    %v3707 = vsub.f32 1.0, %v3706
    %v3708 = vmul.f32 %v3705, %v3707
    %v3709 = vadd.f32 %v3705, %v3708
    %vm3710 = vweird.f32 %v3698
    %vm3711 = vweird.f32 %v3705
    %vm3712 = vmor %vm3710, %vm3711
    %v3713 = vsel %vm3712, %v3705, %v3709
    %v3714 = vand.u32 2147483647, %v3698
    %vm3715 = vcmp.eq.f32.partialorder %v3714, 8.507059e+37
    %v3716 = vand.u32 %v3698, 2147483648
    %v3717 = vor.u32 1.1754944e-38, %v3716
    %v3718 = vsel %vm3715, %v3717, %v3713
    %v3719 = vmul.f32 1.0, %v3718
    %v3720 = vrcp.pop %v3699
    %v3721 = vmul.f32 %v3699, %v3720
    %v3722 = vsub.f32 1.0, %v3721
    %v3723 = vmul.f32 %v3720, %v3722
    %v3724 = vadd.f32 %v3720, %v3723
    %vm3725 = vweird.f32 %v3699
    %vm3726 = vweird.f32 %v3720
    %vm3727 = vmor %vm3725, %vm3726
    %v3728 = vsel %vm3727, %v3720, %v3724
    %v3729 = vand.u32 2147483647, %v3699
    %vm3730 = vcmp.eq.f32.partialorder %v3729, 8.507059e+37
    %v3731 = vand.u32 %v3699, 2147483648
    %v3732 = vor.u32 1.1754944e-38, %v3731
    %v3733 = vsel %vm3730, %v3732, %v3728
    %v3734 = vmul.f32 1.0, %v3733
    %v3735 = vrcp.pop %v3700
    %v3736 = vmul.f32 %v3700, %v3735
    %v3737 = vsub.f32 1.0, %v3736
    %v3738 = vmul.f32 %v3735, %v3737
    %v3739 = vadd.f32 %v3735, %v3738
    %vm3740 = vweird.f32 %v3700
    %vm3741 = vweird.f32 %v3735
    %vm3742 = vmor %vm3740, %vm3741
    %v3743 = vsel %vm3742, %v3735, %v3739
    %v3744 = vand.u32 2147483647, %v3700
    %vm3745 = vcmp.eq.f32.partialorder %v3744, 8.507059e+37
    %v3746 = vand.u32 %v3700, 2147483648
    %v3747 = vor.u32 1.1754944e-38, %v3746
    %v3748 = vsel %vm3745, %v3747, %v3743
    %v3749 = vmul.f32 1.0, %v3748
    %v3750 = vrcp.pop %v3701
    %v3751 = vmul.f32 %v3701, %v3750
    %v3752 = vsub.f32 1.0, %v3751
    %v3753 = vmul.f32 %v3750, %v3752
    %v3754 = vadd.f32 %v3750, %v3753
    %vm3755 = vweird.f32 %v3701
    %vm3756 = vweird.f32 %v3750
    %vm3757 = vmor %vm3755, %vm3756
    %v3758 = vsel %vm3757, %v3750, %v3754
    %v3759 = vand.u32 2147483647, %v3701
    %vm3760 = vcmp.eq.f32.partialorder %v3759, 8.507059e+37
    %v3761 = vand.u32 %v3701, 2147483648
    %v3762 = vor.u32 1.1754944e-38, %v3761
    %v3763 = vsel %vm3760, %v3762, %v3758
    %v3764 = vmul.f32 1.0, %v3763
    %v3765 = vrcp.pop %v3702
    %v3766 = vmul.f32 %v3702, %v3765
    %v3767 = vsub.f32 1.0, %v3766
    %v3768 = vmul.f32 %v3765, %v3767
    %v3769 = vadd.f32 %v3765, %v3768
    %vm3770 = vweird.f32 %v3702
    %vm3771 = vweird.f32 %v3765
    %vm3772 = vmor %vm3770, %vm3771
    %v3773 = vsel %vm3772, %v3765, %v3769
    %v3774 = vand.u32 2147483647, %v3702
    %vm3775 = vcmp.eq.f32.partialorder %v3774, 8.507059e+37
    %v3776 = vand.u32 %v3702, 2147483648
    %v3777 = vor.u32 1.1754944e-38, %v3776
    %v3778 = vsel %vm3775, %v3777, %v3773
    %v3779 = vmul.f32 1.0, %v3778
    %v3780 = vrcp.pop %v3703
    %v3781 = vmul.f32 %v3703, %v3780
    %v3782 = vsub.f32 1.0, %v3781
    %v3783 = vmul.f32 %v3780, %v3782
    %v3784 = vadd.f32 %v3780, %v3783
    %vm3785 = vweird.f32 %v3703
    %vm3786 = vweird.f32 %v3780
    %vm3787 = vmor %vm3785, %vm3786
    %v3788 = vsel %vm3787, %v3780, %v3784
    %v3789 = vand.u32 2147483647, %v3703
    %vm3790 = vcmp.eq.f32.partialorder %v3789, 8.507059e+37
    %v3791 = vand.u32 %v3703, 2147483648
    %v3792 = vor.u32 1.1754944e-38, %v3791
    %v3793 = vsel %vm3790, %v3792, %v3788
    %v3794 = vmul.f32 1.0, %v3793
    %v3795 = vrcp.pop %v3704
    %v3796 = vmul.f32 %v3704, %v3795
    %v3797 = vsub.f32 1.0, %v3796
    %v3798 = vmul.f32 %v3795, %v3797
    %v3799 = vadd.f32 %v3795, %v3798
    %vm3800 = vweird.f32 %v3704
    %vm3801 = vweird.f32 %v3795
    %vm3802 = vmor %vm3800, %vm3801
    %v3803 = vsel %vm3802, %v3795, %v3799
    %v3804 = vand.u32 2147483647, %v3704
    %vm3805 = vcmp.eq.f32.partialorder %v3804, 8.507059e+37
    %v3806 = vand.u32 %v3704, 2147483648
    %v3807 = vor.u32 1.1754944e-38, %v3806
    %v3808 = vsel %vm3805, %v3807, %v3803
    %v3809 = vmul.f32 1.0, %v3808
    %3810 = vst [vmem:[#allocation4] sm:$0xff] %v3719
    %3811 = vst [vmem:[#allocation4 + $0x8] sm:$0xff] %v3734
    %3812 = vst [vmem:[#allocation4 + $0x10] sm:$0xff] %v3749
    %3813 = vst [vmem:[#allocation4 + $0x18] sm:$0xff] %v3764
    %3814 = vst [vmem:[#allocation4 + $0x20] sm:$0xff] %v3779
    %3815 = vst [vmem:[#allocation4 + $0x28] sm:$0xff] %v3794
    %3816 = vst.msk [vmem:[#allocation4 + $0x30] sm:$0xff] %vm1603, %v3809
    %vm3817 = vcmask 31744
    %3818 = vst.msk [vmem:[%s11] sm:$0xff] %vm3817, %v2110
    // Predicated region
    $region57: #{tpu_custom_call.1} parent=1 // pred_check
      _
    $region58: #{tpu_custom_call.1} parent=1 // pred_check_branch
      %3820 = sbr.rel (0) target = $region60
    $region59: #{tpu_custom_call.1} parent=1 // pred_region
      %3822 = vsyncadd [#allocation5], 0
      %s3824 = sshll.u32 [#allocation4], 4
      %s3825 = int_to_ptr.vmem [resolvable:$true] %s3824
      %s3826 = sshll.u32 %s10, 4
      %s3827 = int_to_ptr.hbm [resolvable:$true] %s3826
      %3829 = dma.vmem_to_hbm [thread:$0]  %s3825, 896, %s3827, [#allocation5]
    $region60: #{tpu_custom_call.1} parent=1 // pred_fallthru
      _
    // Predicated region
    $region61: #{tpu_custom_call.1} parent=1 // pred_check
      _
    $region62: #{tpu_custom_call.1} parent=1 // pred_check_branch
      %3831 = sbr.rel (0) target = $region64
    $region63: #{tpu_custom_call.1} parent=1 // pred_region
      _
    $region64: #{tpu_custom_call.1} parent=1 // pred_fallthru
      _
    // Predicated region
    $region65: #{tpu_custom_call.1} parent=1 // pred_check
      _
    $region66: #{tpu_custom_call.1} parent=1 // pred_check_branch
      %3833 = sbr.rel (0) target = $region68
    $region67: #{tpu_custom_call.1} parent=1 // pred_region
      %3835 = dma.done [#allocation5], 896
    $region68: #{tpu_custom_call.1} parent=1 // pred_fallthru
      _
    // Predicated region
    $region69: #{tpu_custom_call.1} parent=1 // pred_check
      _
    $region70: #{tpu_custom_call.1} parent=1 // pred_check_branch
      %3837 = sbr.rel (0) target = $region72
    $region71: #{tpu_custom_call.1} parent=1 // pred_region
      _
    $region72: #{tpu_custom_call.1} parent=1 // pred_fallthru
      _
    %3838 = vsyncpa [#allocation5], 1
  %3839 = vsyncmov [#allocation3]
  %s3840 = vpop.sfrf %3839
  %p3841 = scmp.eq.s32.totalorder %s3840, 0
  %p3842 = pneg %p3841
  %3844 = shalt.err (%p3842)

</llo_original>
